<compile_context>
chip_gen: v5e
topology: v5e:2x2
jax: 0.10.0
libtpu: 0.0.40
codegen_flags: <defaults>
</compile_context>

<pallas_src>
import functools

import jax
import jax.numpy as jnp
from jax.experimental import pallas as pl
from jax.experimental.pallas import tpu as pltpu


IN_PAD = 128   # padded feature / activation width (lane multiple)


# ---------------------------------------------------------------------------
# The single fused kernel: 2x bidirectional HighwayLSTM layer + head.
# ---------------------------------------------------------------------------

def _parser_kernel(x_ref,
                   wih0, whhf0, whhb0, b0, ghw0, ghwb0,
                   wih1, whhf1, whhb1, b1, ghw1, ghwb1,
                   hw1, hb1, hw2, hb2, hw3, hb3,
                   rw1, rb1, rw2, rb2, rw3, rb3,
                   o_ref, gates_sc, *, T, B, H):
    TB = T * B
    G4 = 4 * H                                   # per-direction gate width

    def run_layer(x, wih, whhf, whhb, b, ghw, ghwb):
        # Whole-sequence input projection for BOTH directions in one matmul
        # (bias hoisted out of the recurrence): [TB, F] @ [F, 8H].
        gates_sc[...] = (jnp.dot(x, wih[...],
                                 preferred_element_type=jnp.float32) + b[...])

        # Highway residual, one fused [F, 4H] matmul: [gate(2H) | highway(2H)].
        xg = (jnp.dot(x, ghw[...], preferred_element_type=jnp.float32)
              + ghwb[...])
        res = jax.nn.sigmoid(xg[:, :2 * H]) * jnp.tanh(xg[:, 2 * H:4 * H])

        def chain(col_off, whh_ref, reverse):
            whh = whh_ref[...]                   # [H, 4H]
            h = jnp.zeros((B, H), jnp.float32)   # h_init / c_init are zeros
            c = jnp.zeros((B, H), jnp.float32)
            outs = [None] * T
            for k in range(T):                   # fully unrolled, static offsets
                t = (T - 1 - k) if reverse else k
                g = (gates_sc[t * B:(t + 1) * B, col_off:col_off + G4]
                     + jnp.dot(h, whh, preferred_element_type=jnp.float32))
                sg = jax.nn.sigmoid(g)           # full vreg; gate order i,f,g,o
                gg = jnp.tanh(g[:, 2 * H:3 * H])  # tanh only on the g quarter
                c = sg[:, H:2 * H] * c + sg[:, 0:H] * gg
                h = sg[:, 3 * H:4 * H] * jnp.tanh(c)
                outs[t] = h
            return jnp.concatenate(outs, axis=0)  # [TB, H], time order

        fwd = chain(0, whhf, False)
        bwd = chain(G4, whhb, True)
        y = jnp.concatenate([fwd, bwd], axis=1) + res           # [TB, 2H]
        # zero-pad to a full 128-lane activation (exact; padded weight rows = 0)
        return jnp.concatenate(
            [y, jnp.zeros((TB, 2 * H), jnp.float32)], axis=1)    # [TB, 128]

    x0 = x_ref[...]                                              # [TB, 128]
    a1 = run_layer(x0, wih0, whhf0, whhb0, b0, ghw0, ghwb0)
    a2 = run_layer(a1, wih1, whhf1, whhb1, b1, ghw1, ghwb1)      # [TB, 128]

    # Per-sentence max-norm normalization (rows are time-major: row = t*B + b).
    sq = jnp.sum(a2 * a2, axis=-1, keepdims=True)                # [TB, 1]
    mx = sq[0:B, :]
    for t in range(1, T):
        mx = jnp.maximum(mx, sq[t * B:(t + 1) * B, :])           # [B, 1]
    inv = 1.0 / (jnp.sqrt(mx) + 0.001)                           # exact divide
    xn = a2 * jnp.concatenate([inv] * T, axis=0)                 # [TB, 128]

    def ff(v, w, bb, relu=True):
        y = jnp.dot(v, w[...], preferred_element_type=jnp.float32) + bb[...]
        return jnp.maximum(y, 0.0) if relu else y

    # hypmapping: 128 -> 1024 -> 128 -> 512 (ReLU after each, padded widths)
    m = ff(xn, hw1, hb1)
    m = ff(m, hw2, hb2)
    m = ff(m, hw3, hb3)
    # rootpred: 512 -> 128 -> 128 -> 128 (col 0 is the real score)
    m = ff(m, rw1, rb1)
    m = ff(m, rw2, rb2)
    m = ff(m, rw3, rb3, relu=False)                              # [TB, 128]
    o_ref[...] = m                                               # one dense store


def parser_core(x_flat, pk, *, T, B, H):
    """x_flat: [T*B, 128] time-major flat padded features -> scores [T*B, 128]."""
    TB = T * B
    lw0, lw1 = pk['layers']
    (hw1, hb1), (hw2, hb2), (hw3, hb3) = pk['hyp']
    (rw1, rb1), (rw2, rb2), (rw3, rb3) = pk['root']
    return pl.pallas_call(
        functools.partial(_parser_kernel, T=T, B=B, H=H),
        out_shape=jax.ShapeDtypeStruct((TB, 128), jnp.float32),
        scratch_shapes=[pltpu.VMEM((TB, 8 * H), jnp.float32)],
    )(x_flat,
      lw0['wih'], lw0['whh_f'], lw0['whh_b'], lw0['b'], lw0['ghw'], lw0['ghwb'],
      lw1['wih'], lw1['whh_f'], lw1['whh_b'], lw1['b'], lw1['ghw'], lw1['ghwb'],
      hw1, hb1, hw2, hb2, hw3, hb3,
      rw1, rb1, rw2, rb2, rw3, rb3)


# ---------------------------------------------------------------------------
# Parameters (deterministic, shapes follow Parser.__init__)
# ---------------------------------------------------------------------------

CFG = dict(
    n_word=50, n_lemma=50, n_upos=20, n_xpos=30, feats_lens=(10, 12),
    word_emb_dim=16, tag_emb_dim=8, transformed_dim=16,
    pretrain_vocab=40, pretrain_dim=24,
    hidden_dim=32, num_layers=2,
    batch=2, seqlen=8,
)


def init_params(key, cfg):
    kit = iter(jax.random.split(key, 64))

    def nrm(shape, scale=0.1):
        return (scale * jax.random.normal(next(kit), shape)).astype(jnp.float32)

    def emb(n, d):
        e = nrm((n, d))
        return e.at[0].set(0.0)                                # padding_idx=0

    H = cfg['hidden_dim']
    Dw, Dt, Dtr = cfg['word_emb_dim'], cfg['tag_emb_dim'], cfg['transformed_dim']
    input_size = Dtr + 2 * Dw + 2 * Dt

    p = {}
    p['word_emb'] = emb(cfg['n_word'], Dw)
    p['lemma_emb'] = emb(cfg['n_lemma'], Dw)
    p['upos_emb'] = emb(cfg['n_upos'], Dt)
    p['xpos_emb'] = emb(cfg['n_xpos'], Dt)
    p['ufeats_emb'] = [emb(n, Dt) for n in cfg['feats_lens']]
    p['pretrained_emb'] = nrm((cfg['pretrain_vocab'], cfg['pretrain_dim']))
    p['trans_pretrained_wt'] = nrm((cfg['pretrain_dim'], Dtr))  # bias=False

    # HighwayLSTM: per layer a bidirectional LSTM plus
    # sigmoid(gate(x)) * tanh(highway(x)) residual on the layer input.
    layers = []
    in_size = input_size
    for _ in range(cfg['num_layers']):
        layer = {}
        for d in ('fwd', 'bwd'):
            layer[d] = dict(
                wih_t=nrm((in_size, 4 * H)),
                whh_t=nrm((H, 4 * H)),
                b=nrm((1, 4 * H)),                             # b_ih + b_hh
            )
        layer['gate_wt'] = nrm((in_size, 2 * H))
        layer['gate_b'] = jnp.zeros((1, 2 * H), jnp.float32)   # bias zeroed in ref
        layer['hw_wt'] = nrm((in_size, 2 * H))
        layer['hw_b'] = jnp.zeros((1, 2 * H), jnp.float32)
        layers.append(layer)
        in_size = 2 * H
    p['hlstm'] = layers

    p['hyp'] = [
        (nrm((2 * H, 1000)), nrm((1, 1000))),
        (nrm((1000, 100)), nrm((1, 100))),
        (nrm((100, 400)), nrm((1, 400))),
    ]
    p['root'] = [
        (nrm((400, 100)), nrm((1, 100))),
        (nrm((100, 100)), nrm((1, 100))),
        (nrm((100, 1)), nrm((1, 1))),
    ]
    return p


def pack_params(p, cfg):
    """One-time repack: fold trans_pretrained into layer-0 input weights,
    fuse fwd|bwd (and gate|highway) weight columns, and zero-pad every
    width to a lane multiple (exact: padded rows/cols are zeros)."""
    H = cfg['hidden_dim']
    Wp = p['trans_pretrained_wt']                              # [Dpre, Dtr]
    Dtr = Wp.shape[1]

    def fold0(w):   # layer-0 rows: [transformed(Dtr) | rest] -> [raw_pre | rest]
        return jnp.concatenate([Wp @ w[:Dtr], w[Dtr:]], axis=0)

    def pad2(a, rows, cols):
        return jnp.pad(a, ((0, rows - a.shape[0]), (0, cols - a.shape[1])))

    layers = []
    for li, layer in enumerate(p['hlstm']):
        fold = fold0 if li == 0 else (lambda w: w)
        wih = pad2(jnp.concatenate([fold(layer['fwd']['wih_t']),
                                    fold(layer['bwd']['wih_t'])], axis=1),
                   IN_PAD, 8 * H)                              # [128, 256]
        b = jnp.concatenate([layer['fwd']['b'], layer['bwd']['b']], axis=1)
        ghw = pad2(jnp.concatenate([fold(layer['gate_wt']),
                                    fold(layer['hw_wt'])], axis=1),
                   IN_PAD, 4 * H)                              # [128, 128]
        ghwb = jnp.concatenate([layer['gate_b'], layer['hw_b']], axis=1)
        layers.append(dict(wih=wih,
                           whh_f=layer['fwd']['whh_t'],        # [H, 4H]
                           whh_b=layer['bwd']['whh_t'],
                           b=b, ghw=ghw, ghwb=ghwb))

    def padwb(wb, rows, cols):
        w, bb = wb
        return (pad2(w, rows, cols), pad2(bb, 1, cols))

    hyp = [padwb(p['hyp'][0], IN_PAD, 1024),                   # 128 -> 1024
           padwb(p['hyp'][1], 1024, 128),                      # 1024 -> 128
           padwb(p['hyp'][2], 128, 512)]                       # 128 -> 512
    root = [padwb(p['root'][0], 512, 128),                     # 512 -> 128
            padwb(p['root'][1], 128, 128),
            padwb(p['root'][2], 128, 128)]                     # col 0 = score

    return dict(
        word_emb=p['word_emb'], lemma_emb=p['lemma_emb'],
        upos_emb=p['upos_emb'], xpos_emb=p['xpos_emb'],
        ufeats_emb=p['ufeats_emb'], pretrained_emb=p['pretrained_emb'],
        layers=layers, hyp=hyp, root=root)


# ---------------------------------------------------------------------------
# Forward pass (eval mode)
# ---------------------------------------------------------------------------

def parser_forward(pk, word, lemma, upos, xpos, ufeats, pretrained, head, root):
    """Returns (loss, correct, f1_total, correct_heads, node_system, node_gold)."""
    B, T = word.shape
    H = pk['layers'][0]['whh_f'].shape[0]

    # ---- embedding lookups (tiny XLA gathers), assembled time-major ----
    wT, lT, uT, xT, pT = word.T, lemma.T, upos.T, xpos.T, pretrained.T
    fT = jnp.transpose(ufeats, (1, 0, 2))
    pre = pk['pretrained_emb'][pT]            # raw pretrained vectors; the
    we = pk['word_emb'][wT]                   # trans_pretrained Linear is folded
    le = pk['lemma_emb'][lT]                  # into the layer-0 weights.
    pos = pk['upos_emb'][uT] + pk['xpos_emb'][xT]
    feats = pk['ufeats_emb'][0][fT[..., 0]]
    for i in range(1, len(pk['ufeats_emb'])):
        feats = feats + pk['ufeats_emb'][i][fT[..., i]]
    real = (pre.shape[-1] + we.shape[-1] + le.shape[-1]
            + pos.shape[-1] + feats.shape[-1])
    zpad = jnp.zeros((T, B, IN_PAD - real), jnp.float32)
    # concat order matches the reference: [pretrained, word, lemma, pos, feats]
    x = jnp.concatenate([pre, we, le, pos, feats, zpad], axis=-1)  # [T, B, 128]
    x = x.reshape(T * B, IN_PAD)                                   # time-major flat
    # WordDropout / Dropout are identities in eval mode.

    # ---- ONE fused kernel: HighwayLSTM x2 + normalize + hypmapping + rootpred
    scores = parser_core(x, pk, T=T, B=B, H=H)                     # [T*B, 128]
    predicted_scores = scores[:, 0].reshape(T, B).T                # [B, T]

    # ---- metrics (eval branch) ----
    predictions = jax.nn.softmax(predicted_scores, axis=1)
    max_index = jnp.argmax(predictions, axis=1)
    total = jnp.sum((max_index == root).astype(jnp.int32))
    correct = total.astype(jnp.float32) / B
    loss = jnp.float32(0.0)
    # TODO(synk): training branch (CrossEntropyLoss on predicted_scores vs root)
    # is not taken in eval mode and is therefore not implemented.
    f1_total = correct_heads = node_system = node_gold = 0
    return loss, correct, f1_total, correct_heads, node_system, node_gold


# ---------------------------------------------------------------------------
# Main
# ---------------------------------------------------------------------------

if __name__ == "__main__":
    cfg = CFG
    key = jax.random.PRNGKey(0)
    kp, kd = jax.random.split(key)
    params = init_params(kp, cfg)
    packed = pack_params(params, cfg)

    B, T = cfg['batch'], cfg['seqlen']
    ks = jax.random.split(kd, 9)
    word = jax.random.randint(ks[0], (B, T), 1, cfg['n_word'])
    lemma = jax.random.randint(ks[1], (B, T), 1, cfg['n_lemma'])
    upos = jax.random.randint(ks[2], (B, T), 1, cfg['n_upos'])
    xpos = jax.random.randint(ks[3], (B, T), 1, cfg['n_xpos'])
    ufeats = jnp.stack(
        [jax.random.randint(ks[4], (B, T), 1, l) for l in cfg['feats_lens']],
        axis=-1)
    pretrained = jax.random.randint(ks[5], (B, T), 0, cfg['pretrain_vocab'])
    head = jax.random.randint(ks[6], (B, T), 0, T)
    root = jax.random.randint(ks[7], (B,), 0, T)

    forward = jax.jit(parser_forward)
    outs = forward(packed, word, lemma, upos, xpos, ufeats, pretrained,
                   head, root)
    jax.block_until_ready((outs[0], outs[1]))
    print("KERNEL_OK")
</pallas_src>

<mosaic_0001>
module attributes {stable_mosaic.version = 11 : i64} {
  func.func @_parser_kernel(%arg0: memref<16x128xf32, #tpu.memory_space<vmem>>, %arg1: memref<128x256xf32, #tpu.memory_space<vmem>>, %arg2: memref<32x128xf32, #tpu.memory_space<vmem>>, %arg3: memref<32x128xf32, #tpu.memory_space<vmem>>, %arg4: memref<1x256xf32, #tpu.memory_space<vmem>>, %arg5: memref<128x128xf32, #tpu.memory_space<vmem>>, %arg6: memref<1x128xf32, #tpu.memory_space<vmem>>, %arg7: memref<128x256xf32, #tpu.memory_space<vmem>>, %arg8: memref<32x128xf32, #tpu.memory_space<vmem>>, %arg9: memref<32x128xf32, #tpu.memory_space<vmem>>, %arg10: memref<1x256xf32, #tpu.memory_space<vmem>>, %arg11: memref<128x128xf32, #tpu.memory_space<vmem>>, %arg12: memref<1x128xf32, #tpu.memory_space<vmem>>, %arg13: memref<128x1024xf32, #tpu.memory_space<vmem>>, %arg14: memref<1x1024xf32, #tpu.memory_space<vmem>>, %arg15: memref<1024x128xf32, #tpu.memory_space<vmem>>, %arg16: memref<1x128xf32, #tpu.memory_space<vmem>>, %arg17: memref<128x512xf32, #tpu.memory_space<vmem>>, %arg18: memref<1x512xf32, #tpu.memory_space<vmem>>, %arg19: memref<512x128xf32, #tpu.memory_space<vmem>>, %arg20: memref<1x128xf32, #tpu.memory_space<vmem>>, %arg21: memref<128x128xf32, #tpu.memory_space<vmem>>, %arg22: memref<1x128xf32, #tpu.memory_space<vmem>>, %arg23: memref<128x128xf32, #tpu.memory_space<vmem>>, %arg24: memref<1x128xf32, #tpu.memory_space<vmem>>, %arg25: memref<16x128xf32, #tpu.memory_space<vmem>>, %arg26: memref<16x256xf32, #tpu.memory_space<vmem>>) attributes {dimension_semantics = [], scalar_prefetch = 0 : i64, scratch_operands = 1 : i64, tpu.core_type = #tpu.core_type<tc>} {
    %c0 = arith.constant 0 : index
    %c0_0 = arith.constant 0 : index
    %0 = vector.load %arg0[%c0, %c0_0] : memref<16x128xf32, #tpu.memory_space<vmem>>, vector<16x128xf32>
    %c0_1 = arith.constant 0 : index
    %c0_2 = arith.constant 0 : index
    %1 = vector.load %arg1[%c0_1, %c0_2] : memref<128x256xf32, #tpu.memory_space<vmem>>, vector<128x256xf32>
    %cst = arith.constant dense<0.000000e+00> : vector<16x256xf32>
    %2 = tpu.matmul %0, %1, %cst {dimension_numbers = #tpu.dot_dimension_numbers<[1], [0], [0], [1], [0, 0, 1, 1], [], []>} : vector<16x128xf32>, vector<128x256xf32>, vector<16x256xf32> -> vector<16x256xf32>
    %c0_3 = arith.constant 0 : index
    %c0_4 = arith.constant 0 : index
    %3 = vector.load %arg4[%c0_3, %c0_4] : memref<1x256xf32, #tpu.memory_space<vmem>>, vector<1x256xf32>
    %4 = vector.broadcast %3 : vector<1x256xf32> to vector<16x256xf32>
    %5 = arith.addf %2, %4 : vector<16x256xf32>
    %c0_5 = arith.constant 0 : index
    %c0_6 = arith.constant 0 : index
    %6 = vector.load %arg26[%c0_5, %c0_6] : memref<16x256xf32, #tpu.memory_space<vmem>>, vector<16x256xf32>
    tpu.vector_store %arg26[%c0_5, %c0_6], %5 {strides = array<i32>} : memref<16x256xf32, #tpu.memory_space<vmem>>, vector<16x256xf32>,
    %c0_7 = arith.constant 0 : index
    %c0_8 = arith.constant 0 : index
    %7 = vector.load %arg5[%c0_7, %c0_8] : memref<128x128xf32, #tpu.memory_space<vmem>>, vector<128x128xf32>
    %cst_9 = arith.constant dense<0.000000e+00> : vector<16x128xf32>
    %8 = tpu.matmul %0, %7, %cst_9 {dimension_numbers = #tpu.dot_dimension_numbers<[1], [0], [0], [1], [0, 0, 1, 1], [], []>} : vector<16x128xf32>, vector<128x128xf32>, vector<16x128xf32> -> vector<16x128xf32>
    %c0_10 = arith.constant 0 : index
    %c0_11 = arith.constant 0 : index
    %9 = vector.load %arg6[%c0_10, %c0_11] : memref<1x128xf32, #tpu.memory_space<vmem>>, vector<1x128xf32>
    %10 = vector.broadcast %9 : vector<1x128xf32> to vector<16x128xf32>
    %11 = arith.addf %8, %10 : vector<16x128xf32>
    %12 = vector.extract_strided_slice %11 {offsets = [0, 0], sizes = [16, 64], strides = [1, 1]} : vector<16x128xf32> to vector<16x64xf32>
    %13 = arith.negf %12 : vector<16x64xf32>
    %14 = math.exp %13 : vector<16x64xf32>
    %cst_12 = arith.constant 1.000000e+00 : f32
    %15 = vector.broadcast %cst_12 : f32 to vector<16x64xf32>
    %16 = arith.addf %15, %14 : vector<16x64xf32>
    %17 = arith.divf %15, %16 : vector<16x64xf32>
    %18 = vector.extract_strided_slice %11 {offsets = [0, 64], sizes = [16, 64], strides = [1, 1]} : vector<16x128xf32> to vector<16x64xf32>
    %19 = math.tanh %18 : vector<16x64xf32>
    %20 = arith.mulf %17, %19 : vector<16x64xf32>
    %c0_13 = arith.constant 0 : index
    %c0_14 = arith.constant 0 : index
    %21 = vector.load %arg2[%c0_13, %c0_14] : memref<32x128xf32, #tpu.memory_space<vmem>>, vector<32x128xf32>
    %cst_15 = arith.constant 0.000000e+00 : f32
    %22 = vector.broadcast %cst_15 : f32 to vector<2x32xf32>
    %cst_16 = arith.constant 0.000000e+00 : f32
    %23 = vector.broadcast %cst_16 : f32 to vector<2x32xf32>
    %c0_17 = arith.constant 0 : index
    %c0_18 = arith.constant 0 : index
    %24 = vector.load %arg26[%c0_17, %c0_18] : memref<16x256xf32, #tpu.memory_space<vmem>>, vector<2x128xf32>
    %cst_19 = arith.constant dense<0.000000e+00> : vector<2x128xf32>
    %25 = tpu.matmul %22, %21, %cst_19 {dimension_numbers = #tpu.dot_dimension_numbers<[1], [0], [0], [1], [0, 0, 1, 1], [], []>} : vector<2x32xf32>, vector<32x128xf32>, vector<2x128xf32> -> vector<2x128xf32>
    %26 = arith.addf %24, %25 : vector<2x128xf32>
    %27 = arith.negf %26 : vector<2x128xf32>
    %28 = math.exp %27 : vector<2x128xf32>
    %cst_20 = arith.constant 1.000000e+00 : f32
    %29 = vector.broadcast %cst_20 : f32 to vector<2x128xf32>
    %30 = arith.addf %29, %28 : vector<2x128xf32>
    %31 = arith.divf %29, %30 : vector<2x128xf32>
    %32 = vector.extract_strided_slice %26 {offsets = [0, 64], sizes = [2, 32], strides = [1, 1]} : vector<2x128xf32> to vector<2x32xf32>
    %33 = math.tanh %32 : vector<2x32xf32>
    %34 = vector.extract_strided_slice %31 {offsets = [0, 32], sizes = [2, 32], strides = [1, 1]} : vector<2x128xf32> to vector<2x32xf32>
    %35 = arith.mulf %34, %23 : vector<2x32xf32>
    %36 = vector.extract_strided_slice %31 {offsets = [0, 0], sizes = [2, 32], strides = [1, 1]} : vector<2x128xf32> to vector<2x32xf32>
    %37 = arith.mulf %36, %33 : vector<2x32xf32>
    %38 = arith.addf %35, %37 : vector<2x32xf32>
    %39 = vector.extract_strided_slice %31 {offsets = [0, 96], sizes = [2, 32], strides = [1, 1]} : vector<2x128xf32> to vector<2x32xf32>
    %40 = math.tanh %38 : vector<2x32xf32>
    %41 = arith.mulf %39, %40 : vector<2x32xf32>
    %c2 = arith.constant 2 : index
    %c0_21 = arith.constant 0 : index
    %42 = vector.load %arg26[%c2, %c0_21] : memref<16x256xf32, #tpu.memory_space<vmem>>, vector<2x128xf32>
    %cst_22 = arith.constant dense<0.000000e+00> : vector<2x128xf32>
    %43 = tpu.matmul %41, %21, %cst_22 {dimension_numbers = #tpu.dot_dimension_numbers<[1], [0], [0], [1], [0, 0, 1, 1], [], []>} : vector<2x32xf32>, vector<32x128xf32>, vector<2x128xf32> -> vector<2x128xf32>
    %44 = arith.addf %42, %43 : vector<2x128xf32>
    %45 = arith.negf %44 : vector<2x128xf32>
    %46 = math.exp %45 : vector<2x128xf32>
    %cst_23 = arith.constant 1.000000e+00 : f32
    %47 = vector.broadcast %cst_23 : f32 to vector<2x128xf32>
    %48 = arith.addf %47, %46 : vector<2x128xf32>
    %49 = arith.divf %47, %48 : vector<2x128xf32>
    %50 = vector.extract_strided_slice %44 {offsets = [0, 64], sizes = [2, 32], strides = [1, 1]} : vector<2x128xf32> to vector<2x32xf32>
    %51 = math.tanh %50 : vector<2x32xf32>
    %52 = vector.extract_strided_slice %49 {offsets = [0, 32], sizes = [2, 32], strides = [1, 1]} : vector<2x128xf32> to vector<2x32xf32>
    %53 = arith.mulf %52, %38 : vector<2x32xf32>
    %54 = vector.extract_strided_slice %49 {offsets = [0, 0], sizes = [2, 32], strides = [1, 1]} : vector<2x128xf32> to vector<2x32xf32>
    %55 = arith.mulf %54, %51 : vector<2x32xf32>
    %56 = arith.addf %53, %55 : vector<2x32xf32>
    %57 = vector.extract_strided_slice %49 {offsets = [0, 96], sizes = [2, 32], strides = [1, 1]} : vector<2x128xf32> to vector<2x32xf32>
    %58 = math.tanh %56 : vector<2x32xf32>
    %59 = arith.mulf %57, %58 : vector<2x32xf32>
    %c4 = arith.constant 4 : index
    %c0_24 = arith.constant 0 : index
    %60 = vector.load %arg26[%c4, %c0_24] : memref<16x256xf32, #tpu.memory_space<vmem>>, vector<2x128xf32>
    %cst_25 = arith.constant dense<0.000000e+00> : vector<2x128xf32>
    %61 = tpu.matmul %59, %21, %cst_25 {dimension_numbers = #tpu.dot_dimension_numbers<[1], [0], [0], [1], [0, 0, 1, 1], [], []>} : vector<2x32xf32>, vector<32x128xf32>, vector<2x128xf32> -> vector<2x128xf32>
    %62 = arith.addf %60, %61 : vector<2x128xf32>
    %63 = arith.negf %62 : vector<2x128xf32>
    %64 = math.exp %63 : vector<2x128xf32>
    %cst_26 = arith.constant 1.000000e+00 : f32
    %65 = vector.broadcast %cst_26 : f32 to vector<2x128xf32>
    %66 = arith.addf %65, %64 : vector<2x128xf32>
    %67 = arith.divf %65, %66 : vector<2x128xf32>
    %68 = vector.extract_strided_slice %62 {offsets = [0, 64], sizes = [2, 32], strides = [1, 1]} : vector<2x128xf32> to vector<2x32xf32>
    %69 = math.tanh %68 : vector<2x32xf32>
    %70 = vector.extract_strided_slice %67 {offsets = [0, 32], sizes = [2, 32], strides = [1, 1]} : vector<2x128xf32> to vector<2x32xf32>
    %71 = arith.mulf %70, %56 : vector<2x32xf32>
    %72 = vector.extract_strided_slice %67 {offsets = [0, 0], sizes = [2, 32], strides = [1, 1]} : vector<2x128xf32> to vector<2x32xf32>
    %73 = arith.mulf %72, %69 : vector<2x32xf32>
    %74 = arith.addf %71, %73 : vector<2x32xf32>
    %75 = vector.extract_strided_slice %67 {offsets = [0, 96], sizes = [2, 32], strides = [1, 1]} : vector<2x128xf32> to vector<2x32xf32>
    %76 = math.tanh %74 : vector<2x32xf32>
    %77 = arith.mulf %75, %76 : vector<2x32xf32>
    %c6 = arith.constant 6 : index
    %c0_27 = arith.constant 0 : index
    %78 = vector.load %arg26[%c6, %c0_27] : memref<16x256xf32, #tpu.memory_space<vmem>>, vector<2x128xf32>
    %cst_28 = arith.constant dense<0.000000e+00> : vector<2x128xf32>
    %79 = tpu.matmul %77, %21, %cst_28 {dimension_numbers = #tpu.dot_dimension_numbers<[1], [0], [0], [1], [0, 0, 1, 1], [], []>} : vector<2x32xf32>, vector<32x128xf32>, vector<2x128xf32> -> vector<2x128xf32>
    %80 = arith.addf %78, %79 : vector<2x128xf32>
    %81 = arith.negf %80 : vector<2x128xf32>
    %82 = math.exp %81 : vector<2x128xf32>
    %cst_29 = arith.constant 1.000000e+00 : f32
    %83 = vector.broadcast %cst_29 : f32 to vector<2x128xf32>
    %84 = arith.addf %83, %82 : vector<2x128xf32>
    %85 = arith.divf %83, %84 : vector<2x128xf32>
    %86 = vector.extract_strided_slice %80 {offsets = [0, 64], sizes = [2, 32], strides = [1, 1]} : vector<2x128xf32> to vector<2x32xf32>
    %87 = math.tanh %86 : vector<2x32xf32>
    %88 = vector.extract_strided_slice %85 {offsets = [0, 32], sizes = [2, 32], strides = [1, 1]} : vector<2x128xf32> to vector<2x32xf32>
    %89 = arith.mulf %88, %74 : vector<2x32xf32>
    %90 = vector.extract_strided_slice %85 {offsets = [0, 0], sizes = [2, 32], strides = [1, 1]} : vector<2x128xf32> to vector<2x32xf32>
    %91 = arith.mulf %90, %87 : vector<2x32xf32>
    %92 = arith.addf %89, %91 : vector<2x32xf32>
    %93 = vector.extract_strided_slice %85 {offsets = [0, 96], sizes = [2, 32], strides = [1, 1]} : vector<2x128xf32> to vector<2x32xf32>
    %94 = math.tanh %92 : vector<2x32xf32>
    %95 = arith.mulf %93, %94 : vector<2x32xf32>
    %c8 = arith.constant 8 : index
    %c0_30 = arith.constant 0 : index
    %96 = vector.load %arg26[%c8, %c0_30] : memref<16x256xf32, #tpu.memory_space<vmem>>, vector<2x128xf32>
    %cst_31 = arith.constant dense<0.000000e+00> : vector<2x128xf32>
    %97 = tpu.matmul %95, %21, %cst_31 {dimension_numbers = #tpu.dot_dimension_numbers<[1], [0], [0], [1], [0, 0, 1, 1], [], []>} : vector<2x32xf32>, vector<32x128xf32>, vector<2x128xf32> -> vector<2x128xf32>
    %98 = arith.addf %96, %97 : vector<2x128xf32>
    %99 = arith.negf %98 : vector<2x128xf32>
    %100 = math.exp %99 : vector<2x128xf32>
    %cst_32 = arith.constant 1.000000e+00 : f32
    %101 = vector.broadcast %cst_32 : f32 to vector<2x128xf32>
    %102 = arith.addf %101, %100 : vector<2x128xf32>
    %103 = arith.divf %101, %102 : vector<2x128xf32>
    %104 = vector.extract_strided_slice %98 {offsets = [0, 64], sizes = [2, 32], strides = [1, 1]} : vector<2x128xf32> to vector<2x32xf32>
    %105 = math.tanh %104 : vector<2x32xf32>
    %106 = vector.extract_strided_slice %103 {offsets = [0, 32], sizes = [2, 32], strides = [1, 1]} : vector<2x128xf32> to vector<2x32xf32>
    %107 = arith.mulf %106, %92 : vector<2x32xf32>
    %108 = vector.extract_strided_slice %103 {offsets = [0, 0], sizes = [2, 32], strides = [1, 1]} : vector<2x128xf32> to vector<2x32xf32>
    %109 = arith.mulf %108, %105 : vector<2x32xf32>
    %110 = arith.addf %107, %109 : vector<2x32xf32>
    %111 = vector.extract_strided_slice %103 {offsets = [0, 96], sizes = [2, 32], strides = [1, 1]} : vector<2x128xf32> to vector<2x32xf32>
    %112 = math.tanh %110 : vector<2x32xf32>
    %113 = arith.mulf %111, %112 : vector<2x32xf32>
    %c10 = arith.constant 10 : index
    %c0_33 = arith.constant 0 : index
    %114 = vector.load %arg26[%c10, %c0_33] : memref<16x256xf32, #tpu.memory_space<vmem>>, vector<2x128xf32>
    %cst_34 = arith.constant dense<0.000000e+00> : vector<2x128xf32>
    %115 = tpu.matmul %113, %21, %cst_34 {dimension_numbers = #tpu.dot_dimension_numbers<[1], [0], [0], [1], [0, 0, 1, 1], [], []>} : vector<2x32xf32>, vector<32x128xf32>, vector<2x128xf32> -> vector<2x128xf32>
    %116 = arith.addf %114, %115 : vector<2x128xf32>
    %117 = arith.negf %116 : vector<2x128xf32>
    %118 = math.exp %117 : vector<2x128xf32>
    %cst_35 = arith.constant 1.000000e+00 : f32
    %119 = vector.broadcast %cst_35 : f32 to vector<2x128xf32>
    %120 = arith.addf %119, %118 : vector<2x128xf32>
    %121 = arith.divf %119, %120 : vector<2x128xf32>
    %122 = vector.extract_strided_slice %116 {offsets = [0, 64], sizes = [2, 32], strides = [1, 1]} : vector<2x128xf32> to vector<2x32xf32>
    %123 = math.tanh %122 : vector<2x32xf32>
    %124 = vector.extract_strided_slice %121 {offsets = [0, 32], sizes = [2, 32], strides = [1, 1]} : vector<2x128xf32> to vector<2x32xf32>
    %125 = arith.mulf %124, %110 : vector<2x32xf32>
    %126 = vector.extract_strided_slice %121 {offsets = [0, 0], sizes = [2, 32], strides = [1, 1]} : vector<2x128xf32> to vector<2x32xf32>
    %127 = arith.mulf %126, %123 : vector<2x32xf32>
    %128 = arith.addf %125, %127 : vector<2x32xf32>
    %129 = vector.extract_strided_slice %121 {offsets = [0, 96], sizes = [2, 32], strides = [1, 1]} : vector<2x128xf32> to vector<2x32xf32>
    %130 = math.tanh %128 : vector<2x32xf32>
    %131 = arith.mulf %129, %130 : vector<2x32xf32>
    %c12 = arith.constant 12 : index
    %c0_36 = arith.constant 0 : index
    %132 = vector.load %arg26[%c12, %c0_36] : memref<16x256xf32, #tpu.memory_space<vmem>>, vector<2x128xf32>
    %cst_37 = arith.constant dense<0.000000e+00> : vector<2x128xf32>
    %133 = tpu.matmul %131, %21, %cst_37 {dimension_numbers = #tpu.dot_dimension_numbers<[1], [0], [0], [1], [0, 0, 1, 1], [], []>} : vector<2x32xf32>, vector<32x128xf32>, vector<2x128xf32> -> vector<2x128xf32>
    %134 = arith.addf %132, %133 : vector<2x128xf32>
    %135 = arith.negf %134 : vector<2x128xf32>
    %136 = math.exp %135 : vector<2x128xf32>
    %cst_38 = arith.constant 1.000000e+00 : f32
    %137 = vector.broadcast %cst_38 : f32 to vector<2x128xf32>
    %138 = arith.addf %137, %136 : vector<2x128xf32>
    %139 = arith.divf %137, %138 : vector<2x128xf32>
    %140 = vector.extract_strided_slice %134 {offsets = [0, 64], sizes = [2, 32], strides = [1, 1]} : vector<2x128xf32> to vector<2x32xf32>
    %141 = math.tanh %140 : vector<2x32xf32>
    %142 = vector.extract_strided_slice %139 {offsets = [0, 32], sizes = [2, 32], strides = [1, 1]} : vector<2x128xf32> to vector<2x32xf32>
    %143 = arith.mulf %142, %128 : vector<2x32xf32>
    %144 = vector.extract_strided_slice %139 {offsets = [0, 0], sizes = [2, 32], strides = [1, 1]} : vector<2x128xf32> to vector<2x32xf32>
    %145 = arith.mulf %144, %141 : vector<2x32xf32>
    %146 = arith.addf %143, %145 : vector<2x32xf32>
    %147 = vector.extract_strided_slice %139 {offsets = [0, 96], sizes = [2, 32], strides = [1, 1]} : vector<2x128xf32> to vector<2x32xf32>
    %148 = math.tanh %146 : vector<2x32xf32>
    %149 = arith.mulf %147, %148 : vector<2x32xf32>
    %c14 = arith.constant 14 : index
    %c0_39 = arith.constant 0 : index
    %150 = vector.load %arg26[%c14, %c0_39] : memref<16x256xf32, #tpu.memory_space<vmem>>, vector<2x128xf32>
    %cst_40 = arith.constant dense<0.000000e+00> : vector<2x128xf32>
    %151 = tpu.matmul %149, %21, %cst_40 {dimension_numbers = #tpu.dot_dimension_numbers<[1], [0], [0], [1], [0, 0, 1, 1], [], []>} : vector<2x32xf32>, vector<32x128xf32>, vector<2x128xf32> -> vector<2x128xf32>
    %152 = arith.addf %150, %151 : vector<2x128xf32>
    %153 = arith.negf %152 : vector<2x128xf32>
    %154 = math.exp %153 : vector<2x128xf32>
    %cst_41 = arith.constant 1.000000e+00 : f32
    %155 = vector.broadcast %cst_41 : f32 to vector<2x128xf32>
    %156 = arith.addf %155, %154 : vector<2x128xf32>
    %157 = arith.divf %155, %156 : vector<2x128xf32>
    %158 = vector.extract_strided_slice %152 {offsets = [0, 64], sizes = [2, 32], strides = [1, 1]} : vector<2x128xf32> to vector<2x32xf32>
    %159 = math.tanh %158 : vector<2x32xf32>
    %160 = vector.extract_strided_slice %157 {offsets = [0, 32], sizes = [2, 32], strides = [1, 1]} : vector<2x128xf32> to vector<2x32xf32>
    %161 = arith.mulf %160, %146 : vector<2x32xf32>
    %162 = vector.extract_strided_slice %157 {offsets = [0, 0], sizes = [2, 32], strides = [1, 1]} : vector<2x128xf32> to vector<2x32xf32>
    %163 = arith.mulf %162, %159 : vector<2x32xf32>
    %164 = arith.addf %161, %163 : vector<2x32xf32>
    %165 = vector.extract_strided_slice %157 {offsets = [0, 96], sizes = [2, 32], strides = [1, 1]} : vector<2x128xf32> to vector<2x32xf32>
    %166 = math.tanh %164 : vector<2x32xf32>
    %167 = arith.mulf %165, %166 : vector<2x32xf32>
    %168 = tpu.concatenate %41, %59, %77, %95, %113, %131, %149, %167 in 0 : vector<2x32xf32>, vector<2x32xf32>, vector<2x32xf32>, vector<2x32xf32>, vector<2x32xf32>, vector<2x32xf32>, vector<2x32xf32>, vector<2x32xf32> -> vector<16x32xf32>
    %c0_42 = arith.constant 0 : index
    %c0_43 = arith.constant 0 : index
    %169 = vector.load %arg3[%c0_42, %c0_43] : memref<32x128xf32, #tpu.memory_space<vmem>>, vector<32x128xf32>
    %cst_44 = arith.constant 0.000000e+00 : f32
    %170 = vector.broadcast %cst_44 : f32 to vector<2x32xf32>
    %cst_45 = arith.constant 0.000000e+00 : f32
    %171 = vector.broadcast %cst_45 : f32 to vector<2x32xf32>
    %c14_46 = arith.constant 14 : index
    %c128 = arith.constant 128 : index
    %172 = vector.load %arg26[%c14_46, %c128] : memref<16x256xf32, #tpu.memory_space<vmem>>, vector<2x128xf32>
    %cst_47 = arith.constant dense<0.000000e+00> : vector<2x128xf32>
    %173 = tpu.matmul %170, %169, %cst_47 {dimension_numbers = #tpu.dot_dimension_numbers<[1], [0], [0], [1], [0, 0, 1, 1], [], []>} : vector<2x32xf32>, vector<32x128xf32>, vector<2x128xf32> -> vector<2x128xf32>
    %174 = arith.addf %172, %173 : vector<2x128xf32>
    %175 = arith.negf %174 : vector<2x128xf32>
    %176 = math.exp %175 : vector<2x128xf32>
    %cst_48 = arith.constant 1.000000e+00 : f32
    %177 = vector.broadcast %cst_48 : f32 to vector<2x128xf32>
    %178 = arith.addf %177, %176 : vector<2x128xf32>
    %179 = arith.divf %177, %178 : vector<2x128xf32>
    %180 = vector.extract_strided_slice %174 {offsets = [0, 64], sizes = [2, 32], strides = [1, 1]} : vector<2x128xf32> to vector<2x32xf32>
    %181 = math.tanh %180 : vector<2x32xf32>
    %182 = vector.extract_strided_slice %179 {offsets = [0, 32], sizes = [2, 32], strides = [1, 1]} : vector<2x128xf32> to vector<2x32xf32>
    %183 = arith.mulf %182, %171 : vector<2x32xf32>
    %184 = vector.extract_strided_slice %179 {offsets = [0, 0], sizes = [2, 32], strides = [1, 1]} : vector<2x128xf32> to vector<2x32xf32>
    %185 = arith.mulf %184, %181 : vector<2x32xf32>
    %186 = arith.addf %183, %185 : vector<2x32xf32>
    %187 = vector.extract_strided_slice %179 {offsets = [0, 96], sizes = [2, 32], strides = [1, 1]} : vector<2x128xf32> to vector<2x32xf32>
    %188 = math.tanh %186 : vector<2x32xf32>
    %189 = arith.mulf %187, %188 : vector<2x32xf32>
    %c12_49 = arith.constant 12 : index
    %c128_50 = arith.constant 128 : index
    %190 = vector.load %arg26[%c12_49, %c128_50] : memref<16x256xf32, #tpu.memory_space<vmem>>, vector<2x128xf32>
    %cst_51 = arith.constant dense<0.000000e+00> : vector<2x128xf32>
    %191 = tpu.matmul %189, %169, %cst_51 {dimension_numbers = #tpu.dot_dimension_numbers<[1], [0], [0], [1], [0, 0, 1, 1], [], []>} : vector<2x32xf32>, vector<32x128xf32>, vector<2x128xf32> -> vector<2x128xf32>
    %192 = arith.addf %190, %191 : vector<2x128xf32>
    %193 = arith.negf %192 : vector<2x128xf32>
    %194 = math.exp %193 : vector<2x128xf32>
    %cst_52 = arith.constant 1.000000e+00 : f32
    %195 = vector.broadcast %cst_52 : f32 to vector<2x128xf32>
    %196 = arith.addf %195, %194 : vector<2x128xf32>
    %197 = arith.divf %195, %196 : vector<2x128xf32>
    %198 = vector.extract_strided_slice %192 {offsets = [0, 64], sizes = [2, 32], strides = [1, 1]} : vector<2x128xf32> to vector<2x32xf32>
    %199 = math.tanh %198 : vector<2x32xf32>
    %200 = vector.extract_strided_slice %197 {offsets = [0, 32], sizes = [2, 32], strides = [1, 1]} : vector<2x128xf32> to vector<2x32xf32>
    %201 = arith.mulf %200, %186 : vector<2x32xf32>
    %202 = vector.extract_strided_slice %197 {offsets = [0, 0], sizes = [2, 32], strides = [1, 1]} : vector<2x128xf32> to vector<2x32xf32>
    %203 = arith.mulf %202, %199 : vector<2x32xf32>
    %204 = arith.addf %201, %203 : vector<2x32xf32>
    %205 = vector.extract_strided_slice %197 {offsets = [0, 96], sizes = [2, 32], strides = [1, 1]} : vector<2x128xf32> to vector<2x32xf32>
    %206 = math.tanh %204 : vector<2x32xf32>
    %207 = arith.mulf %205, %206 : vector<2x32xf32>
    %c10_53 = arith.constant 10 : index
    %c128_54 = arith.constant 128 : index
    %208 = vector.load %arg26[%c10_53, %c128_54] : memref<16x256xf32, #tpu.memory_space<vmem>>, vector<2x128xf32>
    %cst_55 = arith.constant dense<0.000000e+00> : vector<2x128xf32>
    %209 = tpu.matmul %207, %169, %cst_55 {dimension_numbers = #tpu.dot_dimension_numbers<[1], [0], [0], [1], [0, 0, 1, 1], [], []>} : vector<2x32xf32>, vector<32x128xf32>, vector<2x128xf32> -> vector<2x128xf32>
    %210 = arith.addf %208, %209 : vector<2x128xf32>
    %211 = arith.negf %210 : vector<2x128xf32>
    %212 = math.exp %211 : vector<2x128xf32>
    %cst_56 = arith.constant 1.000000e+00 : f32
    %213 = vector.broadcast %cst_56 : f32 to vector<2x128xf32>
    %214 = arith.addf %213, %212 : vector<2x128xf32>
    %215 = arith.divf %213, %214 : vector<2x128xf32>
    %216 = vector.extract_strided_slice %210 {offsets = [0, 64], sizes = [2, 32], strides = [1, 1]} : vector<2x128xf32> to vector<2x32xf32>
    %217 = math.tanh %216 : vector<2x32xf32>
    %218 = vector.extract_strided_slice %215 {offsets = [0, 32], sizes = [2, 32], strides = [1, 1]} : vector<2x128xf32> to vector<2x32xf32>
    %219 = arith.mulf %218, %204 : vector<2x32xf32>
    %220 = vector.extract_strided_slice %215 {offsets = [0, 0], sizes = [2, 32], strides = [1, 1]} : vector<2x128xf32> to vector<2x32xf32>
    %221 = arith.mulf %220, %217 : vector<2x32xf32>
    %222 = arith.addf %219, %221 : vector<2x32xf32>
    %223 = vector.extract_strided_slice %215 {offsets = [0, 96], sizes = [2, 32], strides = [1, 1]} : vector<2x128xf32> to vector<2x32xf32>
    %224 = math.tanh %222 : vector<2x32xf32>
    %225 = arith.mulf %223, %224 : vector<2x32xf32>
    %c8_57 = arith.constant 8 : index
    %c128_58 = arith.constant 128 : index
    %226 = vector.load %arg26[%c8_57, %c128_58] : memref<16x256xf32, #tpu.memory_space<vmem>>, vector<2x128xf32>
    %cst_59 = arith.constant dense<0.000000e+00> : vector<2x128xf32>
    %227 = tpu.matmul %225, %169, %cst_59 {dimension_numbers = #tpu.dot_dimension_numbers<[1], [0], [0], [1], [0, 0, 1, 1], [], []>} : vector<2x32xf32>, vector<32x128xf32>, vector<2x128xf32> -> vector<2x128xf32>
    %228 = arith.addf %226, %227 : vector<2x128xf32>
    %229 = arith.negf %228 : vector<2x128xf32>
    %230 = math.exp %229 : vector<2x128xf32>
    %cst_60 = arith.constant 1.000000e+00 : f32
    %231 = vector.broadcast %cst_60 : f32 to vector<2x128xf32>
    %232 = arith.addf %231, %230 : vector<2x128xf32>
    %233 = arith.divf %231, %232 : vector<2x128xf32>
    %234 = vector.extract_strided_slice %228 {offsets = [0, 64], sizes = [2, 32], strides = [1, 1]} : vector<2x128xf32> to vector<2x32xf32>
    %235 = math.tanh %234 : vector<2x32xf32>
    %236 = vector.extract_strided_slice %233 {offsets = [0, 32], sizes = [2, 32], strides = [1, 1]} : vector<2x128xf32> to vector<2x32xf32>
    %237 = arith.mulf %236, %222 : vector<2x32xf32>
    %238 = vector.extract_strided_slice %233 {offsets = [0, 0], sizes = [2, 32], strides = [1, 1]} : vector<2x128xf32> to vector<2x32xf32>
    %239 = arith.mulf %238, %235 : vector<2x32xf32>
    %240 = arith.addf %237, %239 : vector<2x32xf32>
    %241 = vector.extract_strided_slice %233 {offsets = [0, 96], sizes = [2, 32], strides = [1, 1]} : vector<2x128xf32> to vector<2x32xf32>
    %242 = math.tanh %240 : vector<2x32xf32>
    %243 = arith.mulf %241, %242 : vector<2x32xf32>
    %c6_61 = arith.constant 6 : index
    %c128_62 = arith.constant 128 : index
    %244 = vector.load %arg26[%c6_61, %c128_62] : memref<16x256xf32, #tpu.memory_space<vmem>>, vector<2x128xf32>
    %cst_63 = arith.constant dense<0.000000e+00> : vector<2x128xf32>
    %245 = tpu.matmul %243, %169, %cst_63 {dimension_numbers = #tpu.dot_dimension_numbers<[1], [0], [0], [1], [0, 0, 1, 1], [], []>} : vector<2x32xf32>, vector<32x128xf32>, vector<2x128xf32> -> vector<2x128xf32>
    %246 = arith.addf %244, %245 : vector<2x128xf32>
    %247 = arith.negf %246 : vector<2x128xf32>
    %248 = math.exp %247 : vector<2x128xf32>
    %cst_64 = arith.constant 1.000000e+00 : f32
    %249 = vector.broadcast %cst_64 : f32 to vector<2x128xf32>
    %250 = arith.addf %249, %248 : vector<2x128xf32>
    %251 = arith.divf %249, %250 : vector<2x128xf32>
    %252 = vector.extract_strided_slice %246 {offsets = [0, 64], sizes = [2, 32], strides = [1, 1]} : vector<2x128xf32> to vector<2x32xf32>
    %253 = math.tanh %252 : vector<2x32xf32>
    %254 = vector.extract_strided_slice %251 {offsets = [0, 32], sizes = [2, 32], strides = [1, 1]} : vector<2x128xf32> to vector<2x32xf32>
    %255 = arith.mulf %254, %240 : vector<2x32xf32>
    %256 = vector.extract_strided_slice %251 {offsets = [0, 0], sizes = [2, 32], strides = [1, 1]} : vector<2x128xf32> to vector<2x32xf32>
    %257 = arith.mulf %256, %253 : vector<2x32xf32>
    %258 = arith.addf %255, %257 : vector<2x32xf32>
    %259 = vector.extract_strided_slice %251 {offsets = [0, 96], sizes = [2, 32], strides = [1, 1]} : vector<2x128xf32> to vector<2x32xf32>
    %260 = math.tanh %258 : vector<2x32xf32>
    %261 = arith.mulf %259, %260 : vector<2x32xf32>
    %c4_65 = arith.constant 4 : index
    %c128_66 = arith.constant 128 : index
    %262 = vector.load %arg26[%c4_65, %c128_66] : memref<16x256xf32, #tpu.memory_space<vmem>>, vector<2x128xf32>
    %cst_67 = arith.constant dense<0.000000e+00> : vector<2x128xf32>
    %263 = tpu.matmul %261, %169, %cst_67 {dimension_numbers = #tpu.dot_dimension_numbers<[1], [0], [0], [1], [0, 0, 1, 1], [], []>} : vector<2x32xf32>, vector<32x128xf32>, vector<2x128xf32> -> vector<2x128xf32>
    %264 = arith.addf %262, %263 : vector<2x128xf32>
    %265 = arith.negf %264 : vector<2x128xf32>
    %266 = math.exp %265 : vector<2x128xf32>
    %cst_68 = arith.constant 1.000000e+00 : f32
    %267 = vector.broadcast %cst_68 : f32 to vector<2x128xf32>
    %268 = arith.addf %267, %266 : vector<2x128xf32>
    %269 = arith.divf %267, %268 : vector<2x128xf32>
    %270 = vector.extract_strided_slice %264 {offsets = [0, 64], sizes = [2, 32], strides = [1, 1]} : vector<2x128xf32> to vector<2x32xf32>
    %271 = math.tanh %270 : vector<2x32xf32>
    %272 = vector.extract_strided_slice %269 {offsets = [0, 32], sizes = [2, 32], strides = [1, 1]} : vector<2x128xf32> to vector<2x32xf32>
    %273 = arith.mulf %272, %258 : vector<2x32xf32>
    %274 = vector.extract_strided_slice %269 {offsets = [0, 0], sizes = [2, 32], strides = [1, 1]} : vector<2x128xf32> to vector<2x32xf32>
    %275 = arith.mulf %274, %271 : vector<2x32xf32>
    %276 = arith.addf %273, %275 : vector<2x32xf32>
    %277 = vector.extract_strided_slice %269 {offsets = [0, 96], sizes = [2, 32], strides = [1, 1]} : vector<2x128xf32> to vector<2x32xf32>
    %278 = math.tanh %276 : vector<2x32xf32>
    %279 = arith.mulf %277, %278 : vector<2x32xf32>
    %c2_69 = arith.constant 2 : index
    %c128_70 = arith.constant 128 : index
    %280 = vector.load %arg26[%c2_69, %c128_70] : memref<16x256xf32, #tpu.memory_space<vmem>>, vector<2x128xf32>
    %cst_71 = arith.constant dense<0.000000e+00> : vector<2x128xf32>
    %281 = tpu.matmul %279, %169, %cst_71 {dimension_numbers = #tpu.dot_dimension_numbers<[1], [0], [0], [1], [0, 0, 1, 1], [], []>} : vector<2x32xf32>, vector<32x128xf32>, vector<2x128xf32> -> vector<2x128xf32>
    %282 = arith.addf %280, %281 : vector<2x128xf32>
    %283 = arith.negf %282 : vector<2x128xf32>
    %284 = math.exp %283 : vector<2x128xf32>
    %cst_72 = arith.constant 1.000000e+00 : f32
    %285 = vector.broadcast %cst_72 : f32 to vector<2x128xf32>
    %286 = arith.addf %285, %284 : vector<2x128xf32>
    %287 = arith.divf %285, %286 : vector<2x128xf32>
    %288 = vector.extract_strided_slice %282 {offsets = [0, 64], sizes = [2, 32], strides = [1, 1]} : vector<2x128xf32> to vector<2x32xf32>
    %289 = math.tanh %288 : vector<2x32xf32>
    %290 = vector.extract_strided_slice %287 {offsets = [0, 32], sizes = [2, 32], strides = [1, 1]} : vector<2x128xf32> to vector<2x32xf32>
    %291 = arith.mulf %290, %276 : vector<2x32xf32>
    %292 = vector.extract_strided_slice %287 {offsets = [0, 0], sizes = [2, 32], strides = [1, 1]} : vector<2x128xf32> to vector<2x32xf32>
    %293 = arith.mulf %292, %289 : vector<2x32xf32>
    %294 = arith.addf %291, %293 : vector<2x32xf32>
    %295 = vector.extract_strided_slice %287 {offsets = [0, 96], sizes = [2, 32], strides = [1, 1]} : vector<2x128xf32> to vector<2x32xf32>
    %296 = math.tanh %294 : vector<2x32xf32>
    %297 = arith.mulf %295, %296 : vector<2x32xf32>
    %c0_73 = arith.constant 0 : index
    %c128_74 = arith.constant 128 : index
    %298 = vector.load %arg26[%c0_73, %c128_74] : memref<16x256xf32, #tpu.memory_space<vmem>>, vector<2x128xf32>
    %cst_75 = arith.constant dense<0.000000e+00> : vector<2x128xf32>
    %299 = tpu.matmul %297, %169, %cst_75 {dimension_numbers = #tpu.dot_dimension_numbers<[1], [0], [0], [1], [0, 0, 1, 1], [], []>} : vector<2x32xf32>, vector<32x128xf32>, vector<2x128xf32> -> vector<2x128xf32>
    %300 = arith.addf %298, %299 : vector<2x128xf32>
    %301 = arith.negf %300 : vector<2x128xf32>
    %302 = math.exp %301 : vector<2x128xf32>
    %cst_76 = arith.constant 1.000000e+00 : f32
    %303 = vector.broadcast %cst_76 : f32 to vector<2x128xf32>
    %304 = arith.addf %303, %302 : vector<2x128xf32>
    %305 = arith.divf %303, %304 : vector<2x128xf32>
    %306 = vector.extract_strided_slice %300 {offsets = [0, 64], sizes = [2, 32], strides = [1, 1]} : vector<2x128xf32> to vector<2x32xf32>
    %307 = math.tanh %306 : vector<2x32xf32>
    %308 = vector.extract_strided_slice %305 {offsets = [0, 32], sizes = [2, 32], strides = [1, 1]} : vector<2x128xf32> to vector<2x32xf32>
    %309 = arith.mulf %308, %294 : vector<2x32xf32>
    %310 = vector.extract_strided_slice %305 {offsets = [0, 0], sizes = [2, 32], strides = [1, 1]} : vector<2x128xf32> to vector<2x32xf32>
    %311 = arith.mulf %310, %307 : vector<2x32xf32>
    %312 = arith.addf %309, %311 : vector<2x32xf32>
    %313 = vector.extract_strided_slice %305 {offsets = [0, 96], sizes = [2, 32], strides = [1, 1]} : vector<2x128xf32> to vector<2x32xf32>
    %314 = math.tanh %312 : vector<2x32xf32>
    %315 = arith.mulf %313, %314 : vector<2x32xf32>
    %316 = tpu.concatenate %315, %297, %279, %261, %243, %225, %207, %189 in 0 : vector<2x32xf32>, vector<2x32xf32>, vector<2x32xf32>, vector<2x32xf32>, vector<2x32xf32>, vector<2x32xf32>, vector<2x32xf32>, vector<2x32xf32> -> vector<16x32xf32>
    %317 = tpu.concatenate %168, %316 in 1 : vector<16x32xf32>, vector<16x32xf32> -> vector<16x64xf32>
    %318 = arith.addf %317, %20 : vector<16x64xf32>
    %cst_77 = arith.constant 0.000000e+00 : f32
    %319 = vector.broadcast %cst_77 : f32 to vector<16x64xf32>
    %320 = tpu.concatenate %318, %319 in 1 : vector<16x64xf32>, vector<16x64xf32> -> vector<16x128xf32>
    %c0_78 = arith.constant 0 : index
    %c0_79 = arith.constant 0 : index
    %321 = vector.load %arg7[%c0_78, %c0_79] : memref<128x256xf32, #tpu.memory_space<vmem>>, vector<128x256xf32>
    %cst_80 = arith.constant dense<0.000000e+00> : vector<16x256xf32>
    %322 = tpu.matmul %320, %321, %cst_80 {dimension_numbers = #tpu.dot_dimension_numbers<[1], [0], [0], [1], [0, 0, 1, 1], [], []>} : vector<16x128xf32>, vector<128x256xf32>, vector<16x256xf32> -> vector<16x256xf32>
    %c0_81 = arith.constant 0 : index
    %c0_82 = arith.constant 0 : index
    %323 = vector.load %arg10[%c0_81, %c0_82] : memref<1x256xf32, #tpu.memory_space<vmem>>, vector<1x256xf32>
    %324 = vector.broadcast %323 : vector<1x256xf32> to vector<16x256xf32>
    %325 = arith.addf %322, %324 : vector<16x256xf32>
    %c0_83 = arith.constant 0 : index
    %c0_84 = arith.constant 0 : index
    %326 = vector.load %arg26[%c0_83, %c0_84] : memref<16x256xf32, #tpu.memory_space<vmem>>, vector<16x256xf32>
    tpu.vector_store %arg26[%c0_83, %c0_84], %325 {strides = array<i32>} : memref<16x256xf32, #tpu.memory_space<vmem>>, vector<16x256xf32>,
    %c0_85 = arith.constant 0 : index
    %c0_86 = arith.constant 0 : index
    %327 = vector.load %arg11[%c0_85, %c0_86] : memref<128x128xf32, #tpu.memory_space<vmem>>, vector<128x128xf32>
    %cst_87 = arith.constant dense<0.000000e+00> : vector<16x128xf32>
    %328 = tpu.matmul %320, %327, %cst_87 {dimension_numbers = #tpu.dot_dimension_numbers<[1], [0], [0], [1], [0, 0, 1, 1], [], []>} : vector<16x128xf32>, vector<128x128xf32>, vector<16x128xf32> -> vector<16x128xf32>
    %c0_88 = arith.constant 0 : index
    %c0_89 = arith.constant 0 : index
    %329 = vector.load %arg12[%c0_88, %c0_89] : memref<1x128xf32, #tpu.memory_space<vmem>>, vector<1x128xf32>
    %330 = vector.broadcast %329 : vector<1x128xf32> to vector<16x128xf32>
    %331 = arith.addf %328, %330 : vector<16x128xf32>
    %332 = vector.extract_strided_slice %331 {offsets = [0, 0], sizes = [16, 64], strides = [1, 1]} : vector<16x128xf32> to vector<16x64xf32>
    %333 = arith.negf %332 : vector<16x64xf32>
    %334 = math.exp %333 : vector<16x64xf32>
    %cst_90 = arith.constant 1.000000e+00 : f32
    %335 = vector.broadcast %cst_90 : f32 to vector<16x64xf32>
    %336 = arith.addf %335, %334 : vector<16x64xf32>
    %337 = arith.divf %335, %336 : vector<16x64xf32>
    %338 = vector.extract_strided_slice %331 {offsets = [0, 64], sizes = [16, 64], strides = [1, 1]} : vector<16x128xf32> to vector<16x64xf32>
    %339 = math.tanh %338 : vector<16x64xf32>
    %340 = arith.mulf %337, %339 : vector<16x64xf32>
    %c0_91 = arith.constant 0 : index
    %c0_92 = arith.constant 0 : index
    %341 = vector.load %arg8[%c0_91, %c0_92] : memref<32x128xf32, #tpu.memory_space<vmem>>, vector<32x128xf32>
    %cst_93 = arith.constant 0.000000e+00 : f32
    %342 = vector.broadcast %cst_93 : f32 to vector<2x32xf32>
    %cst_94 = arith.constant 0.000000e+00 : f32
    %343 = vector.broadcast %cst_94 : f32 to vector<2x32xf32>
    %c0_95 = arith.constant 0 : index
    %c0_96 = arith.constant 0 : index
    %344 = vector.load %arg26[%c0_95, %c0_96] : memref<16x256xf32, #tpu.memory_space<vmem>>, vector<2x128xf32>
    %cst_97 = arith.constant dense<0.000000e+00> : vector<2x128xf32>
    %345 = tpu.matmul %342, %341, %cst_97 {dimension_numbers = #tpu.dot_dimension_numbers<[1], [0], [0], [1], [0, 0, 1, 1], [], []>} : vector<2x32xf32>, vector<32x128xf32>, vector<2x128xf32> -> vector<2x128xf32>
    %346 = arith.addf %344, %345 : vector<2x128xf32>
    %347 = arith.negf %346 : vector<2x128xf32>
    %348 = math.exp %347 : vector<2x128xf32>
    %cst_98 = arith.constant 1.000000e+00 : f32
    %349 = vector.broadcast %cst_98 : f32 to vector<2x128xf32>
    %350 = arith.addf %349, %348 : vector<2x128xf32>
    %351 = arith.divf %349, %350 : vector<2x128xf32>
    %352 = vector.extract_strided_slice %346 {offsets = [0, 64], sizes = [2, 32], strides = [1, 1]} : vector<2x128xf32> to vector<2x32xf32>
    %353 = math.tanh %352 : vector<2x32xf32>
    %354 = vector.extract_strided_slice %351 {offsets = [0, 32], sizes = [2, 32], strides = [1, 1]} : vector<2x128xf32> to vector<2x32xf32>
    %355 = arith.mulf %354, %343 : vector<2x32xf32>
    %356 = vector.extract_strided_slice %351 {offsets = [0, 0], sizes = [2, 32], strides = [1, 1]} : vector<2x128xf32> to vector<2x32xf32>
    %357 = arith.mulf %356, %353 : vector<2x32xf32>
    %358 = arith.addf %355, %357 : vector<2x32xf32>
    %359 = vector.extract_strided_slice %351 {offsets = [0, 96], sizes = [2, 32], strides = [1, 1]} : vector<2x128xf32> to vector<2x32xf32>
    %360 = math.tanh %358 : vector<2x32xf32>
    %361 = arith.mulf %359, %360 : vector<2x32xf32>
    %c2_99 = arith.constant 2 : index
    %c0_100 = arith.constant 0 : index
    %362 = vector.load %arg26[%c2_99, %c0_100] : memref<16x256xf32, #tpu.memory_space<vmem>>, vector<2x128xf32>
    %cst_101 = arith.constant dense<0.000000e+00> : vector<2x128xf32>
    %363 = tpu.matmul %361, %341, %cst_101 {dimension_numbers = #tpu.dot_dimension_numbers<[1], [0], [0], [1], [0, 0, 1, 1], [], []>} : vector<2x32xf32>, vector<32x128xf32>, vector<2x128xf32> -> vector<2x128xf32>
    %364 = arith.addf %362, %363 : vector<2x128xf32>
    %365 = arith.negf %364 : vector<2x128xf32>
    %366 = math.exp %365 : vector<2x128xf32>
    %cst_102 = arith.constant 1.000000e+00 : f32
    %367 = vector.broadcast %cst_102 : f32 to vector<2x128xf32>
    %368 = arith.addf %367, %366 : vector<2x128xf32>
    %369 = arith.divf %367, %368 : vector<2x128xf32>
    %370 = vector.extract_strided_slice %364 {offsets = [0, 64], sizes = [2, 32], strides = [1, 1]} : vector<2x128xf32> to vector<2x32xf32>
    %371 = math.tanh %370 : vector<2x32xf32>
    %372 = vector.extract_strided_slice %369 {offsets = [0, 32], sizes = [2, 32], strides = [1, 1]} : vector<2x128xf32> to vector<2x32xf32>
    %373 = arith.mulf %372, %358 : vector<2x32xf32>
    %374 = vector.extract_strided_slice %369 {offsets = [0, 0], sizes = [2, 32], strides = [1, 1]} : vector<2x128xf32> to vector<2x32xf32>
    %375 = arith.mulf %374, %371 : vector<2x32xf32>
    %376 = arith.addf %373, %375 : vector<2x32xf32>
    %377 = vector.extract_strided_slice %369 {offsets = [0, 96], sizes = [2, 32], strides = [1, 1]} : vector<2x128xf32> to vector<2x32xf32>
    %378 = math.tanh %376 : vector<2x32xf32>
    %379 = arith.mulf %377, %378 : vector<2x32xf32>
    %c4_103 = arith.constant 4 : index
    %c0_104 = arith.constant 0 : index
    %380 = vector.load %arg26[%c4_103, %c0_104] : memref<16x256xf32, #tpu.memory_space<vmem>>, vector<2x128xf32>
    %cst_105 = arith.constant dense<0.000000e+00> : vector<2x128xf32>
    %381 = tpu.matmul %379, %341, %cst_105 {dimension_numbers = #tpu.dot_dimension_numbers<[1], [0], [0], [1], [0, 0, 1, 1], [], []>} : vector<2x32xf32>, vector<32x128xf32>, vector<2x128xf32> -> vector<2x128xf32>
    %382 = arith.addf %380, %381 : vector<2x128xf32>
    %383 = arith.negf %382 : vector<2x128xf32>
    %384 = math.exp %383 : vector<2x128xf32>
    %cst_106 = arith.constant 1.000000e+00 : f32
    %385 = vector.broadcast %cst_106 : f32 to vector<2x128xf32>
    %386 = arith.addf %385, %384 : vector<2x128xf32>
    %387 = arith.divf %385, %386 : vector<2x128xf32>
    %388 = vector.extract_strided_slice %382 {offsets = [0, 64], sizes = [2, 32], strides = [1, 1]} : vector<2x128xf32> to vector<2x32xf32>
    %389 = math.tanh %388 : vector<2x32xf32>
    %390 = vector.extract_strided_slice %387 {offsets = [0, 32], sizes = [2, 32], strides = [1, 1]} : vector<2x128xf32> to vector<2x32xf32>
    %391 = arith.mulf %390, %376 : vector<2x32xf32>
    %392 = vector.extract_strided_slice %387 {offsets = [0, 0], sizes = [2, 32], strides = [1, 1]} : vector<2x128xf32> to vector<2x32xf32>
    %393 = arith.mulf %392, %389 : vector<2x32xf32>
    %394 = arith.addf %391, %393 : vector<2x32xf32>
    %395 = vector.extract_strided_slice %387 {offsets = [0, 96], sizes = [2, 32], strides = [1, 1]} : vector<2x128xf32> to vector<2x32xf32>
    %396 = math.tanh %394 : vector<2x32xf32>
    %397 = arith.mulf %395, %396 : vector<2x32xf32>
    %c6_107 = arith.constant 6 : index
    %c0_108 = arith.constant 0 : index
    %398 = vector.load %arg26[%c6_107, %c0_108] : memref<16x256xf32, #tpu.memory_space<vmem>>, vector<2x128xf32>
    %cst_109 = arith.constant dense<0.000000e+00> : vector<2x128xf32>
    %399 = tpu.matmul %397, %341, %cst_109 {dimension_numbers = #tpu.dot_dimension_numbers<[1], [0], [0], [1], [0, 0, 1, 1], [], []>} : vector<2x32xf32>, vector<32x128xf32>, vector<2x128xf32> -> vector<2x128xf32>
    %400 = arith.addf %398, %399 : vector<2x128xf32>
    %401 = arith.negf %400 : vector<2x128xf32>
    %402 = math.exp %401 : vector<2x128xf32>
    %cst_110 = arith.constant 1.000000e+00 : f32
    %403 = vector.broadcast %cst_110 : f32 to vector<2x128xf32>
    %404 = arith.addf %403, %402 : vector<2x128xf32>
    %405 = arith.divf %403, %404 : vector<2x128xf32>
    %406 = vector.extract_strided_slice %400 {offsets = [0, 64], sizes = [2, 32], strides = [1, 1]} : vector<2x128xf32> to vector<2x32xf32>
    %407 = math.tanh %406 : vector<2x32xf32>
    %408 = vector.extract_strided_slice %405 {offsets = [0, 32], sizes = [2, 32], strides = [1, 1]} : vector<2x128xf32> to vector<2x32xf32>
    %409 = arith.mulf %408, %394 : vector<2x32xf32>
    %410 = vector.extract_strided_slice %405 {offsets = [0, 0], sizes = [2, 32], strides = [1, 1]} : vector<2x128xf32> to vector<2x32xf32>
    %411 = arith.mulf %410, %407 : vector<2x32xf32>
    %412 = arith.addf %409, %411 : vector<2x32xf32>
    %413 = vector.extract_strided_slice %405 {offsets = [0, 96], sizes = [2, 32], strides = [1, 1]} : vector<2x128xf32> to vector<2x32xf32>
    %414 = math.tanh %412 : vector<2x32xf32>
    %415 = arith.mulf %413, %414 : vector<2x32xf32>
    %c8_111 = arith.constant 8 : index
    %c0_112 = arith.constant 0 : index
    %416 = vector.load %arg26[%c8_111, %c0_112] : memref<16x256xf32, #tpu.memory_space<vmem>>, vector<2x128xf32>
    %cst_113 = arith.constant dense<0.000000e+00> : vector<2x128xf32>
    %417 = tpu.matmul %415, %341, %cst_113 {dimension_numbers = #tpu.dot_dimension_numbers<[1], [0], [0], [1], [0, 0, 1, 1], [], []>} : vector<2x32xf32>, vector<32x128xf32>, vector<2x128xf32> -> vector<2x128xf32>
    %418 = arith.addf %416, %417 : vector<2x128xf32>
    %419 = arith.negf %418 : vector<2x128xf32>
    %420 = math.exp %419 : vector<2x128xf32>
    %cst_114 = arith.constant 1.000000e+00 : f32
    %421 = vector.broadcast %cst_114 : f32 to vector<2x128xf32>
    %422 = arith.addf %421, %420 : vector<2x128xf32>
    %423 = arith.divf %421, %422 : vector<2x128xf32>
    %424 = vector.extract_strided_slice %418 {offsets = [0, 64], sizes = [2, 32], strides = [1, 1]} : vector<2x128xf32> to vector<2x32xf32>
    %425 = math.tanh %424 : vector<2x32xf32>
    %426 = vector.extract_strided_slice %423 {offsets = [0, 32], sizes = [2, 32], strides = [1, 1]} : vector<2x128xf32> to vector<2x32xf32>
    %427 = arith.mulf %426, %412 : vector<2x32xf32>
    %428 = vector.extract_strided_slice %423 {offsets = [0, 0], sizes = [2, 32], strides = [1, 1]} : vector<2x128xf32> to vector<2x32xf32>
    %429 = arith.mulf %428, %425 : vector<2x32xf32>
    %430 = arith.addf %427, %429 : vector<2x32xf32>
    %431 = vector.extract_strided_slice %423 {offsets = [0, 96], sizes = [2, 32], strides = [1, 1]} : vector<2x128xf32> to vector<2x32xf32>
    %432 = math.tanh %430 : vector<2x32xf32>
    %433 = arith.mulf %431, %432 : vector<2x32xf32>
    %c10_115 = arith.constant 10 : index
    %c0_116 = arith.constant 0 : index
    %434 = vector.load %arg26[%c10_115, %c0_116] : memref<16x256xf32, #tpu.memory_space<vmem>>, vector<2x128xf32>
    %cst_117 = arith.constant dense<0.000000e+00> : vector<2x128xf32>
    %435 = tpu.matmul %433, %341, %cst_117 {dimension_numbers = #tpu.dot_dimension_numbers<[1], [0], [0], [1], [0, 0, 1, 1], [], []>} : vector<2x32xf32>, vector<32x128xf32>, vector<2x128xf32> -> vector<2x128xf32>
    %436 = arith.addf %434, %435 : vector<2x128xf32>
    %437 = arith.negf %436 : vector<2x128xf32>
    %438 = math.exp %437 : vector<2x128xf32>
    %cst_118 = arith.constant 1.000000e+00 : f32
    %439 = vector.broadcast %cst_118 : f32 to vector<2x128xf32>
    %440 = arith.addf %439, %438 : vector<2x128xf32>
    %441 = arith.divf %439, %440 : vector<2x128xf32>
    %442 = vector.extract_strided_slice %436 {offsets = [0, 64], sizes = [2, 32], strides = [1, 1]} : vector<2x128xf32> to vector<2x32xf32>
    %443 = math.tanh %442 : vector<2x32xf32>
    %444 = vector.extract_strided_slice %441 {offsets = [0, 32], sizes = [2, 32], strides = [1, 1]} : vector<2x128xf32> to vector<2x32xf32>
    %445 = arith.mulf %444, %430 : vector<2x32xf32>
    %446 = vector.extract_strided_slice %441 {offsets = [0, 0], sizes = [2, 32], strides = [1, 1]} : vector<2x128xf32> to vector<2x32xf32>
    %447 = arith.mulf %446, %443 : vector<2x32xf32>
    %448 = arith.addf %445, %447 : vector<2x32xf32>
    %449 = vector.extract_strided_slice %441 {offsets = [0, 96], sizes = [2, 32], strides = [1, 1]} : vector<2x128xf32> to vector<2x32xf32>
    %450 = math.tanh %448 : vector<2x32xf32>
    %451 = arith.mulf %449, %450 : vector<2x32xf32>
    %c12_119 = arith.constant 12 : index
    %c0_120 = arith.constant 0 : index
    %452 = vector.load %arg26[%c12_119, %c0_120] : memref<16x256xf32, #tpu.memory_space<vmem>>, vector<2x128xf32>
    %cst_121 = arith.constant dense<0.000000e+00> : vector<2x128xf32>
    %453 = tpu.matmul %451, %341, %cst_121 {dimension_numbers = #tpu.dot_dimension_numbers<[1], [0], [0], [1], [0, 0, 1, 1], [], []>} : vector<2x32xf32>, vector<32x128xf32>, vector<2x128xf32> -> vector<2x128xf32>
    %454 = arith.addf %452, %453 : vector<2x128xf32>
    %455 = arith.negf %454 : vector<2x128xf32>
    %456 = math.exp %455 : vector<2x128xf32>
    %cst_122 = arith.constant 1.000000e+00 : f32
    %457 = vector.broadcast %cst_122 : f32 to vector<2x128xf32>
    %458 = arith.addf %457, %456 : vector<2x128xf32>
    %459 = arith.divf %457, %458 : vector<2x128xf32>
    %460 = vector.extract_strided_slice %454 {offsets = [0, 64], sizes = [2, 32], strides = [1, 1]} : vector<2x128xf32> to vector<2x32xf32>
    %461 = math.tanh %460 : vector<2x32xf32>
    %462 = vector.extract_strided_slice %459 {offsets = [0, 32], sizes = [2, 32], strides = [1, 1]} : vector<2x128xf32> to vector<2x32xf32>
    %463 = arith.mulf %462, %448 : vector<2x32xf32>
    %464 = vector.extract_strided_slice %459 {offsets = [0, 0], sizes = [2, 32], strides = [1, 1]} : vector<2x128xf32> to vector<2x32xf32>
    %465 = arith.mulf %464, %461 : vector<2x32xf32>
    %466 = arith.addf %463, %465 : vector<2x32xf32>
    %467 = vector.extract_strided_slice %459 {offsets = [0, 96], sizes = [2, 32], strides = [1, 1]} : vector<2x128xf32> to vector<2x32xf32>
    %468 = math.tanh %466 : vector<2x32xf32>
    %469 = arith.mulf %467, %468 : vector<2x32xf32>
    %c14_123 = arith.constant 14 : index
    %c0_124 = arith.constant 0 : index
    %470 = vector.load %arg26[%c14_123, %c0_124] : memref<16x256xf32, #tpu.memory_space<vmem>>, vector<2x128xf32>
    %cst_125 = arith.constant dense<0.000000e+00> : vector<2x128xf32>
    %471 = tpu.matmul %469, %341, %cst_125 {dimension_numbers = #tpu.dot_dimension_numbers<[1], [0], [0], [1], [0, 0, 1, 1], [], []>} : vector<2x32xf32>, vector<32x128xf32>, vector<2x128xf32> -> vector<2x128xf32>
    %472 = arith.addf %470, %471 : vector<2x128xf32>
    %473 = arith.negf %472 : vector<2x128xf32>
    %474 = math.exp %473 : vector<2x128xf32>
    %cst_126 = arith.constant 1.000000e+00 : f32
    %475 = vector.broadcast %cst_126 : f32 to vector<2x128xf32>
    %476 = arith.addf %475, %474 : vector<2x128xf32>
    %477 = arith.divf %475, %476 : vector<2x128xf32>
    %478 = vector.extract_strided_slice %472 {offsets = [0, 64], sizes = [2, 32], strides = [1, 1]} : vector<2x128xf32> to vector<2x32xf32>
    %479 = math.tanh %478 : vector<2x32xf32>
    %480 = vector.extract_strided_slice %477 {offsets = [0, 32], sizes = [2, 32], strides = [1, 1]} : vector<2x128xf32> to vector<2x32xf32>
    %481 = arith.mulf %480, %466 : vector<2x32xf32>
    %482 = vector.extract_strided_slice %477 {offsets = [0, 0], sizes = [2, 32], strides = [1, 1]} : vector<2x128xf32> to vector<2x32xf32>
    %483 = arith.mulf %482, %479 : vector<2x32xf32>
    %484 = arith.addf %481, %483 : vector<2x32xf32>
    %485 = vector.extract_strided_slice %477 {offsets = [0, 96], sizes = [2, 32], strides = [1, 1]} : vector<2x128xf32> to vector<2x32xf32>
    %486 = math.tanh %484 : vector<2x32xf32>
    %487 = arith.mulf %485, %486 : vector<2x32xf32>
    %488 = tpu.concatenate %361, %379, %397, %415, %433, %451, %469, %487 in 0 : vector<2x32xf32>, vector<2x32xf32>, vector<2x32xf32>, vector<2x32xf32>, vector<2x32xf32>, vector<2x32xf32>, vector<2x32xf32>, vector<2x32xf32> -> vector<16x32xf32>
    %c0_127 = arith.constant 0 : index
    %c0_128 = arith.constant 0 : index
    %489 = vector.load %arg9[%c0_127, %c0_128] : memref<32x128xf32, #tpu.memory_space<vmem>>, vector<32x128xf32>
    %cst_129 = arith.constant 0.000000e+00 : f32
    %490 = vector.broadcast %cst_129 : f32 to vector<2x32xf32>
    %cst_130 = arith.constant 0.000000e+00 : f32
    %491 = vector.broadcast %cst_130 : f32 to vector<2x32xf32>
    %c14_131 = arith.constant 14 : index
    %c128_132 = arith.constant 128 : index
    %492 = vector.load %arg26[%c14_131, %c128_132] : memref<16x256xf32, #tpu.memory_space<vmem>>, vector<2x128xf32>
    %cst_133 = arith.constant dense<0.000000e+00> : vector<2x128xf32>
    %493 = tpu.matmul %490, %489, %cst_133 {dimension_numbers = #tpu.dot_dimension_numbers<[1], [0], [0], [1], [0, 0, 1, 1], [], []>} : vector<2x32xf32>, vector<32x128xf32>, vector<2x128xf32> -> vector<2x128xf32>
    %494 = arith.addf %492, %493 : vector<2x128xf32>
    %495 = arith.negf %494 : vector<2x128xf32>
    %496 = math.exp %495 : vector<2x128xf32>
    %cst_134 = arith.constant 1.000000e+00 : f32
    %497 = vector.broadcast %cst_134 : f32 to vector<2x128xf32>
    %498 = arith.addf %497, %496 : vector<2x128xf32>
    %499 = arith.divf %497, %498 : vector<2x128xf32>
    %500 = vector.extract_strided_slice %494 {offsets = [0, 64], sizes = [2, 32], strides = [1, 1]} : vector<2x128xf32> to vector<2x32xf32>
    %501 = math.tanh %500 : vector<2x32xf32>
    %502 = vector.extract_strided_slice %499 {offsets = [0, 32], sizes = [2, 32], strides = [1, 1]} : vector<2x128xf32> to vector<2x32xf32>
    %503 = arith.mulf %502, %491 : vector<2x32xf32>
    %504 = vector.extract_strided_slice %499 {offsets = [0, 0], sizes = [2, 32], strides = [1, 1]} : vector<2x128xf32> to vector<2x32xf32>
    %505 = arith.mulf %504, %501 : vector<2x32xf32>
    %506 = arith.addf %503, %505 : vector<2x32xf32>
    %507 = vector.extract_strided_slice %499 {offsets = [0, 96], sizes = [2, 32], strides = [1, 1]} : vector<2x128xf32> to vector<2x32xf32>
    %508 = math.tanh %506 : vector<2x32xf32>
    %509 = arith.mulf %507, %508 : vector<2x32xf32>
    %c12_135 = arith.constant 12 : index
    %c128_136 = arith.constant 128 : index
    %510 = vector.load %arg26[%c12_135, %c128_136] : memref<16x256xf32, #tpu.memory_space<vmem>>, vector<2x128xf32>
    %cst_137 = arith.constant dense<0.000000e+00> : vector<2x128xf32>
    %511 = tpu.matmul %509, %489, %cst_137 {dimension_numbers = #tpu.dot_dimension_numbers<[1], [0], [0], [1], [0, 0, 1, 1], [], []>} : vector<2x32xf32>, vector<32x128xf32>, vector<2x128xf32> -> vector<2x128xf32>
    %512 = arith.addf %510, %511 : vector<2x128xf32>
    %513 = arith.negf %512 : vector<2x128xf32>
    %514 = math.exp %513 : vector<2x128xf32>
    %cst_138 = arith.constant 1.000000e+00 : f32
    %515 = vector.broadcast %cst_138 : f32 to vector<2x128xf32>
    %516 = arith.addf %515, %514 : vector<2x128xf32>
    %517 = arith.divf %515, %516 : vector<2x128xf32>
    %518 = vector.extract_strided_slice %512 {offsets = [0, 64], sizes = [2, 32], strides = [1, 1]} : vector<2x128xf32> to vector<2x32xf32>
    %519 = math.tanh %518 : vector<2x32xf32>
    %520 = vector.extract_strided_slice %517 {offsets = [0, 32], sizes = [2, 32], strides = [1, 1]} : vector<2x128xf32> to vector<2x32xf32>
    %521 = arith.mulf %520, %506 : vector<2x32xf32>
    %522 = vector.extract_strided_slice %517 {offsets = [0, 0], sizes = [2, 32], strides = [1, 1]} : vector<2x128xf32> to vector<2x32xf32>
    %523 = arith.mulf %522, %519 : vector<2x32xf32>
    %524 = arith.addf %521, %523 : vector<2x32xf32>
    %525 = vector.extract_strided_slice %517 {offsets = [0, 96], sizes = [2, 32], strides = [1, 1]} : vector<2x128xf32> to vector<2x32xf32>
    %526 = math.tanh %524 : vector<2x32xf32>
    %527 = arith.mulf %525, %526 : vector<2x32xf32>
    %c10_139 = arith.constant 10 : index
    %c128_140 = arith.constant 128 : index
    %528 = vector.load %arg26[%c10_139, %c128_140] : memref<16x256xf32, #tpu.memory_space<vmem>>, vector<2x128xf32>
    %cst_141 = arith.constant dense<0.000000e+00> : vector<2x128xf32>
    %529 = tpu.matmul %527, %489, %cst_141 {dimension_numbers = #tpu.dot_dimension_numbers<[1], [0], [0], [1], [0, 0, 1, 1], [], []>} : vector<2x32xf32>, vector<32x128xf32>, vector<2x128xf32> -> vector<2x128xf32>
    %530 = arith.addf %528, %529 : vector<2x128xf32>
    %531 = arith.negf %530 : vector<2x128xf32>
    %532 = math.exp %531 : vector<2x128xf32>
    %cst_142 = arith.constant 1.000000e+00 : f32
    %533 = vector.broadcast %cst_142 : f32 to vector<2x128xf32>
    %534 = arith.addf %533, %532 : vector<2x128xf32>
    %535 = arith.divf %533, %534 : vector<2x128xf32>
    %536 = vector.extract_strided_slice %530 {offsets = [0, 64], sizes = [2, 32], strides = [1, 1]} : vector<2x128xf32> to vector<2x32xf32>
    %537 = math.tanh %536 : vector<2x32xf32>
    %538 = vector.extract_strided_slice %535 {offsets = [0, 32], sizes = [2, 32], strides = [1, 1]} : vector<2x128xf32> to vector<2x32xf32>
    %539 = arith.mulf %538, %524 : vector<2x32xf32>
    %540 = vector.extract_strided_slice %535 {offsets = [0, 0], sizes = [2, 32], strides = [1, 1]} : vector<2x128xf32> to vector<2x32xf32>
    %541 = arith.mulf %540, %537 : vector<2x32xf32>
    %542 = arith.addf %539, %541 : vector<2x32xf32>
    %543 = vector.extract_strided_slice %535 {offsets = [0, 96], sizes = [2, 32], strides = [1, 1]} : vector<2x128xf32> to vector<2x32xf32>
    %544 = math.tanh %542 : vector<2x32xf32>
    %545 = arith.mulf %543, %544 : vector<2x32xf32>
    %c8_143 = arith.constant 8 : index
    %c128_144 = arith.constant 128 : index
    %546 = vector.load %arg26[%c8_143, %c128_144] : memref<16x256xf32, #tpu.memory_space<vmem>>, vector<2x128xf32>
    %cst_145 = arith.constant dense<0.000000e+00> : vector<2x128xf32>
    %547 = tpu.matmul %545, %489, %cst_145 {dimension_numbers = #tpu.dot_dimension_numbers<[1], [0], [0], [1], [0, 0, 1, 1], [], []>} : vector<2x32xf32>, vector<32x128xf32>, vector<2x128xf32> -> vector<2x128xf32>
    %548 = arith.addf %546, %547 : vector<2x128xf32>
    %549 = arith.negf %548 : vector<2x128xf32>
    %550 = math.exp %549 : vector<2x128xf32>
    %cst_146 = arith.constant 1.000000e+00 : f32
    %551 = vector.broadcast %cst_146 : f32 to vector<2x128xf32>
    %552 = arith.addf %551, %550 : vector<2x128xf32>
    %553 = arith.divf %551, %552 : vector<2x128xf32>
    %554 = vector.extract_strided_slice %548 {offsets = [0, 64], sizes = [2, 32], strides = [1, 1]} : vector<2x128xf32> to vector<2x32xf32>
    %555 = math.tanh %554 : vector<2x32xf32>
    %556 = vector.extract_strided_slice %553 {offsets = [0, 32], sizes = [2, 32], strides = [1, 1]} : vector<2x128xf32> to vector<2x32xf32>
    %557 = arith.mulf %556, %542 : vector<2x32xf32>
    %558 = vector.extract_strided_slice %553 {offsets = [0, 0], sizes = [2, 32], strides = [1, 1]} : vector<2x128xf32> to vector<2x32xf32>
    %559 = arith.mulf %558, %555 : vector<2x32xf32>
    %560 = arith.addf %557, %559 : vector<2x32xf32>
    %561 = vector.extract_strided_slice %553 {offsets = [0, 96], sizes = [2, 32], strides = [1, 1]} : vector<2x128xf32> to vector<2x32xf32>
    %562 = math.tanh %560 : vector<2x32xf32>
    %563 = arith.mulf %561, %562 : vector<2x32xf32>
    %c6_147 = arith.constant 6 : index
    %c128_148 = arith.constant 128 : index
    %564 = vector.load %arg26[%c6_147, %c128_148] : memref<16x256xf32, #tpu.memory_space<vmem>>, vector<2x128xf32>
    %cst_149 = arith.constant dense<0.000000e+00> : vector<2x128xf32>
    %565 = tpu.matmul %563, %489, %cst_149 {dimension_numbers = #tpu.dot_dimension_numbers<[1], [0], [0], [1], [0, 0, 1, 1], [], []>} : vector<2x32xf32>, vector<32x128xf32>, vector<2x128xf32> -> vector<2x128xf32>
    %566 = arith.addf %564, %565 : vector<2x128xf32>
    %567 = arith.negf %566 : vector<2x128xf32>
    %568 = math.exp %567 : vector<2x128xf32>
    %cst_150 = arith.constant 1.000000e+00 : f32
    %569 = vector.broadcast %cst_150 : f32 to vector<2x128xf32>
    %570 = arith.addf %569, %568 : vector<2x128xf32>
    %571 = arith.divf %569, %570 : vector<2x128xf32>
    %572 = vector.extract_strided_slice %566 {offsets = [0, 64], sizes = [2, 32], strides = [1, 1]} : vector<2x128xf32> to vector<2x32xf32>
    %573 = math.tanh %572 : vector<2x32xf32>
    %574 = vector.extract_strided_slice %571 {offsets = [0, 32], sizes = [2, 32], strides = [1, 1]} : vector<2x128xf32> to vector<2x32xf32>
    %575 = arith.mulf %574, %560 : vector<2x32xf32>
    %576 = vector.extract_strided_slice %571 {offsets = [0, 0], sizes = [2, 32], strides = [1, 1]} : vector<2x128xf32> to vector<2x32xf32>
    %577 = arith.mulf %576, %573 : vector<2x32xf32>
    %578 = arith.addf %575, %577 : vector<2x32xf32>
    %579 = vector.extract_strided_slice %571 {offsets = [0, 96], sizes = [2, 32], strides = [1, 1]} : vector<2x128xf32> to vector<2x32xf32>
    %580 = math.tanh %578 : vector<2x32xf32>
    %581 = arith.mulf %579, %580 : vector<2x32xf32>
    %c4_151 = arith.constant 4 : index
    %c128_152 = arith.constant 128 : index
    %582 = vector.load %arg26[%c4_151, %c128_152] : memref<16x256xf32, #tpu.memory_space<vmem>>, vector<2x128xf32>
    %cst_153 = arith.constant dense<0.000000e+00> : vector<2x128xf32>
    %583 = tpu.matmul %581, %489, %cst_153 {dimension_numbers = #tpu.dot_dimension_numbers<[1], [0], [0], [1], [0, 0, 1, 1], [], []>} : vector<2x32xf32>, vector<32x128xf32>, vector<2x128xf32> -> vector<2x128xf32>
    %584 = arith.addf %582, %583 : vector<2x128xf32>
    %585 = arith.negf %584 : vector<2x128xf32>
    %586 = math.exp %585 : vector<2x128xf32>
    %cst_154 = arith.constant 1.000000e+00 : f32
    %587 = vector.broadcast %cst_154 : f32 to vector<2x128xf32>
    %588 = arith.addf %587, %586 : vector<2x128xf32>
    %589 = arith.divf %587, %588 : vector<2x128xf32>
    %590 = vector.extract_strided_slice %584 {offsets = [0, 64], sizes = [2, 32], strides = [1, 1]} : vector<2x128xf32> to vector<2x32xf32>
    %591 = math.tanh %590 : vector<2x32xf32>
    %592 = vector.extract_strided_slice %589 {offsets = [0, 32], sizes = [2, 32], strides = [1, 1]} : vector<2x128xf32> to vector<2x32xf32>
    %593 = arith.mulf %592, %578 : vector<2x32xf32>
    %594 = vector.extract_strided_slice %589 {offsets = [0, 0], sizes = [2, 32], strides = [1, 1]} : vector<2x128xf32> to vector<2x32xf32>
    %595 = arith.mulf %594, %591 : vector<2x32xf32>
    %596 = arith.addf %593, %595 : vector<2x32xf32>
    %597 = vector.extract_strided_slice %589 {offsets = [0, 96], sizes = [2, 32], strides = [1, 1]} : vector<2x128xf32> to vector<2x32xf32>
    %598 = math.tanh %596 : vector<2x32xf32>
    %599 = arith.mulf %597, %598 : vector<2x32xf32>
    %c2_155 = arith.constant 2 : index
    %c128_156 = arith.constant 128 : index
    %600 = vector.load %arg26[%c2_155, %c128_156] : memref<16x256xf32, #tpu.memory_space<vmem>>, vector<2x128xf32>
    %cst_157 = arith.constant dense<0.000000e+00> : vector<2x128xf32>
    %601 = tpu.matmul %599, %489, %cst_157 {dimension_numbers = #tpu.dot_dimension_numbers<[1], [0], [0], [1], [0, 0, 1, 1], [], []>} : vector<2x32xf32>, vector<32x128xf32>, vector<2x128xf32> -> vector<2x128xf32>
    %602 = arith.addf %600, %601 : vector<2x128xf32>
    %603 = arith.negf %602 : vector<2x128xf32>
    %604 = math.exp %603 : vector<2x128xf32>
    %cst_158 = arith.constant 1.000000e+00 : f32
    %605 = vector.broadcast %cst_158 : f32 to vector<2x128xf32>
    %606 = arith.addf %605, %604 : vector<2x128xf32>
    %607 = arith.divf %605, %606 : vector<2x128xf32>
    %608 = vector.extract_strided_slice %602 {offsets = [0, 64], sizes = [2, 32], strides = [1, 1]} : vector<2x128xf32> to vector<2x32xf32>
    %609 = math.tanh %608 : vector<2x32xf32>
    %610 = vector.extract_strided_slice %607 {offsets = [0, 32], sizes = [2, 32], strides = [1, 1]} : vector<2x128xf32> to vector<2x32xf32>
    %611 = arith.mulf %610, %596 : vector<2x32xf32>
    %612 = vector.extract_strided_slice %607 {offsets = [0, 0], sizes = [2, 32], strides = [1, 1]} : vector<2x128xf32> to vector<2x32xf32>
    %613 = arith.mulf %612, %609 : vector<2x32xf32>
    %614 = arith.addf %611, %613 : vector<2x32xf32>
    %615 = vector.extract_strided_slice %607 {offsets = [0, 96], sizes = [2, 32], strides = [1, 1]} : vector<2x128xf32> to vector<2x32xf32>
    %616 = math.tanh %614 : vector<2x32xf32>
    %617 = arith.mulf %615, %616 : vector<2x32xf32>
    %c0_159 = arith.constant 0 : index
    %c128_160 = arith.constant 128 : index
    %618 = vector.load %arg26[%c0_159, %c128_160] : memref<16x256xf32, #tpu.memory_space<vmem>>, vector<2x128xf32>
    %cst_161 = arith.constant dense<0.000000e+00> : vector<2x128xf32>
    %619 = tpu.matmul %617, %489, %cst_161 {dimension_numbers = #tpu.dot_dimension_numbers<[1], [0], [0], [1], [0, 0, 1, 1], [], []>} : vector<2x32xf32>, vector<32x128xf32>, vector<2x128xf32> -> vector<2x128xf32>
    %620 = arith.addf %618, %619 : vector<2x128xf32>
    %621 = arith.negf %620 : vector<2x128xf32>
    %622 = math.exp %621 : vector<2x128xf32>
    %cst_162 = arith.constant 1.000000e+00 : f32
    %623 = vector.broadcast %cst_162 : f32 to vector<2x128xf32>
    %624 = arith.addf %623, %622 : vector<2x128xf32>
    %625 = arith.divf %623, %624 : vector<2x128xf32>
    %626 = vector.extract_strided_slice %620 {offsets = [0, 64], sizes = [2, 32], strides = [1, 1]} : vector<2x128xf32> to vector<2x32xf32>
    %627 = math.tanh %626 : vector<2x32xf32>
    %628 = vector.extract_strided_slice %625 {offsets = [0, 32], sizes = [2, 32], strides = [1, 1]} : vector<2x128xf32> to vector<2x32xf32>
    %629 = arith.mulf %628, %614 : vector<2x32xf32>
    %630 = vector.extract_strided_slice %625 {offsets = [0, 0], sizes = [2, 32], strides = [1, 1]} : vector<2x128xf32> to vector<2x32xf32>
    %631 = arith.mulf %630, %627 : vector<2x32xf32>
    %632 = arith.addf %629, %631 : vector<2x32xf32>
    %633 = vector.extract_strided_slice %625 {offsets = [0, 96], sizes = [2, 32], strides = [1, 1]} : vector<2x128xf32> to vector<2x32xf32>
    %634 = math.tanh %632 : vector<2x32xf32>
    %635 = arith.mulf %633, %634 : vector<2x32xf32>
    %636 = tpu.concatenate %635, %617, %599, %581, %563, %545, %527, %509 in 0 : vector<2x32xf32>, vector<2x32xf32>, vector<2x32xf32>, vector<2x32xf32>, vector<2x32xf32>, vector<2x32xf32>, vector<2x32xf32>, vector<2x32xf32> -> vector<16x32xf32>
    %637 = tpu.concatenate %488, %636 in 1 : vector<16x32xf32>, vector<16x32xf32> -> vector<16x64xf32>
    %638 = arith.addf %637, %340 : vector<16x64xf32>
    %cst_163 = arith.constant 0.000000e+00 : f32
    %639 = vector.broadcast %cst_163 : f32 to vector<16x64xf32>
    %640 = tpu.concatenate %638, %639 in 1 : vector<16x64xf32>, vector<16x64xf32> -> vector<16x128xf32>
    %641 = arith.mulf %640, %640 : vector<16x128xf32>
    %cst_164 = arith.constant dense<0.000000e+00> : vector<16xf32>
    %642 = vector.multi_reduction <add>, %641, %cst_164 [1] : vector<16x128xf32> to vector<16xf32>
    %643 = vector.shape_cast %642 : vector<16xf32> to vector<16x1xf32>
    %644 = vector.extract_strided_slice %643 {offsets = [0, 0], sizes = [2, 1], strides = [1, 1]} : vector<16x1xf32> to vector<2x1xf32>
    %645 = vector.extract_strided_slice %643 {offsets = [2, 0], sizes = [2, 1], strides = [1, 1]} : vector<16x1xf32> to vector<2x1xf32>
    %646 = arith.maximumf %644, %645 : vector<2x1xf32>
    %647 = vector.extract_strided_slice %643 {offsets = [4, 0], sizes = [2, 1], strides = [1, 1]} : vector<16x1xf32> to vector<2x1xf32>
    %648 = arith.maximumf %646, %647 : vector<2x1xf32>
    %649 = vector.extract_strided_slice %643 {offsets = [6, 0], sizes = [2, 1], strides = [1, 1]} : vector<16x1xf32> to vector<2x1xf32>
    %650 = arith.maximumf %648, %649 : vector<2x1xf32>
    %651 = vector.extract_strided_slice %643 {offsets = [8, 0], sizes = [2, 1], strides = [1, 1]} : vector<16x1xf32> to vector<2x1xf32>
    %652 = arith.maximumf %650, %651 : vector<2x1xf32>
    %653 = vector.extract_strided_slice %643 {offsets = [10, 0], sizes = [2, 1], strides = [1, 1]} : vector<16x1xf32> to vector<2x1xf32>
    %654 = arith.maximumf %652, %653 : vector<2x1xf32>
    %655 = vector.extract_strided_slice %643 {offsets = [12, 0], sizes = [2, 1], strides = [1, 1]} : vector<16x1xf32> to vector<2x1xf32>
    %656 = arith.maximumf %654, %655 : vector<2x1xf32>
    %657 = vector.extract_strided_slice %643 {offsets = [14, 0], sizes = [2, 1], strides = [1, 1]} : vector<16x1xf32> to vector<2x1xf32>
    %658 = arith.maximumf %656, %657 : vector<2x1xf32>
    %659 = math.sqrt %658 : vector<2x1xf32>
    %cst_165 = arith.constant 1.000000e-03 : f32
    %660 = vector.broadcast %cst_165 : f32 to vector<2x1xf32>
    %661 = arith.addf %659, %660 : vector<2x1xf32>
    %cst_166 = arith.constant 1.000000e+00 : f32
    %662 = vector.broadcast %cst_166 : f32 to vector<2x1xf32>
    %663 = arith.divf %662, %661 : vector<2x1xf32>
    %664 = tpu.concatenate %663, %663, %663, %663, %663, %663, %663, %663 in 0 : vector<2x1xf32>, vector<2x1xf32>, vector<2x1xf32>, vector<2x1xf32>, vector<2x1xf32>, vector<2x1xf32>, vector<2x1xf32>, vector<2x1xf32> -> vector<16x1xf32>
    %665 = vector.broadcast %664 : vector<16x1xf32> to vector<16x128xf32>
    %666 = arith.mulf %640, %665 : vector<16x128xf32>
    %c0_167 = arith.constant 0 : index
    %c0_168 = arith.constant 0 : index
    %667 = vector.load %arg13[%c0_167, %c0_168] : memref<128x1024xf32, #tpu.memory_space<vmem>>, vector<128x1024xf32>
    %cst_169 = arith.constant dense<0.000000e+00> : vector<16x1024xf32>
    %668 = tpu.matmul %666, %667, %cst_169 {dimension_numbers = #tpu.dot_dimension_numbers<[1], [0], [0], [1], [0, 0, 1, 1], [], []>} : vector<16x128xf32>, vector<128x1024xf32>, vector<16x1024xf32> -> vector<16x1024xf32>
    %c0_170 = arith.constant 0 : index
    %c0_171 = arith.constant 0 : index
    %669 = vector.load %arg14[%c0_170, %c0_171] : memref<1x1024xf32, #tpu.memory_space<vmem>>, vector<1x1024xf32>
    %670 = vector.broadcast %669 : vector<1x1024xf32> to vector<16x1024xf32>
    %671 = arith.addf %668, %670 : vector<16x1024xf32>
    %cst_172 = arith.constant 0.000000e+00 : f32
    %672 = vector.broadcast %cst_172 : f32 to vector<16x1024xf32>
    %673 = arith.maximumf %671, %672 : vector<16x1024xf32>
    %c0_173 = arith.constant 0 : index
    %c0_174 = arith.constant 0 : index
    %674 = vector.load %arg15[%c0_173, %c0_174] : memref<1024x128xf32, #tpu.memory_space<vmem>>, vector<1024x128xf32>
    %cst_175 = arith.constant dense<0.000000e+00> : vector<16x128xf32>
    %675 = tpu.matmul %673, %674, %cst_175 {dimension_numbers = #tpu.dot_dimension_numbers<[1], [0], [0], [1], [0, 0, 1, 1], [], []>} : vector<16x1024xf32>, vector<1024x128xf32>, vector<16x128xf32> -> vector<16x128xf32>
    %c0_176 = arith.constant 0 : index
    %c0_177 = arith.constant 0 : index
    %676 = vector.load %arg16[%c0_176, %c0_177] : memref<1x128xf32, #tpu.memory_space<vmem>>, vector<1x128xf32>
    %677 = vector.broadcast %676 : vector<1x128xf32> to vector<16x128xf32>
    %678 = arith.addf %675, %677 : vector<16x128xf32>
    %cst_178 = arith.constant 0.000000e+00 : f32
    %679 = vector.broadcast %cst_178 : f32 to vector<16x128xf32>
    %680 = arith.maximumf %678, %679 : vector<16x128xf32>
    %c0_179 = arith.constant 0 : index
    %c0_180 = arith.constant 0 : index
    %681 = vector.load %arg17[%c0_179, %c0_180] : memref<128x512xf32, #tpu.memory_space<vmem>>, vector<128x512xf32>
    %cst_181 = arith.constant dense<0.000000e+00> : vector<16x512xf32>
    %682 = tpu.matmul %680, %681, %cst_181 {dimension_numbers = #tpu.dot_dimension_numbers<[1], [0], [0], [1], [0, 0, 1, 1], [], []>} : vector<16x128xf32>, vector<128x512xf32>, vector<16x512xf32> -> vector<16x512xf32>
    %c0_182 = arith.constant 0 : index
    %c0_183 = arith.constant 0 : index
    %683 = vector.load %arg18[%c0_182, %c0_183] : memref<1x512xf32, #tpu.memory_space<vmem>>, vector<1x512xf32>
    %684 = vector.broadcast %683 : vector<1x512xf32> to vector<16x512xf32>
    %685 = arith.addf %682, %684 : vector<16x512xf32>
    %cst_184 = arith.constant 0.000000e+00 : f32
    %686 = vector.broadcast %cst_184 : f32 to vector<16x512xf32>
    %687 = arith.maximumf %685, %686 : vector<16x512xf32>
    %c0_185 = arith.constant 0 : index
    %c0_186 = arith.constant 0 : index
    %688 = vector.load %arg19[%c0_185, %c0_186] : memref<512x128xf32, #tpu.memory_space<vmem>>, vector<512x128xf32>
    %cst_187 = arith.constant dense<0.000000e+00> : vector<16x128xf32>
    %689 = tpu.matmul %687, %688, %cst_187 {dimension_numbers = #tpu.dot_dimension_numbers<[1], [0], [0], [1], [0, 0, 1, 1], [], []>} : vector<16x512xf32>, vector<512x128xf32>, vector<16x128xf32> -> vector<16x128xf32>
    %c0_188 = arith.constant 0 : index
    %c0_189 = arith.constant 0 : index
    %690 = vector.load %arg20[%c0_188, %c0_189] : memref<1x128xf32, #tpu.memory_space<vmem>>, vector<1x128xf32>
    %691 = vector.broadcast %690 : vector<1x128xf32> to vector<16x128xf32>
    %692 = arith.addf %689, %691 : vector<16x128xf32>
    %cst_190 = arith.constant 0.000000e+00 : f32
    %693 = vector.broadcast %cst_190 : f32 to vector<16x128xf32>
    %694 = arith.maximumf %692, %693 : vector<16x128xf32>
    %c0_191 = arith.constant 0 : index
    %c0_192 = arith.constant 0 : index
    %695 = vector.load %arg21[%c0_191, %c0_192] : memref<128x128xf32, #tpu.memory_space<vmem>>, vector<128x128xf32>
    %cst_193 = arith.constant dense<0.000000e+00> : vector<16x128xf32>
    %696 = tpu.matmul %694, %695, %cst_193 {dimension_numbers = #tpu.dot_dimension_numbers<[1], [0], [0], [1], [0, 0, 1, 1], [], []>} : vector<16x128xf32>, vector<128x128xf32>, vector<16x128xf32> -> vector<16x128xf32>
    %c0_194 = arith.constant 0 : index
    %c0_195 = arith.constant 0 : index
    %697 = vector.load %arg22[%c0_194, %c0_195] : memref<1x128xf32, #tpu.memory_space<vmem>>, vector<1x128xf32>
    %698 = vector.broadcast %697 : vector<1x128xf32> to vector<16x128xf32>
    %699 = arith.addf %696, %698 : vector<16x128xf32>
    %cst_196 = arith.constant 0.000000e+00 : f32
    %700 = vector.broadcast %cst_196 : f32 to vector<16x128xf32>
    %701 = arith.maximumf %699, %700 : vector<16x128xf32>
    %c0_197 = arith.constant 0 : index
    %c0_198 = arith.constant 0 : index
    %702 = vector.load %arg23[%c0_197, %c0_198] : memref<128x128xf32, #tpu.memory_space<vmem>>, vector<128x128xf32>
    %cst_199 = arith.constant dense<0.000000e+00> : vector<16x128xf32>
    %703 = tpu.matmul %701, %702, %cst_199 {dimension_numbers = #tpu.dot_dimension_numbers<[1], [0], [0], [1], [0, 0, 1, 1], [], []>} : vector<16x128xf32>, vector<128x128xf32>, vector<16x128xf32> -> vector<16x128xf32>
    %c0_200 = arith.constant 0 : index
    %c0_201 = arith.constant 0 : index
    %704 = vector.load %arg24[%c0_200, %c0_201] : memref<1x128xf32, #tpu.memory_space<vmem>>, vector<1x128xf32>
    %705 = vector.broadcast %704 : vector<1x128xf32> to vector<16x128xf32>
    %706 = arith.addf %703, %705 : vector<16x128xf32>
    %c0_202 = arith.constant 0 : index
    %c0_203 = arith.constant 0 : index
    %707 = vector.load %arg25[%c0_202, %c0_203] : memref<16x128xf32, #tpu.memory_space<vmem>>, vector<16x128xf32>
    tpu.vector_store %arg25[%c0_202, %c0_203], %706 {strides = array<i32>} : memref<16x128xf32, #tpu.memory_space<vmem>>, vector<16x128xf32>,
    return
  }
}

</mosaic_0001>

<llo_original>
// kernel: squeeze.5
$region0: #{squeeze.5}
  %s0 = inlined_call_operand.vmem [shape: f32[16], index: 0, kind: input, shape index: {}]
  %s1 = inlined_call_operand.vmem [shape: f32[8,2], index: 1, kind: output, shape index: {}]
  $region1: #{squeeze.5} parent=0
    #allocation0 [shape = 'u8[4096]{0}', space=vmem, size = 0x1000, scoped, tag = 'scoped mem for input reshape']
    %s3 = ssub.s32 2, 1
    %v4 = vld [vmem:[%s0] sm:%s3]
    %5 = vst [vmem:[#allocation0] sm:%s3] %v4
    %v6 = vld [vmem:[#allocation0] sm:$0x1]
    %vm7 = vcmask 15360
    %8 = vst.msk [vmem:[%s1] sm:$0x1] %vm7, %v6
    %v9 = vld [vmem:[#allocation0] sm:$0x1]
    %10 = vrot.lane.b32.xlu0 %v9, 126
    %v11 = vpop.permute.xlu0 %10
    %vm12 = vcmask 15360
    %s13 = scalar_lea.vmem %s1, 1
    %14 = vst.msk [vmem:[%s13] sm:$0x1] %vm12, %v11
    %v15 = vld [vmem:[#allocation0] sm:$0x1]
    %16 = vrot.lane.b32.xlu0 %v15, 124
    %v17 = vpop.permute.xlu0 %16
    %vm18 = vcmask 15360
    %s19 = scalar_lea.vmem %s1, 2
    %20 = vst.msk [vmem:[%s19] sm:$0x1] %vm18, %v17
    %v21 = vld [vmem:[#allocation0] sm:$0x1]
    %22 = vrot.lane.b32.xlu0 %v21, 122
    %v23 = vpop.permute.xlu0 %22
    %vm24 = vcmask 15360
    %s25 = scalar_lea.vmem %s1, 3
    %26 = vst.msk [vmem:[%s25] sm:$0x1] %vm24, %v23
    %v27 = vld [vmem:[#allocation0] sm:$0x1]
    %28 = vrot.lane.b32.xlu0 %v27, 120
    %v29 = vpop.permute.xlu0 %28
    %vm30 = vcmask 15360
    %s31 = scalar_lea.vmem %s1, 4
    %32 = vst.msk [vmem:[%s31] sm:$0x1] %vm30, %v29
    %v33 = vld [vmem:[#allocation0] sm:$0x1]
    %34 = vrot.lane.b32.xlu0 %v33, 118
    %v35 = vpop.permute.xlu0 %34
    %vm36 = vcmask 15360
    %s37 = scalar_lea.vmem %s1, 5
    %38 = vst.msk [vmem:[%s37] sm:$0x1] %vm36, %v35
    %v39 = vld [vmem:[#allocation0] sm:$0x1]
    %40 = vrot.lane.b32.xlu0 %v39, 116
    %v41 = vpop.permute.xlu0 %40
    %vm42 = vcmask 15360
    %s43 = scalar_lea.vmem %s1, 6
    %44 = vst.msk [vmem:[%s43] sm:$0x1] %vm42, %v41
    %v45 = vld [vmem:[#allocation0] sm:$0x1]
    %46 = vrot.lane.b32.xlu0 %v45, 114
    %v47 = vpop.permute.xlu0 %46
    %vm48 = vcmask 15360
    %s49 = scalar_lea.vmem %s1, 7
    %50 = vst.msk [vmem:[%s49] sm:$0x1] %vm48, %v47

// kernel: parser_forward.1
$region0: #{parser_forward.1}
  #allocation0 [shape = 'u32[]', space=smem, size = 0x4, offset = 0x4, fixed_abs, tag = 'smem constant byte address 0x4 - core index']
  #allocation1 [shape = 'u32[72,128]{1,0:T(1,128)}', space=vmem, size = 0x9000, scoped, tag = 'internal scratch']
  #allocation2 [shape = 'f32[16,256]{1,0:T(8,128)}', space=vmem, size = 0x4000, scoped, tag = 'scratch operand']
  %s0 = inlined_call_operand.vmem [shape: f32[16,128], index: 0, kind: input, shape index: {}]
  %s1 = inlined_call_operand.vmem [shape: f32[128,256], index: 1, kind: input, shape index: {}]
  %s2 = inlined_call_operand.vmem [shape: f32[32,128], index: 2, kind: input, shape index: {}]
  %s3 = inlined_call_operand.vmem [shape: f32[32,128], index: 3, kind: input, shape index: {}]
  %s4 = inlined_call_operand.vmem [shape: f32[1,256], index: 4, kind: input, shape index: {}]
  %s5 = inlined_call_operand.vmem [shape: f32[128,128], index: 5, kind: input, shape index: {}]
  %s6 = inlined_call_operand.vmem [shape: f32[1,128], index: 6, kind: input, shape index: {}]
  %s7 = inlined_call_operand.hbm [shape: f32[128,256], index: 7, kind: input, shape index: {}]
  %s8 = inlined_call_operand.vmem [shape: f32[32,128], index: 8, kind: input, shape index: {}]
  %s9 = inlined_call_operand.vmem [shape: f32[32,128], index: 9, kind: input, shape index: {}]
  %s10 = inlined_call_operand.vmem [shape: f32[1,256], index: 10, kind: input, shape index: {}]
  %s11 = inlined_call_operand.vmem [shape: f32[128,128], index: 11, kind: input, shape index: {}]
  %s12 = inlined_call_operand.vmem [shape: f32[1,128], index: 12, kind: input, shape index: {}]
  %s13 = inlined_call_operand.hbm [shape: f32[128,1024], index: 13, kind: input, shape index: {}]
  %s14 = inlined_call_operand.vmem [shape: f32[1,1024], index: 14, kind: input, shape index: {}]
  %s15 = inlined_call_operand.hbm [shape: f32[1024,128], index: 15, kind: input, shape index: {}]
  %s16 = inlined_call_operand.vmem [shape: f32[1,128], index: 16, kind: input, shape index: {}]
  %s17 = inlined_call_operand.vmem [shape: f32[128,512], index: 17, kind: input, shape index: {}]
  %s18 = inlined_call_operand.vmem [shape: f32[1,512], index: 18, kind: input, shape index: {}]
  %s19 = inlined_call_operand.hbm [shape: f32[512,128], index: 19, kind: input, shape index: {}]
  %s20 = inlined_call_operand.vmem [shape: f32[1,128], index: 20, kind: input, shape index: {}]
  %s21 = inlined_call_operand.vmem [shape: f32[128,128], index: 21, kind: input, shape index: {}]
  %s22 = inlined_call_operand.vmem [shape: f32[1,128], index: 22, kind: input, shape index: {}]
  %s23 = inlined_call_operand.vmem [shape: f32[128,128], index: 23, kind: input, shape index: {}]
  %s24 = inlined_call_operand.vmem [shape: f32[1,128], index: 24, kind: input, shape index: {}]
  %s25 = inlined_call_operand.vmem [shape: f32[16,128], index: 25, kind: output, shape index: {}]
  %s26 = sld [smem:[#allocation0]]
  $region126: #{parser_forward.1} parent=0
    _
  %s28 = ssub.s32 1, %s26
  %s29 = scalar_select 0, %s28, %s26
  $region1: #{parser_forward.1} parent=0
    #allocation3 [shape = 'u8[131072]{0}', space=vmem, size = 0x20000, scoped, tag = 'input window, operand 7, single buffered']
    #allocation4 [shape = 's32[1]{0}', space=sflag, size = 0x4, scoped, tag = 'scoped memory for parser_forward.1']
    #allocation5 [shape = 'u8[524288]{0}', space=vmem, size = 0x80000, scoped, tag = 'input window, operand 13, single buffered']
    #allocation6 [shape = 's32[1]{0}', space=sflag, size = 0x4, scoped, tag = 'scoped memory for parser_forward.1']
    #allocation7 [shape = 'u8[524288]{0}', space=vmem, size = 0x80000, scoped, tag = 'input window, operand 15, single buffered']
    #allocation8 [shape = 'u8[262144]{0}', space=vmem, size = 0x40000, scoped, tag = 'input window, operand 19, single buffered']
    #allocation9 [shape = 's32[1]{0}', space=sflag, size = 0x4, scoped, tag = 'scoped memory for parser_forward.1']
    %30 = vsyncpa [#allocation4], 0
    %31 = vsyncpa [#allocation6], 0
    %32 = vsyncpa [#allocation9], 0
    // Predicated region
    $region2: #{parser_forward.1} parent=1 // pred_check
      _
    $region3: #{parser_forward.1} parent=1 // pred_check_branch
      %34 = sbr.rel (0) target = $region5
    $region4: #{parser_forward.1} parent=1 // pred_region
      _
    $region5: #{parser_forward.1} parent=1 // pred_fallthru
      _
    // Predicated region
    $region6: #{parser_forward.1} parent=1 // pred_check
      _
    $region7: #{parser_forward.1} parent=1 // pred_check_branch
      %36 = sbr.rel (0) target = $region9
    $region8: #{parser_forward.1} parent=1 // pred_region
      _
    $region9: #{parser_forward.1} parent=1 // pred_fallthru
      _
    // Predicated region
    $region10: #{parser_forward.1} parent=1 // pred_check
      _
    $region11: #{parser_forward.1} parent=1 // pred_check_branch
      %38 = sbr.rel (0) target = $region13
    $region12: #{parser_forward.1} parent=1 // pred_region
      _
    $region13: #{parser_forward.1} parent=1 // pred_fallthru
      _
    // Predicated region
    $region14: #{parser_forward.1} parent=1 // pred_check
      _
    $region15: #{parser_forward.1} parent=1 // pred_check_branch
      %40 = sbr.rel (0) target = $region17
    $region16: #{parser_forward.1} parent=1 // pred_region
      _
    $region17: #{parser_forward.1} parent=1 // pred_fallthru
      _
    // Predicated region
    $region18: #{parser_forward.1} parent=1 // pred_check
      _
    $region19: #{parser_forward.1} parent=1 // pred_check_branch
      %42 = sbr.rel (0) target = $region21
    $region20: #{parser_forward.1} parent=1 // pred_region
      _
    $region21: #{parser_forward.1} parent=1 // pred_fallthru
      _
    // Predicated region
    $region22: #{parser_forward.1} parent=1 // pred_check
      _
    $region23: #{parser_forward.1} parent=1 // pred_check_branch
      %44 = sbr.rel (0) target = $region25
    $region24: #{parser_forward.1} parent=1 // pred_region
      _
    $region25: #{parser_forward.1} parent=1 // pred_fallthru
      _
    // Predicated region
    $region26: #{parser_forward.1} parent=1 // pred_check
      _
    $region27: #{parser_forward.1} parent=1 // pred_check_branch
      %46 = sbr.rel (0) target = $region29
    $region28: #{parser_forward.1} parent=1 // pred_region
      _
    $region29: #{parser_forward.1} parent=1 // pred_fallthru
      _
    // Predicated region
    $region30: #{parser_forward.1} parent=1 // pred_check
      _
    $region31: #{parser_forward.1} parent=1 // pred_check_branch
      %48 = sbr.rel (0) target = $region33
    $region32: #{parser_forward.1} parent=1 // pred_region
      %50 = vsyncadd [#allocation4], 0
      %s51 = sshll.u32 %s7, 4
      %s52 = int_to_ptr.hbm [resolvable:$true] %s51
      %s53 = sshll.u32 [#allocation3], 4
      %s54 = int_to_ptr.vmem [resolvable:$true] %s53
      %59 = dma.hbm_to_vmem [thread:$0]  %s52, 4096, %s54, [#allocation4], 256, 256, 16
    $region33: #{parser_forward.1} parent=1 // pred_fallthru
      _
    // Predicated region
    $region34: #{parser_forward.1} parent=1 // pred_check
      _
    $region35: #{parser_forward.1} parent=1 // pred_check_branch
      %61 = sbr.rel (0) target = $region37
    $region36: #{parser_forward.1} parent=1 // pred_region
      _
    $region37: #{parser_forward.1} parent=1 // pred_fallthru
      _
    // Predicated region
    $region38: #{parser_forward.1} parent=1 // pred_check
      _
    $region39: #{parser_forward.1} parent=1 // pred_check_branch
      %63 = sbr.rel (0) target = $region41
    $region40: #{parser_forward.1} parent=1 // pred_region
      _
    $region41: #{parser_forward.1} parent=1 // pred_fallthru
      _
    // Predicated region
    $region42: #{parser_forward.1} parent=1 // pred_check
      _
    $region43: #{parser_forward.1} parent=1 // pred_check_branch
      %65 = sbr.rel (0) target = $region45
    $region44: #{parser_forward.1} parent=1 // pred_region
      _
    $region45: #{parser_forward.1} parent=1 // pred_fallthru
      _
    // Predicated region
    $region46: #{parser_forward.1} parent=1 // pred_check
      _
    $region47: #{parser_forward.1} parent=1 // pred_check_branch
      %67 = sbr.rel (0) target = $region49
    $region48: #{parser_forward.1} parent=1 // pred_region
      _
    $region49: #{parser_forward.1} parent=1 // pred_fallthru
      _
    // Predicated region
    $region50: #{parser_forward.1} parent=1 // pred_check
      _
    $region51: #{parser_forward.1} parent=1 // pred_check_branch
      %69 = sbr.rel (0) target = $region53
    $region52: #{parser_forward.1} parent=1 // pred_region
      _
    $region53: #{parser_forward.1} parent=1 // pred_fallthru
      _
    // Predicated region
    $region54: #{parser_forward.1} parent=1 // pred_check
      _
    $region55: #{parser_forward.1} parent=1 // pred_check_branch
      %71 = sbr.rel (0) target = $region57
    $region56: #{parser_forward.1} parent=1 // pred_region
      %73 = vsyncadd [#allocation6], 0
      %s74 = sshll.u32 %s13, 4
      %s75 = int_to_ptr.hbm [resolvable:$true] %s74
      %s76 = sshll.u32 [#allocation5], 4
      %s77 = int_to_ptr.vmem [resolvable:$true] %s76
      %82 = dma.hbm_to_vmem [thread:$0]  %s75, 16384, %s77, [#allocation6], 1024, 1024, 64
    $region57: #{parser_forward.1} parent=1 // pred_fallthru
      _
    // Predicated region
    $region58: #{parser_forward.1} parent=1 // pred_check
      _
    $region59: #{parser_forward.1} parent=1 // pred_check_branch
      %84 = sbr.rel (0) target = $region61
    $region60: #{parser_forward.1} parent=1 // pred_region
      _
    $region61: #{parser_forward.1} parent=1 // pred_fallthru
      _
    // Predicated region
    $region62: #{parser_forward.1} parent=1 // pred_check
      _
    $region63: #{parser_forward.1} parent=1 // pred_check_branch
      %86 = sbr.rel (0) target = $region65
    $region64: #{parser_forward.1} parent=1 // pred_region
      %88 = vsyncadd [#allocation6], 0
      %s89 = sshll.u32 %s15, 4
      %s90 = int_to_ptr.hbm [resolvable:$true] %s89
      %s91 = sshll.u32 [#allocation7], 4
      %s92 = int_to_ptr.vmem [resolvable:$true] %s91
      %97 = dma.hbm_to_vmem [thread:$0]  %s90, 16384, %s92, [#allocation6], 128, 128, 8
    $region65: #{parser_forward.1} parent=1 // pred_fallthru
      _
    // Predicated region
    $region66: #{parser_forward.1} parent=1 // pred_check
      _
    $region67: #{parser_forward.1} parent=1 // pred_check_branch
      %99 = sbr.rel (0) target = $region69
    $region68: #{parser_forward.1} parent=1 // pred_region
      _
    $region69: #{parser_forward.1} parent=1 // pred_fallthru
      _
    // Predicated region
    $region70: #{parser_forward.1} parent=1 // pred_check
      _
    $region71: #{parser_forward.1} parent=1 // pred_check_branch
      %101 = sbr.rel (0) target = $region73
    $region72: #{parser_forward.1} parent=1 // pred_region
      _
    $region73: #{parser_forward.1} parent=1 // pred_fallthru
      _
    // Predicated region
    $region74: #{parser_forward.1} parent=1 // pred_check
      _
    $region75: #{parser_forward.1} parent=1 // pred_check_branch
      %103 = sbr.rel (0) target = $region77
    $region76: #{parser_forward.1} parent=1 // pred_region
      _
    $region77: #{parser_forward.1} parent=1 // pred_fallthru
      _
    // Predicated region
    $region78: #{parser_forward.1} parent=1 // pred_check
      _
    $region79: #{parser_forward.1} parent=1 // pred_check_branch
      %105 = sbr.rel (0) target = $region81
    $region80: #{parser_forward.1} parent=1 // pred_region
      %107 = vsyncadd [#allocation9], 0
      %s108 = sshll.u32 %s19, 4
      %s109 = int_to_ptr.hbm [resolvable:$true] %s108
      %s110 = sshll.u32 [#allocation8], 4
      %s111 = int_to_ptr.vmem [resolvable:$true] %s110
      %116 = dma.hbm_to_vmem [thread:$0]  %s109, 8192, %s111, [#allocation9], 128, 128, 8
    $region81: #{parser_forward.1} parent=1 // pred_fallthru
      _
    // Predicated region
    $region82: #{parser_forward.1} parent=1 // pred_check
      _
    $region83: #{parser_forward.1} parent=1 // pred_check_branch
      %118 = sbr.rel (0) target = $region85
    $region84: #{parser_forward.1} parent=1 // pred_region
      _
    $region85: #{parser_forward.1} parent=1 // pred_fallthru
      _
    // Predicated region
    $region86: #{parser_forward.1} parent=1 // pred_check
      _
    $region87: #{parser_forward.1} parent=1 // pred_check_branch
      %120 = sbr.rel (0) target = $region89
    $region88: #{parser_forward.1} parent=1 // pred_region
      _
    $region89: #{parser_forward.1} parent=1 // pred_fallthru
      _
    // Predicated region
    $region90: #{parser_forward.1} parent=1 // pred_check
      _
    $region91: #{parser_forward.1} parent=1 // pred_check_branch
      %122 = sbr.rel (0) target = $region93
    $region92: #{parser_forward.1} parent=1 // pred_region
      _
    $region93: #{parser_forward.1} parent=1 // pred_fallthru
      _
    // Predicated region
    $region94: #{parser_forward.1} parent=1 // pred_check
      _
    $region95: #{parser_forward.1} parent=1 // pred_check_branch
      %124 = sbr.rel (0) target = $region97
    $region96: #{parser_forward.1} parent=1 // pred_region
      _
    $region97: #{parser_forward.1} parent=1 // pred_fallthru
      _
    // Predicated region
    $region98: #{parser_forward.1} parent=1 // pred_check
      _
    $region99: #{parser_forward.1} parent=1 // pred_check_branch
      %126 = sbr.rel (0) target = $region101
    $region100: #{parser_forward.1} parent=1 // pred_region
      _
    $region101: #{parser_forward.1} parent=1 // pred_fallthru
      _
    // Predicated region
    $region102: #{parser_forward.1} parent=1 // pred_check
      _
    $region103: #{parser_forward.1} parent=1 // pred_check_branch
      %128 = sbr.rel (0) target = $region105
    $region104: #{parser_forward.1} parent=1 // pred_region
      %130 = dma.done [#allocation4], 4096
    $region105: #{parser_forward.1} parent=1 // pred_fallthru
      _
    // Predicated region
    $region106: #{parser_forward.1} parent=1 // pred_check
      _
    $region107: #{parser_forward.1} parent=1 // pred_check_branch
      %132 = sbr.rel (0) target = $region109
    $region108: #{parser_forward.1} parent=1 // pred_region
      %134 = dma.done [#allocation6], 16384
    $region109: #{parser_forward.1} parent=1 // pred_fallthru
      _
    // Predicated region
    $region110: #{parser_forward.1} parent=1 // pred_check
      _
    $region111: #{parser_forward.1} parent=1 // pred_check_branch
      %136 = sbr.rel (0) target = $region113
    $region112: #{parser_forward.1} parent=1 // pred_region
      %138 = dma.done [#allocation6], 16384
    $region113: #{parser_forward.1} parent=1 // pred_fallthru
      _
    // Predicated region
    $region114: #{parser_forward.1} parent=1 // pred_check
      _
    $region115: #{parser_forward.1} parent=1 // pred_check_branch
      %140 = sbr.rel (0) target = $region117
    $region116: #{parser_forward.1} parent=1 // pred_region
      %142 = dma.done [#allocation9], 8192
    $region117: #{parser_forward.1} parent=1 // pred_fallthru
      _
    %v143 = vld [vmem:[%s0] sm:$0xff]
    %v144 = vld [vmem:[%s0 + $0x8] sm:$0xff]
    %v145 = vld [vmem:[%s1] sm:$0xff]
    %v146 = vld [vmem:[%s1 + $0x8] sm:$0xff]
    %v147 = vld [vmem:[%s1 + $0x10] sm:$0xff]
    %v148 = vld [vmem:[%s1 + $0x18] sm:$0xff]
    %v149 = vld [vmem:[%s1 + $0x20] sm:$0xff]
    %v150 = vld [vmem:[%s1 + $0x28] sm:$0xff]
    %v151 = vld [vmem:[%s1 + $0x30] sm:$0xff]
    %v152 = vld [vmem:[%s1 + $0x38] sm:$0xff]
    %v153 = vld [vmem:[%s1 + $0x40] sm:$0xff]
    %v154 = vld [vmem:[%s1 + $0x48] sm:$0xff]
    %v155 = vld [vmem:[%s1 + $0x50] sm:$0xff]
    %v156 = vld [vmem:[%s1 + $0x58] sm:$0xff]
    %v157 = vld [vmem:[%s1 + $0x60] sm:$0xff]
    %v158 = vld [vmem:[%s1 + $0x68] sm:$0xff]
    %v159 = vld [vmem:[%s1 + $0x70] sm:$0xff]
    %v160 = vld [vmem:[%s1 + $0x78] sm:$0xff]
    %v161 = vld [vmem:[%s1 + $0x80] sm:$0xff]
    %v162 = vld [vmem:[%s1 + $0x88] sm:$0xff]
    %v163 = vld [vmem:[%s1 + $0x90] sm:$0xff]
    %v164 = vld [vmem:[%s1 + $0x98] sm:$0xff]
    %v165 = vld [vmem:[%s1 + $0xa0] sm:$0xff]
    %v166 = vld [vmem:[%s1 + $0xa8] sm:$0xff]
    %v167 = vld [vmem:[%s1 + $0xb0] sm:$0xff]
    %v168 = vld [vmem:[%s1 + $0xb8] sm:$0xff]
    %v169 = vld [vmem:[%s1 + $0xc0] sm:$0xff]
    %v170 = vld [vmem:[%s1 + $0xc8] sm:$0xff]
    %v171 = vld [vmem:[%s1 + $0xd0] sm:$0xff]
    %v172 = vld [vmem:[%s1 + $0xd8] sm:$0xff]
    %v173 = vld [vmem:[%s1 + $0xe0] sm:$0xff]
    %v174 = vld [vmem:[%s1 + $0xe8] sm:$0xff]
    %v175 = vld [vmem:[%s1 + $0xf0] sm:$0xff]
    %v176 = vld [vmem:[%s1 + $0xf8] sm:$0xff]
    %v177 = vld [vmem:[%s4] sm:$0x3]
    %v179 = vperm.slane %v177, 0
    %v180 = vperm.slane %v177, 1
    %183 = vmatpush.msra.mxu0 %v175
    %184 = vmatpush.msra.mxu0 %v173
    %185 = vmatpush.msra.mxu0 %v171
    %186 = vmatpush.msra.mxu0 %v169
    %187 = vmatpush.msra.mxu0 %v167
    %188 = vmatpush.msra.mxu0 %v165
    %189 = vmatpush.msra.mxu0 %v163
    %190 = vmatpush.msra.mxu0 %v161
    %191 = vmatpush.msra.mxu0 %v159
    %192 = vmatpush.msra.mxu0 %v157
    %193 = vmatpush.msra.mxu0 %v155
    %194 = vmatpush.msra.mxu0 %v153
    %195 = vmatpush.msra.mxu0 %v151
    %196 = vmatpush.msra.mxu0 %v149
    %197 = vmatpush.msra.mxu0 %v147
    %198 = vmatpush.msra.mxu0 %v145
    %199 = vmatmul.f32.gmra.mxu0 %v143
    %v200 = vpop.f32.mrf.mxu0
    %v201 = vadd.f32 %v179, %v200
    %202 = vmatmul.f32.gmra.mxu0 %v144
    %v203 = vpop.f32.mrf.mxu0
    %v204 = vadd.f32 %v179, %v203
    %205 = vdwg.mxu0
    %206 = vmatpush.msra.mxu0 %v176
    %207 = vmatpush.msra.mxu0 %v174
    %208 = vmatpush.msra.mxu0 %v172
    %209 = vmatpush.msra.mxu0 %v170
    %210 = vmatpush.msra.mxu0 %v168
    %211 = vmatpush.msra.mxu0 %v166
    %212 = vmatpush.msra.mxu0 %v164
    %213 = vmatpush.msra.mxu0 %v162
    %214 = vmatpush.msra.mxu0 %v160
    %215 = vmatpush.msra.mxu0 %v158
    %216 = vmatpush.msra.mxu0 %v156
    %217 = vmatpush.msra.mxu0 %v154
    %218 = vmatpush.msra.mxu0 %v152
    %219 = vmatpush.msra.mxu0 %v150
    %220 = vmatpush.msra.mxu0 %v148
    %221 = vmatpush.msra.mxu0 %v146
    %222 = vmatmul.f32.gmra.mxu0 %v143
    %v223 = vpop.f32.mrf.mxu0
    %v224 = vadd.f32 %v180, %v223
    %225 = vmatmul.f32.gmra.mxu0 %v144
    %v226 = vpop.f32.mrf.mxu0
    %v227 = vadd.f32 %v180, %v226
    %228 = vdwg.mxu0
    %229 = vst [vmem:[#allocation2] sm:$0xff] %v201
    %230 = vst [vmem:[#allocation2 + $0x8] sm:$0xff] %v224
    %231 = vst [vmem:[#allocation2 + $0x10] sm:$0xff] %v204
    %232 = vst [vmem:[#allocation2 + $0x18] sm:$0xff] %v227
    %v233 = vld [vmem:[%s5] sm:$0xff]
    %v234 = vld [vmem:[%s5 + $0x8] sm:$0xff]
    %v235 = vld [vmem:[%s5 + $0x10] sm:$0xff]
    %v236 = vld [vmem:[%s5 + $0x18] sm:$0xff]
    %v237 = vld [vmem:[%s5 + $0x20] sm:$0xff]
    %v238 = vld [vmem:[%s5 + $0x28] sm:$0xff]
    %v239 = vld [vmem:[%s5 + $0x30] sm:$0xff]
    %v240 = vld [vmem:[%s5 + $0x38] sm:$0xff]
    %v241 = vld [vmem:[%s5 + $0x40] sm:$0xff]
    %v242 = vld [vmem:[%s5 + $0x48] sm:$0xff]
    %v243 = vld [vmem:[%s5 + $0x50] sm:$0xff]
    %v244 = vld [vmem:[%s5 + $0x58] sm:$0xff]
    %v245 = vld [vmem:[%s5 + $0x60] sm:$0xff]
    %v246 = vld [vmem:[%s5 + $0x68] sm:$0xff]
    %v247 = vld [vmem:[%s5 + $0x70] sm:$0xff]
    %v248 = vld [vmem:[%s5 + $0x78] sm:$0xff]
    %v249 = vld [vmem:[%s6] sm:$0x1]
    %v251 = vperm.slane %v249, 0
    %253 = vmatpush.msra.mxu0 %v248
    %254 = vmatpush.msra.mxu0 %v247
    %255 = vmatpush.msra.mxu0 %v246
    %256 = vmatpush.msra.mxu0 %v245
    %257 = vmatpush.msra.mxu0 %v244
    %258 = vmatpush.msra.mxu0 %v243
    %259 = vmatpush.msra.mxu0 %v242
    %260 = vmatpush.msra.mxu0 %v241
    %261 = vmatpush.msra.mxu0 %v240
    %262 = vmatpush.msra.mxu0 %v239
    %263 = vmatpush.msra.mxu0 %v238
    %264 = vmatpush.msra.mxu0 %v237
    %265 = vmatpush.msra.mxu0 %v236
    %266 = vmatpush.msra.mxu0 %v235
    %267 = vmatpush.msra.mxu0 %v234
    %268 = vmatpush.msra.mxu0 %v233
    %269 = vmatmul.f32.gmra.mxu0 %v143
    %v270 = vpop.f32.mrf.mxu0
    %v271 = vadd.f32 %v251, %v270
    %272 = vmatmul.f32.gmra.mxu0 %v144
    %v273 = vpop.f32.mrf.mxu0
    %v274 = vadd.f32 %v251, %v273
    %275 = vdwg.mxu0
    %v276 = vxor.u32 %v271, 2147483648
    %v277 = vxor.u32 %v274, 2147483648
    %v278 = vmul.f32 %v276, 1.442695
    %v279 = vpow.pop %v278
    %v280 = vmul.f32 %v277, 1.442695
    %v281 = vpow.pop %v280
    %v282 = vadd.f32 %v279, 1.0
    %v283 = vadd.f32 %v281, 1.0
    %v284 = vrcp.pop %v282
    %v285 = vmul.f32 %v282, %v284
    %v286 = vsub.f32 1.0, %v285
    %v287 = vmul.f32 %v284, %v286
    %v288 = vadd.f32 %v284, %v287
    %vm289 = vweird.f32 %v282
    %vm290 = vweird.f32 %v284
    %vm291 = vmor %vm289, %vm290
    %v292 = vsel %vm291, %v284, %v288
    %v293 = vand.u32 2147483647, %v282
    %vm294 = vcmp.eq.f32.partialorder %v293, 8.507059e+37
    %v295 = vand.u32 %v282, 2147483648
    %v296 = vor.u32 1.1754944e-38, %v295
    %v297 = vsel %vm294, %v296, %v292
    %v298 = vmul.f32 1.0, %v297
    %v299 = vrcp.pop %v283
    %v300 = vmul.f32 %v283, %v299
    %v301 = vsub.f32 1.0, %v300
    %v302 = vmul.f32 %v299, %v301
    %v303 = vadd.f32 %v299, %v302
    %vm304 = vweird.f32 %v283
    %vm305 = vweird.f32 %v299
    %vm306 = vmor %vm304, %vm305
    %v307 = vsel %vm306, %v299, %v303
    %v308 = vand.u32 2147483647, %v283
    %vm309 = vcmp.eq.f32.partialorder %v308, 8.507059e+37
    %v310 = vand.u32 %v283, 2147483648
    %v311 = vor.u32 1.1754944e-38, %v310
    %v312 = vsel %vm309, %v311, %v307
    %v313 = vmul.f32 1.0, %v312
    %v314 = vtanh.pop %v271
    %v315 = vtanh.pop %v274
    %318 = vrot.lane.b32.xlu0 %v314, 64
    %v319 = vpop.permute.xlu0 %318
    %320 = vrot.lane.b32.xlu0 %v315, 64
    %v321 = vpop.permute.xlu0 %320
    %v324 = vmul.f32 %v298, %v319
    %v325 = vmul.f32 %v313, %v321
    %v326 = vld [vmem:[%s2] sm:$0xff]
    %v327 = vld [vmem:[%s2 + $0x8] sm:$0xff]
    %v328 = vld [vmem:[%s2 + $0x10] sm:$0xff]
    %v329 = vld [vmem:[%s2 + $0x18] sm:$0xff]
    %v330 = vld [vmem:[#allocation2] sm:$0x3]
    %vm331 = vcmask 261120
    %v333 = vsel %vm331, 0.0, 0
    %335 = vmatpush.msra.mxu0 0.0
    %336 = vmatpush.msra.mxu0 0.0
    %337 = vmatpush.msra.mxu0 0.0
    %338 = vmatpush.msra.mxu0 0.0
    %339 = vmatpush.msra.mxu0 0.0
    %340 = vmatpush.msra.mxu0 0.0
    %341 = vmatpush.msra.mxu0 0.0
    %342 = vmatpush.msra.mxu0 0.0
    %343 = vmatpush.msra.mxu0 0.0
    %344 = vmatpush.msra.mxu0 0.0
    %345 = vmatpush.msra.mxu0 0.0
    %346 = vmatpush.msra.mxu0 0.0
    %347 = vmatpush.msra.mxu0 %v329
    %348 = vmatpush.msra.mxu0 %v328
    %349 = vmatpush.msra.mxu0 %v327
    %350 = vmatpush.msra.mxu0 %v326
    %351 = vmatmul.f32.gmra.mxu0 %v333
    %v352 = vpop.f32.mrf.mxu0
    %v353 = vadd.f32 0.0, %v352
    %354 = vdwg.mxu0
    %v355 = vadd.f32 %v330, %v353
    %v356 = vxor.u32 %v355, 2147483648
    %v357 = vmul.f32 %v356, 1.442695
    %v358 = vpow.pop %v357
    %v359 = vadd.f32 %v358, 1.0
    %v360 = vrcp.pop %v359
    %v361 = vmul.f32 %v359, %v360
    %v362 = vsub.f32 1.0, %v361
    %v363 = vmul.f32 %v360, %v362
    %v364 = vadd.f32 %v360, %v363
    %vm365 = vweird.f32 %v359
    %vm366 = vweird.f32 %v360
    %vm367 = vmor %vm365, %vm366
    %v368 = vsel %vm367, %v360, %v364
    %v369 = vand.u32 2147483647, %v359
    %vm370 = vcmp.eq.f32.partialorder %v369, 8.507059e+37
    %v371 = vand.u32 %v359, 2147483648
    %v372 = vor.u32 1.1754944e-38, %v371
    %v373 = vsel %vm370, %v372, %v368
    %v374 = vmul.f32 1.0, %v373
    %v375 = vtanh.pop %v355
    %v376 = vmul.f32 %v374, 0.0
    %378 = vrot.lane.b32.xlu0 %v375, 64
    %v379 = vpop.permute.xlu0 %378
    %v381 = vmul.f32 %v374, %v379
    %383 = vrot.lane.b32.xlu0 %v381, 32
    %v384 = vpop.permute.xlu0 %383
    %v386 = vadd.f32 %v376, %v384
    %v387 = vtanh.pop %v386
    %389 = vrot.lane.b32.xlu0 %v387, 64
    %v390 = vpop.permute.xlu0 %389
    %v392 = vmul.f32 %v374, %v390
    %v393 = vld [vmem:[#allocation2] sm:$0xc]
    %395 = vrot.lane.b32.xlu0 %v392, 32
    %v396 = vpop.permute.xlu0 %395
    %v397 = vsel %vm331, %v396, 0
    %399 = vmatpush.msra.mxu0 0.0
    %400 = vmatpush.msra.mxu0 0.0
    %401 = vmatpush.msra.mxu0 0.0
    %402 = vmatpush.msra.mxu0 0.0
    %403 = vmatpush.msra.mxu0 0.0
    %404 = vmatpush.msra.mxu0 0.0
    %405 = vmatpush.msra.mxu0 0.0
    %406 = vmatpush.msra.mxu0 0.0
    %407 = vmatpush.msra.mxu0 0.0
    %408 = vmatpush.msra.mxu0 0.0
    %409 = vmatpush.msra.mxu0 0.0
    %410 = vmatpush.msra.mxu0 0.0
    %411 = vmatpush.msra.mxu0 %v329
    %412 = vmatpush.msra.mxu0 %v328
    %413 = vmatpush.msra.mxu0 %v327
    %414 = vmatpush.msra.mxu0 %v326
    %415 = vmatmul.f32.gmra.mxu0 %v397
    %v416 = vpop.f32.mrf.mxu0
    %v417 = vadd.f32 0.0, %v416
    %418 = vdwg.mxu0
    %v420 = vrot.slane %v417, 6
    %v422 = vadd.f32 %v393, %v420
    %v423 = vxor.u32 %v422, 2147483648
    %v424 = vmul.f32 %v423, 1.442695
    %v425 = vpow.pop %v424
    %v426 = vadd.f32 %v425, 1.0
    %v427 = vrcp.pop %v426
    %v428 = vmul.f32 %v426, %v427
    %v429 = vsub.f32 1.0, %v428
    %v430 = vmul.f32 %v427, %v429
    %v431 = vadd.f32 %v427, %v430
    %vm432 = vweird.f32 %v426
    %vm433 = vweird.f32 %v427
    %vm434 = vmor %vm432, %vm433
    %v435 = vsel %vm434, %v427, %v431
    %v436 = vand.u32 2147483647, %v426
    %vm437 = vcmp.eq.f32.partialorder %v436, 8.507059e+37
    %v438 = vand.u32 %v426, 2147483648
    %v439 = vor.u32 1.1754944e-38, %v438
    %v440 = vsel %vm437, %v439, %v435
    %v441 = vmul.f32 1.0, %v440
    %v442 = vtanh.pop %v422
    %v444 = vrot.slane %v386, 6
    %v446 = vmul.f32 %v441, %v444
    %448 = vrot.lane.b32.xlu0 %v442, 64
    %v449 = vpop.permute.xlu0 %448
    %v451 = vmul.f32 %v441, %v449
    %453 = vrot.lane.b32.xlu0 %v451, 32
    %v454 = vpop.permute.xlu0 %453
    %v456 = vadd.f32 %v446, %v454
    %v457 = vtanh.pop %v456
    %459 = vrot.lane.b32.xlu0 %v457, 64
    %v460 = vpop.permute.xlu0 %459
    %v462 = vmul.f32 %v441, %v460
    %v463 = vld [vmem:[#allocation2] sm:$0x30]
    %v465 = vrot.slane %v462, 2
    %466 = vrot.lane.b32.xlu0 %v465, 32
    %v467 = vpop.permute.xlu0 %466
    %v468 = vsel %vm331, %v467, 0
    %470 = vmatpush.msra.mxu0 0.0
    %471 = vmatpush.msra.mxu0 0.0
    %472 = vmatpush.msra.mxu0 0.0
    %473 = vmatpush.msra.mxu0 0.0
    %474 = vmatpush.msra.mxu0 0.0
    %475 = vmatpush.msra.mxu0 0.0
    %476 = vmatpush.msra.mxu0 0.0
    %477 = vmatpush.msra.mxu0 0.0
    %478 = vmatpush.msra.mxu0 0.0
    %479 = vmatpush.msra.mxu0 0.0
    %480 = vmatpush.msra.mxu0 0.0
    %481 = vmatpush.msra.mxu0 0.0
    %482 = vmatpush.msra.mxu0 %v329
    %483 = vmatpush.msra.mxu0 %v328
    %484 = vmatpush.msra.mxu0 %v327
    %485 = vmatpush.msra.mxu0 %v326
    %486 = vmatmul.f32.gmra.mxu0 %v468
    %v487 = vpop.f32.mrf.mxu0
    %v488 = vadd.f32 0.0, %v487
    %489 = vdwg.mxu0
    %v491 = vrot.slane %v488, 4
    %v493 = vadd.f32 %v463, %v491
    %v494 = vxor.u32 %v493, 2147483648
    %v495 = vmul.f32 %v494, 1.442695
    %v496 = vpow.pop %v495
    %v497 = vadd.f32 %v496, 1.0
    %v498 = vrcp.pop %v497
    %v499 = vmul.f32 %v497, %v498
    %v500 = vsub.f32 1.0, %v499
    %v501 = vmul.f32 %v498, %v500
    %v502 = vadd.f32 %v498, %v501
    %vm503 = vweird.f32 %v497
    %vm504 = vweird.f32 %v498
    %vm505 = vmor %vm503, %vm504
    %v506 = vsel %vm505, %v498, %v502
    %v507 = vand.u32 2147483647, %v497
    %vm508 = vcmp.eq.f32.partialorder %v507, 8.507059e+37
    %v509 = vand.u32 %v497, 2147483648
    %v510 = vor.u32 1.1754944e-38, %v509
    %v511 = vsel %vm508, %v510, %v506
    %v512 = vmul.f32 1.0, %v511
    %v513 = vtanh.pop %v493
    %v515 = vrot.slane %v456, 6
    %v517 = vmul.f32 %v512, %v515
    %519 = vrot.lane.b32.xlu0 %v513, 64
    %v520 = vpop.permute.xlu0 %519
    %v522 = vmul.f32 %v512, %v520
    %524 = vrot.lane.b32.xlu0 %v522, 32
    %v525 = vpop.permute.xlu0 %524
    %v527 = vadd.f32 %v517, %v525
    %v528 = vtanh.pop %v527
    %530 = vrot.lane.b32.xlu0 %v528, 64
    %v531 = vpop.permute.xlu0 %530
    %v533 = vmul.f32 %v512, %v531
    %v534 = vld [vmem:[#allocation2] sm:$0xc0]
    %v536 = vrot.slane %v533, 4
    %537 = vrot.lane.b32.xlu0 %v536, 32
    %v538 = vpop.permute.xlu0 %537
    %v539 = vsel %vm331, %v538, 0
    %541 = vmatpush.msra.mxu0 0.0
    %542 = vmatpush.msra.mxu0 0.0
    %543 = vmatpush.msra.mxu0 0.0
    %544 = vmatpush.msra.mxu0 0.0
    %545 = vmatpush.msra.mxu0 0.0
    %546 = vmatpush.msra.mxu0 0.0
    %547 = vmatpush.msra.mxu0 0.0
    %548 = vmatpush.msra.mxu0 0.0
    %549 = vmatpush.msra.mxu0 0.0
    %550 = vmatpush.msra.mxu0 0.0
    %551 = vmatpush.msra.mxu0 0.0
    %552 = vmatpush.msra.mxu0 0.0
    %553 = vmatpush.msra.mxu0 %v329
    %554 = vmatpush.msra.mxu0 %v328
    %555 = vmatpush.msra.mxu0 %v327
    %556 = vmatpush.msra.mxu0 %v326
    %557 = vmatmul.f32.gmra.mxu0 %v539
    %v558 = vpop.f32.mrf.mxu0
    %v559 = vadd.f32 0.0, %v558
    %560 = vdwg.mxu0
    %v562 = vrot.slane %v559, 2
    %v564 = vadd.f32 %v534, %v562
    %v565 = vxor.u32 %v564, 2147483648
    %v566 = vmul.f32 %v565, 1.442695
    %v567 = vpow.pop %v566
    %v568 = vadd.f32 %v567, 1.0
    %v569 = vrcp.pop %v568
    %v570 = vmul.f32 %v568, %v569
    %v571 = vsub.f32 1.0, %v570
    %v572 = vmul.f32 %v569, %v571
    %v573 = vadd.f32 %v569, %v572
    %vm574 = vweird.f32 %v568
    %vm575 = vweird.f32 %v569
    %vm576 = vmor %vm574, %vm575
    %v577 = vsel %vm576, %v569, %v573
    %v578 = vand.u32 2147483647, %v568
    %vm579 = vcmp.eq.f32.partialorder %v578, 8.507059e+37
    %v580 = vand.u32 %v568, 2147483648
    %v581 = vor.u32 1.1754944e-38, %v580
    %v582 = vsel %vm579, %v581, %v577
    %v583 = vmul.f32 1.0, %v582
    %v584 = vtanh.pop %v564
    %v586 = vrot.slane %v527, 6
    %v588 = vmul.f32 %v583, %v586
    %590 = vrot.lane.b32.xlu0 %v584, 64
    %v591 = vpop.permute.xlu0 %590
    %v593 = vmul.f32 %v583, %v591
    %595 = vrot.lane.b32.xlu0 %v593, 32
    %v596 = vpop.permute.xlu0 %595
    %v598 = vadd.f32 %v588, %v596
    %v599 = vtanh.pop %v598
    %601 = vrot.lane.b32.xlu0 %v599, 64
    %v602 = vpop.permute.xlu0 %601
    %v604 = vmul.f32 %v583, %v602
    %v605 = vld [vmem:[#allocation2 + $0x10] sm:$0x3]
    %v607 = vrot.slane %v604, 6
    %608 = vrot.lane.b32.xlu0 %v607, 32
    %v609 = vpop.permute.xlu0 %608
    %v610 = vsel %vm331, %v609, 0
    %612 = vmatpush.msra.mxu0 0.0
    %613 = vmatpush.msra.mxu0 0.0
    %614 = vmatpush.msra.mxu0 0.0
    %615 = vmatpush.msra.mxu0 0.0
    %616 = vmatpush.msra.mxu0 0.0
    %617 = vmatpush.msra.mxu0 0.0
    %618 = vmatpush.msra.mxu0 0.0
    %619 = vmatpush.msra.mxu0 0.0
    %620 = vmatpush.msra.mxu0 0.0
    %621 = vmatpush.msra.mxu0 0.0
    %622 = vmatpush.msra.mxu0 0.0
    %623 = vmatpush.msra.mxu0 0.0
    %624 = vmatpush.msra.mxu0 %v329
    %625 = vmatpush.msra.mxu0 %v328
    %626 = vmatpush.msra.mxu0 %v327
    %627 = vmatpush.msra.mxu0 %v326
    %628 = vmatmul.f32.gmra.mxu0 %v610
    %v629 = vpop.f32.mrf.mxu0
    %v630 = vadd.f32 0.0, %v629
    %631 = vdwg.mxu0
    %v632 = vadd.f32 %v605, %v630
    %v633 = vxor.u32 %v632, 2147483648
    %v634 = vmul.f32 %v633, 1.442695
    %v635 = vpow.pop %v634
    %v636 = vadd.f32 %v635, 1.0
    %v637 = vrcp.pop %v636
    %v638 = vmul.f32 %v636, %v637
    %v639 = vsub.f32 1.0, %v638
    %v640 = vmul.f32 %v637, %v639
    %v641 = vadd.f32 %v637, %v640
    %vm642 = vweird.f32 %v636
    %vm643 = vweird.f32 %v637
    %vm644 = vmor %vm642, %vm643
    %v645 = vsel %vm644, %v637, %v641
    %v646 = vand.u32 2147483647, %v636
    %vm647 = vcmp.eq.f32.partialorder %v646, 8.507059e+37
    %v648 = vand.u32 %v636, 2147483648
    %v649 = vor.u32 1.1754944e-38, %v648
    %v650 = vsel %vm647, %v649, %v645
    %v651 = vmul.f32 1.0, %v650
    %v652 = vtanh.pop %v632
    %v654 = vrot.slane %v598, 6
    %v656 = vmul.f32 %v651, %v654
    %658 = vrot.lane.b32.xlu0 %v652, 64
    %v659 = vpop.permute.xlu0 %658
    %v661 = vmul.f32 %v651, %v659
    %663 = vrot.lane.b32.xlu0 %v661, 32
    %v664 = vpop.permute.xlu0 %663
    %v666 = vadd.f32 %v656, %v664
    %v667 = vtanh.pop %v666
    %669 = vrot.lane.b32.xlu0 %v667, 64
    %v670 = vpop.permute.xlu0 %669
    %v672 = vmul.f32 %v651, %v670
    %v673 = vld [vmem:[#allocation2 + $0x10] sm:$0xc]
    %675 = vrot.lane.b32.xlu0 %v672, 32
    %v676 = vpop.permute.xlu0 %675
    %v677 = vsel %vm331, %v676, 0
    %679 = vmatpush.msra.mxu0 0.0
    %680 = vmatpush.msra.mxu0 0.0
    %681 = vmatpush.msra.mxu0 0.0
    %682 = vmatpush.msra.mxu0 0.0
    %683 = vmatpush.msra.mxu0 0.0
    %684 = vmatpush.msra.mxu0 0.0
    %685 = vmatpush.msra.mxu0 0.0
    %686 = vmatpush.msra.mxu0 0.0
    %687 = vmatpush.msra.mxu0 0.0
    %688 = vmatpush.msra.mxu0 0.0
    %689 = vmatpush.msra.mxu0 0.0
    %690 = vmatpush.msra.mxu0 0.0
    %691 = vmatpush.msra.mxu0 %v329
    %692 = vmatpush.msra.mxu0 %v328
    %693 = vmatpush.msra.mxu0 %v327
    %694 = vmatpush.msra.mxu0 %v326
    %695 = vmatmul.f32.gmra.mxu0 %v677
    %v696 = vpop.f32.mrf.mxu0
    %v697 = vadd.f32 0.0, %v696
    %698 = vdwg.mxu0
    %v700 = vrot.slane %v697, 6
    %v702 = vadd.f32 %v673, %v700
    %v703 = vxor.u32 %v702, 2147483648
    %v704 = vmul.f32 %v703, 1.442695
    %v705 = vpow.pop %v704
    %v706 = vadd.f32 %v705, 1.0
    %v707 = vrcp.pop %v706
    %v708 = vmul.f32 %v706, %v707
    %v709 = vsub.f32 1.0, %v708
    %v710 = vmul.f32 %v707, %v709
    %v711 = vadd.f32 %v707, %v710
    %vm712 = vweird.f32 %v706
    %vm713 = vweird.f32 %v707
    %vm714 = vmor %vm712, %vm713
    %v715 = vsel %vm714, %v707, %v711
    %v716 = vand.u32 2147483647, %v706
    %vm717 = vcmp.eq.f32.partialorder %v716, 8.507059e+37
    %v718 = vand.u32 %v706, 2147483648
    %v719 = vor.u32 1.1754944e-38, %v718
    %v720 = vsel %vm717, %v719, %v715
    %v721 = vmul.f32 1.0, %v720
    %v722 = vtanh.pop %v702
    %v724 = vrot.slane %v666, 6
    %v726 = vmul.f32 %v721, %v724
    %728 = vrot.lane.b32.xlu0 %v722, 64
    %v729 = vpop.permute.xlu0 %728
    %v731 = vmul.f32 %v721, %v729
    %733 = vrot.lane.b32.xlu0 %v731, 32
    %v734 = vpop.permute.xlu0 %733
    %v736 = vadd.f32 %v726, %v734
    %v737 = vtanh.pop %v736
    %739 = vrot.lane.b32.xlu0 %v737, 64
    %v740 = vpop.permute.xlu0 %739
    %v742 = vmul.f32 %v721, %v740
    %v743 = vld [vmem:[#allocation2 + $0x10] sm:$0x30]
    %v745 = vrot.slane %v742, 2
    %746 = vrot.lane.b32.xlu0 %v745, 32
    %v747 = vpop.permute.xlu0 %746
    %v748 = vsel %vm331, %v747, 0
    %750 = vmatpush.msra.mxu0 0.0
    %751 = vmatpush.msra.mxu0 0.0
    %752 = vmatpush.msra.mxu0 0.0
    %753 = vmatpush.msra.mxu0 0.0
    %754 = vmatpush.msra.mxu0 0.0
    %755 = vmatpush.msra.mxu0 0.0
    %756 = vmatpush.msra.mxu0 0.0
    %757 = vmatpush.msra.mxu0 0.0
    %758 = vmatpush.msra.mxu0 0.0
    %759 = vmatpush.msra.mxu0 0.0
    %760 = vmatpush.msra.mxu0 0.0
    %761 = vmatpush.msra.mxu0 0.0
    %762 = vmatpush.msra.mxu0 %v329
    %763 = vmatpush.msra.mxu0 %v328
    %764 = vmatpush.msra.mxu0 %v327
    %765 = vmatpush.msra.mxu0 %v326
    %766 = vmatmul.f32.gmra.mxu0 %v748
    %v767 = vpop.f32.mrf.mxu0
    %v768 = vadd.f32 0.0, %v767
    %769 = vdwg.mxu0
    %v771 = vrot.slane %v768, 4
    %v773 = vadd.f32 %v743, %v771
    %v774 = vxor.u32 %v773, 2147483648
    %v775 = vmul.f32 %v774, 1.442695
    %v776 = vpow.pop %v775
    %v777 = vadd.f32 %v776, 1.0
    %v778 = vrcp.pop %v777
    %v779 = vmul.f32 %v777, %v778
    %v780 = vsub.f32 1.0, %v779
    %v781 = vmul.f32 %v778, %v780
    %v782 = vadd.f32 %v778, %v781
    %vm783 = vweird.f32 %v777
    %vm784 = vweird.f32 %v778
    %vm785 = vmor %vm783, %vm784
    %v786 = vsel %vm785, %v778, %v782
    %v787 = vand.u32 2147483647, %v777
    %vm788 = vcmp.eq.f32.partialorder %v787, 8.507059e+37
    %v789 = vand.u32 %v777, 2147483648
    %v790 = vor.u32 1.1754944e-38, %v789
    %v791 = vsel %vm788, %v790, %v786
    %v792 = vmul.f32 1.0, %v791
    %v793 = vtanh.pop %v773
    %v795 = vrot.slane %v736, 6
    %v797 = vmul.f32 %v792, %v795
    %799 = vrot.lane.b32.xlu0 %v793, 64
    %v800 = vpop.permute.xlu0 %799
    %v802 = vmul.f32 %v792, %v800
    %804 = vrot.lane.b32.xlu0 %v802, 32
    %v805 = vpop.permute.xlu0 %804
    %v807 = vadd.f32 %v797, %v805
    %v808 = vtanh.pop %v807
    %810 = vrot.lane.b32.xlu0 %v808, 64
    %v811 = vpop.permute.xlu0 %810
    %v813 = vmul.f32 %v792, %v811
    %v814 = vld [vmem:[#allocation2 + $0x10] sm:$0xc0]
    %v816 = vrot.slane %v813, 4
    %817 = vrot.lane.b32.xlu0 %v816, 32
    %v818 = vpop.permute.xlu0 %817
    %v819 = vsel %vm331, %v818, 0
    %821 = vmatpush.msra.mxu0 0.0
    %822 = vmatpush.msra.mxu0 0.0
    %823 = vmatpush.msra.mxu0 0.0
    %824 = vmatpush.msra.mxu0 0.0
    %825 = vmatpush.msra.mxu0 0.0
    %826 = vmatpush.msra.mxu0 0.0
    %827 = vmatpush.msra.mxu0 0.0
    %828 = vmatpush.msra.mxu0 0.0
    %829 = vmatpush.msra.mxu0 0.0
    %830 = vmatpush.msra.mxu0 0.0
    %831 = vmatpush.msra.mxu0 0.0
    %832 = vmatpush.msra.mxu0 0.0
    %833 = vmatpush.msra.mxu0 %v329
    %834 = vmatpush.msra.mxu0 %v328
    %835 = vmatpush.msra.mxu0 %v327
    %836 = vmatpush.msra.mxu0 %v326
    %837 = vmatmul.f32.gmra.mxu0 %v819
    %v838 = vpop.f32.mrf.mxu0
    %v839 = vadd.f32 0.0, %v838
    %840 = vdwg.mxu0
    %v842 = vrot.slane %v839, 2
    %v844 = vadd.f32 %v814, %v842
    %v845 = vxor.u32 %v844, 2147483648
    %v846 = vmul.f32 %v845, 1.442695
    %v847 = vpow.pop %v846
    %v848 = vadd.f32 %v847, 1.0
    %v849 = vrcp.pop %v848
    %v850 = vmul.f32 %v848, %v849
    %v851 = vsub.f32 1.0, %v850
    %v852 = vmul.f32 %v849, %v851
    %v853 = vadd.f32 %v849, %v852
    %vm854 = vweird.f32 %v848
    %vm855 = vweird.f32 %v849
    %vm856 = vmor %vm854, %vm855
    %v857 = vsel %vm856, %v849, %v853
    %v858 = vand.u32 2147483647, %v848
    %vm859 = vcmp.eq.f32.partialorder %v858, 8.507059e+37
    %v860 = vand.u32 %v848, 2147483648
    %v861 = vor.u32 1.1754944e-38, %v860
    %v862 = vsel %vm859, %v861, %v857
    %v863 = vmul.f32 1.0, %v862
    %v864 = vtanh.pop %v844
    %v866 = vrot.slane %v807, 6
    %v868 = vmul.f32 %v863, %v866
    %870 = vrot.lane.b32.xlu0 %v864, 64
    %v871 = vpop.permute.xlu0 %870
    %v873 = vmul.f32 %v863, %v871
    %875 = vrot.lane.b32.xlu0 %v873, 32
    %v876 = vpop.permute.xlu0 %875
    %v878 = vadd.f32 %v868, %v876
    %v879 = vtanh.pop %v878
    %881 = vrot.lane.b32.xlu0 %v879, 64
    %v882 = vpop.permute.xlu0 %881
    %v884 = vmul.f32 %v863, %v882
    %vm885 = vcmask 1041408
    %v886 = vsel %vm885, %v392, %v462
    %vm887 = vcmask 1043456
    %v888 = vsel %vm887, %v886, %v533
    %vm889 = vcmask 1045504
    %v890 = vsel %vm889, %v888, %v604
    %v891 = vsel %vm885, %v672, %v742
    %v892 = vsel %vm887, %v891, %v813
    %v893 = vsel %vm889, %v892, %v884
    %v894 = vld [vmem:[%s3] sm:$0xff]
    %v895 = vld [vmem:[%s3 + $0x8] sm:$0xff]
    %v896 = vld [vmem:[%s3 + $0x10] sm:$0xff]
    %v897 = vld [vmem:[%s3 + $0x18] sm:$0xff]
    %v898 = vld [vmem:[#allocation2 + $0x18] sm:$0xc0]
    %899 = vmatpush.msra.mxu0 0.0
    %900 = vmatpush.msra.mxu0 0.0
    %901 = vmatpush.msra.mxu0 0.0
    %902 = vmatpush.msra.mxu0 0.0
    %903 = vmatpush.msra.mxu0 0.0
    %904 = vmatpush.msra.mxu0 0.0
    %905 = vmatpush.msra.mxu0 0.0
    %906 = vmatpush.msra.mxu0 0.0
    %907 = vmatpush.msra.mxu0 0.0
    %908 = vmatpush.msra.mxu0 0.0
    %909 = vmatpush.msra.mxu0 0.0
    %910 = vmatpush.msra.mxu0 0.0
    %911 = vmatpush.msra.mxu0 %v897
    %912 = vmatpush.msra.mxu0 %v896
    %913 = vmatpush.msra.mxu0 %v895
    %914 = vmatpush.msra.mxu0 %v894
    %915 = vmatmul.f32.gmra.mxu0 %v333
    %v916 = vpop.f32.mrf.mxu0
    %v917 = vadd.f32 0.0, %v916
    %918 = vdwg.mxu0
    %v920 = vrot.slane %v917, 2
    %v922 = vadd.f32 %v898, %v920
    %v923 = vxor.u32 %v922, 2147483648
    %v924 = vmul.f32 %v923, 1.442695
    %v925 = vpow.pop %v924
    %v926 = vadd.f32 %v925, 1.0
    %v927 = vrcp.pop %v926
    %v928 = vmul.f32 %v926, %v927
    %v929 = vsub.f32 1.0, %v928
    %v930 = vmul.f32 %v927, %v929
    %v931 = vadd.f32 %v927, %v930
    %vm932 = vweird.f32 %v926
    %vm933 = vweird.f32 %v927
    %vm934 = vmor %vm932, %vm933
    %v935 = vsel %vm934, %v927, %v931
    %v936 = vand.u32 2147483647, %v926
    %vm937 = vcmp.eq.f32.partialorder %v936, 8.507059e+37
    %v938 = vand.u32 %v926, 2147483648
    %v939 = vor.u32 1.1754944e-38, %v938
    %v940 = vsel %vm937, %v939, %v935
    %v941 = vmul.f32 1.0, %v940
    %v942 = vtanh.pop %v922
    %v943 = vmul.f32 %v941, 0.0
    %945 = vrot.lane.b32.xlu0 %v942, 64
    %v946 = vpop.permute.xlu0 %945
    %v948 = vmul.f32 %v941, %v946
    %950 = vrot.lane.b32.xlu0 %v948, 32
    %v951 = vpop.permute.xlu0 %950
    %v953 = vadd.f32 %v943, %v951
    %v954 = vtanh.pop %v953
    %956 = vrot.lane.b32.xlu0 %v954, 64
    %v957 = vpop.permute.xlu0 %956
    %v959 = vmul.f32 %v941, %v957
    %v960 = vld [vmem:[#allocation2 + $0x18] sm:$0x30]
    %v962 = vrot.slane %v959, 6
    %963 = vrot.lane.b32.xlu0 %v962, 32
    %v964 = vpop.permute.xlu0 %963
    %v965 = vsel %vm331, %v964, 0
    %967 = vmatpush.msra.mxu0 0.0
    %968 = vmatpush.msra.mxu0 0.0
    %969 = vmatpush.msra.mxu0 0.0
    %970 = vmatpush.msra.mxu0 0.0
    %971 = vmatpush.msra.mxu0 0.0
    %972 = vmatpush.msra.mxu0 0.0
    %973 = vmatpush.msra.mxu0 0.0
    %974 = vmatpush.msra.mxu0 0.0
    %975 = vmatpush.msra.mxu0 0.0
    %976 = vmatpush.msra.mxu0 0.0
    %977 = vmatpush.msra.mxu0 0.0
    %978 = vmatpush.msra.mxu0 0.0
    %979 = vmatpush.msra.mxu0 %v897
    %980 = vmatpush.msra.mxu0 %v896
    %981 = vmatpush.msra.mxu0 %v895
    %982 = vmatpush.msra.mxu0 %v894
    %983 = vmatmul.f32.gmra.mxu0 %v965
    %v984 = vpop.f32.mrf.mxu0
    %v985 = vadd.f32 0.0, %v984
    %986 = vdwg.mxu0
    %v988 = vrot.slane %v985, 4
    %v990 = vadd.f32 %v960, %v988
    %v991 = vxor.u32 %v990, 2147483648
    %v992 = vmul.f32 %v991, 1.442695
    %v993 = vpow.pop %v992
    %v994 = vadd.f32 %v993, 1.0
    %v995 = vrcp.pop %v994
    %v996 = vmul.f32 %v994, %v995
    %v997 = vsub.f32 1.0, %v996
    %v998 = vmul.f32 %v995, %v997
    %v999 = vadd.f32 %v995, %v998
    %vm1000 = vweird.f32 %v994
    %vm1001 = vweird.f32 %v995
    %vm1002 = vmor %vm1000, %vm1001
    %v1003 = vsel %vm1002, %v995, %v999
    %v1004 = vand.u32 2147483647, %v994
    %vm1005 = vcmp.eq.f32.partialorder %v1004, 8.507059e+37
    %v1006 = vand.u32 %v994, 2147483648
    %v1007 = vor.u32 1.1754944e-38, %v1006
    %v1008 = vsel %vm1005, %v1007, %v1003
    %v1009 = vmul.f32 1.0, %v1008
    %v1010 = vtanh.pop %v990
    %v1012 = vrot.slane %v953, 2
    %v1014 = vmul.f32 %v1009, %v1012
    %1016 = vrot.lane.b32.xlu0 %v1010, 64
    %v1017 = vpop.permute.xlu0 %1016
    %v1019 = vmul.f32 %v1009, %v1017
    %1021 = vrot.lane.b32.xlu0 %v1019, 32
    %v1022 = vpop.permute.xlu0 %1021
    %v1024 = vadd.f32 %v1014, %v1022
    %v1025 = vtanh.pop %v1024
    %1027 = vrot.lane.b32.xlu0 %v1025, 64
    %v1028 = vpop.permute.xlu0 %1027
    %v1030 = vmul.f32 %v1009, %v1028
    %v1031 = vld [vmem:[#allocation2 + $0x18] sm:$0xc]
    %v1033 = vrot.slane %v1030, 4
    %1034 = vrot.lane.b32.xlu0 %v1033, 32
    %v1035 = vpop.permute.xlu0 %1034
    %v1036 = vsel %vm331, %v1035, 0
    %1038 = vmatpush.msra.mxu0 0.0
    %1039 = vmatpush.msra.mxu0 0.0
    %1040 = vmatpush.msra.mxu0 0.0
    %1041 = vmatpush.msra.mxu0 0.0
    %1042 = vmatpush.msra.mxu0 0.0
    %1043 = vmatpush.msra.mxu0 0.0
    %1044 = vmatpush.msra.mxu0 0.0
    %1045 = vmatpush.msra.mxu0 0.0
    %1046 = vmatpush.msra.mxu0 0.0
    %1047 = vmatpush.msra.mxu0 0.0
    %1048 = vmatpush.msra.mxu0 0.0
    %1049 = vmatpush.msra.mxu0 0.0
    %1050 = vmatpush.msra.mxu0 %v897
    %1051 = vmatpush.msra.mxu0 %v896
    %1052 = vmatpush.msra.mxu0 %v895
    %1053 = vmatpush.msra.mxu0 %v894
    %1054 = vmatmul.f32.gmra.mxu0 %v1036
    %v1055 = vpop.f32.mrf.mxu0
    %v1056 = vadd.f32 0.0, %v1055
    %1057 = vdwg.mxu0
    %v1059 = vrot.slane %v1056, 6
    %v1061 = vadd.f32 %v1031, %v1059
    %v1062 = vxor.u32 %v1061, 2147483648
    %v1063 = vmul.f32 %v1062, 1.442695
    %v1064 = vpow.pop %v1063
    %v1065 = vadd.f32 %v1064, 1.0
    %v1066 = vrcp.pop %v1065
    %v1067 = vmul.f32 %v1065, %v1066
    %v1068 = vsub.f32 1.0, %v1067
    %v1069 = vmul.f32 %v1066, %v1068
    %v1070 = vadd.f32 %v1066, %v1069
    %vm1071 = vweird.f32 %v1065
    %vm1072 = vweird.f32 %v1066
    %vm1073 = vmor %vm1071, %vm1072
    %v1074 = vsel %vm1073, %v1066, %v1070
    %v1075 = vand.u32 2147483647, %v1065
    %vm1076 = vcmp.eq.f32.partialorder %v1075, 8.507059e+37
    %v1077 = vand.u32 %v1065, 2147483648
    %v1078 = vor.u32 1.1754944e-38, %v1077
    %v1079 = vsel %vm1076, %v1078, %v1074
    %v1080 = vmul.f32 1.0, %v1079
    %v1081 = vtanh.pop %v1061
    %v1083 = vrot.slane %v1024, 2
    %v1085 = vmul.f32 %v1080, %v1083
    %1087 = vrot.lane.b32.xlu0 %v1081, 64
    %v1088 = vpop.permute.xlu0 %1087
    %v1090 = vmul.f32 %v1080, %v1088
    %1092 = vrot.lane.b32.xlu0 %v1090, 32
    %v1093 = vpop.permute.xlu0 %1092
    %v1095 = vadd.f32 %v1085, %v1093
    %v1096 = vtanh.pop %v1095
    %1098 = vrot.lane.b32.xlu0 %v1096, 64
    %v1099 = vpop.permute.xlu0 %1098
    %v1101 = vmul.f32 %v1080, %v1099
    %v1102 = vld [vmem:[#allocation2 + $0x18] sm:$0x3]
    %v1104 = vrot.slane %v1101, 2
    %1105 = vrot.lane.b32.xlu0 %v1104, 32
    %v1106 = vpop.permute.xlu0 %1105
    %v1107 = vsel %vm331, %v1106, 0
    %1109 = vmatpush.msra.mxu0 0.0
    %1110 = vmatpush.msra.mxu0 0.0
    %1111 = vmatpush.msra.mxu0 0.0
    %1112 = vmatpush.msra.mxu0 0.0
    %1113 = vmatpush.msra.mxu0 0.0
    %1114 = vmatpush.msra.mxu0 0.0
    %1115 = vmatpush.msra.mxu0 0.0
    %1116 = vmatpush.msra.mxu0 0.0
    %1117 = vmatpush.msra.mxu0 0.0
    %1118 = vmatpush.msra.mxu0 0.0
    %1119 = vmatpush.msra.mxu0 0.0
    %1120 = vmatpush.msra.mxu0 0.0
    %1121 = vmatpush.msra.mxu0 %v897
    %1122 = vmatpush.msra.mxu0 %v896
    %1123 = vmatpush.msra.mxu0 %v895
    %1124 = vmatpush.msra.mxu0 %v894
    %1125 = vmatmul.f32.gmra.mxu0 %v1107
    %v1126 = vpop.f32.mrf.mxu0
    %v1127 = vadd.f32 0.0, %v1126
    %1128 = vdwg.mxu0
    %v1129 = vadd.f32 %v1102, %v1127
    %v1130 = vxor.u32 %v1129, 2147483648
    %v1131 = vmul.f32 %v1130, 1.442695
    %v1132 = vpow.pop %v1131
    %v1133 = vadd.f32 %v1132, 1.0
    %v1134 = vrcp.pop %v1133
    %v1135 = vmul.f32 %v1133, %v1134
    %v1136 = vsub.f32 1.0, %v1135
    %v1137 = vmul.f32 %v1134, %v1136
    %v1138 = vadd.f32 %v1134, %v1137
    %vm1139 = vweird.f32 %v1133
    %vm1140 = vweird.f32 %v1134
    %vm1141 = vmor %vm1139, %vm1140
    %v1142 = vsel %vm1141, %v1134, %v1138
    %v1143 = vand.u32 2147483647, %v1133
    %vm1144 = vcmp.eq.f32.partialorder %v1143, 8.507059e+37
    %v1145 = vand.u32 %v1133, 2147483648
    %v1146 = vor.u32 1.1754944e-38, %v1145
    %v1147 = vsel %vm1144, %v1146, %v1142
    %v1148 = vmul.f32 1.0, %v1147
    %v1149 = vtanh.pop %v1129
    %v1151 = vrot.slane %v1095, 2
    %v1153 = vmul.f32 %v1148, %v1151
    %1155 = vrot.lane.b32.xlu0 %v1149, 64
    %v1156 = vpop.permute.xlu0 %1155
    %v1158 = vmul.f32 %v1148, %v1156
    %1160 = vrot.lane.b32.xlu0 %v1158, 32
    %v1161 = vpop.permute.xlu0 %1160
    %v1163 = vadd.f32 %v1153, %v1161
    %v1164 = vtanh.pop %v1163
    %1166 = vrot.lane.b32.xlu0 %v1164, 64
    %v1167 = vpop.permute.xlu0 %1166
    %v1169 = vmul.f32 %v1148, %v1167
    %v1170 = vld [vmem:[#allocation2 + $0x8] sm:$0xc0]
    %1172 = vrot.lane.b32.xlu0 %v1169, 32
    %v1173 = vpop.permute.xlu0 %1172
    %v1174 = vsel %vm331, %v1173, 0
    %1176 = vmatpush.msra.mxu0 0.0
    %1177 = vmatpush.msra.mxu0 0.0
    %1178 = vmatpush.msra.mxu0 0.0
    %1179 = vmatpush.msra.mxu0 0.0
    %1180 = vmatpush.msra.mxu0 0.0
    %1181 = vmatpush.msra.mxu0 0.0
    %1182 = vmatpush.msra.mxu0 0.0
    %1183 = vmatpush.msra.mxu0 0.0
    %1184 = vmatpush.msra.mxu0 0.0
    %1185 = vmatpush.msra.mxu0 0.0
    %1186 = vmatpush.msra.mxu0 0.0
    %1187 = vmatpush.msra.mxu0 0.0
    %1188 = vmatpush.msra.mxu0 %v897
    %1189 = vmatpush.msra.mxu0 %v896
    %1190 = vmatpush.msra.mxu0 %v895
    %1191 = vmatpush.msra.mxu0 %v894
    %1192 = vmatmul.f32.gmra.mxu0 %v1174
    %v1193 = vpop.f32.mrf.mxu0
    %v1194 = vadd.f32 0.0, %v1193
    %1195 = vdwg.mxu0
    %v1197 = vrot.slane %v1194, 2
    %v1199 = vadd.f32 %v1170, %v1197
    %v1200 = vxor.u32 %v1199, 2147483648
    %v1201 = vmul.f32 %v1200, 1.442695
    %v1202 = vpow.pop %v1201
    %v1203 = vadd.f32 %v1202, 1.0
    %v1204 = vrcp.pop %v1203
    %v1205 = vmul.f32 %v1203, %v1204
    %v1206 = vsub.f32 1.0, %v1205
    %v1207 = vmul.f32 %v1204, %v1206
    %v1208 = vadd.f32 %v1204, %v1207
    %vm1209 = vweird.f32 %v1203
    %vm1210 = vweird.f32 %v1204
    %vm1211 = vmor %vm1209, %vm1210
    %v1212 = vsel %vm1211, %v1204, %v1208
    %v1213 = vand.u32 2147483647, %v1203
    %vm1214 = vcmp.eq.f32.partialorder %v1213, 8.507059e+37
    %v1215 = vand.u32 %v1203, 2147483648
    %v1216 = vor.u32 1.1754944e-38, %v1215
    %v1217 = vsel %vm1214, %v1216, %v1212
    %v1218 = vmul.f32 1.0, %v1217
    %v1219 = vtanh.pop %v1199
    %v1221 = vrot.slane %v1163, 2
    %v1223 = vmul.f32 %v1218, %v1221
    %1225 = vrot.lane.b32.xlu0 %v1219, 64
    %v1226 = vpop.permute.xlu0 %1225
    %v1228 = vmul.f32 %v1218, %v1226
    %1230 = vrot.lane.b32.xlu0 %v1228, 32
    %v1231 = vpop.permute.xlu0 %1230
    %v1233 = vadd.f32 %v1223, %v1231
    %v1234 = vtanh.pop %v1233
    %1236 = vrot.lane.b32.xlu0 %v1234, 64
    %v1237 = vpop.permute.xlu0 %1236
    %v1239 = vmul.f32 %v1218, %v1237
    %v1240 = vld [vmem:[#allocation2 + $0x8] sm:$0x30]
    %v1242 = vrot.slane %v1239, 6
    %1243 = vrot.lane.b32.xlu0 %v1242, 32
    %v1244 = vpop.permute.xlu0 %1243
    %v1245 = vsel %vm331, %v1244, 0
    %1247 = vmatpush.msra.mxu0 0.0
    %1248 = vmatpush.msra.mxu0 0.0
    %1249 = vmatpush.msra.mxu0 0.0
    %1250 = vmatpush.msra.mxu0 0.0
    %1251 = vmatpush.msra.mxu0 0.0
    %1252 = vmatpush.msra.mxu0 0.0
    %1253 = vmatpush.msra.mxu0 0.0
    %1254 = vmatpush.msra.mxu0 0.0
    %1255 = vmatpush.msra.mxu0 0.0
    %1256 = vmatpush.msra.mxu0 0.0
    %1257 = vmatpush.msra.mxu0 0.0
    %1258 = vmatpush.msra.mxu0 0.0
    %1259 = vmatpush.msra.mxu0 %v897
    %1260 = vmatpush.msra.mxu0 %v896
    %1261 = vmatpush.msra.mxu0 %v895
    %1262 = vmatpush.msra.mxu0 %v894
    %1263 = vmatmul.f32.gmra.mxu0 %v1245
    %v1264 = vpop.f32.mrf.mxu0
    %v1265 = vadd.f32 0.0, %v1264
    %1266 = vdwg.mxu0
    %v1268 = vrot.slane %v1265, 4
    %v1270 = vadd.f32 %v1240, %v1268
    %v1271 = vxor.u32 %v1270, 2147483648
    %v1272 = vmul.f32 %v1271, 1.442695
    %v1273 = vpow.pop %v1272
    %v1274 = vadd.f32 %v1273, 1.0
    %v1275 = vrcp.pop %v1274
    %v1276 = vmul.f32 %v1274, %v1275
    %v1277 = vsub.f32 1.0, %v1276
    %v1278 = vmul.f32 %v1275, %v1277
    %v1279 = vadd.f32 %v1275, %v1278
    %vm1280 = vweird.f32 %v1274
    %vm1281 = vweird.f32 %v1275
    %vm1282 = vmor %vm1280, %vm1281
    %v1283 = vsel %vm1282, %v1275, %v1279
    %v1284 = vand.u32 2147483647, %v1274
    %vm1285 = vcmp.eq.f32.partialorder %v1284, 8.507059e+37
    %v1286 = vand.u32 %v1274, 2147483648
    %v1287 = vor.u32 1.1754944e-38, %v1286
    %v1288 = vsel %vm1285, %v1287, %v1283
    %v1289 = vmul.f32 1.0, %v1288
    %v1290 = vtanh.pop %v1270
    %v1292 = vrot.slane %v1233, 2
    %v1294 = vmul.f32 %v1289, %v1292
    %1296 = vrot.lane.b32.xlu0 %v1290, 64
    %v1297 = vpop.permute.xlu0 %1296
    %v1299 = vmul.f32 %v1289, %v1297
    %1301 = vrot.lane.b32.xlu0 %v1299, 32
    %v1302 = vpop.permute.xlu0 %1301
    %v1304 = vadd.f32 %v1294, %v1302
    %v1305 = vtanh.pop %v1304
    %1307 = vrot.lane.b32.xlu0 %v1305, 64
    %v1308 = vpop.permute.xlu0 %1307
    %v1310 = vmul.f32 %v1289, %v1308
    %v1311 = vld [vmem:[#allocation2 + $0x8] sm:$0xc]
    %v1313 = vrot.slane %v1310, 4
    %1314 = vrot.lane.b32.xlu0 %v1313, 32
    %v1315 = vpop.permute.xlu0 %1314
    %v1316 = vsel %vm331, %v1315, 0
    %1318 = vmatpush.msra.mxu0 0.0
    %1319 = vmatpush.msra.mxu0 0.0
    %1320 = vmatpush.msra.mxu0 0.0
    %1321 = vmatpush.msra.mxu0 0.0
    %1322 = vmatpush.msra.mxu0 0.0
    %1323 = vmatpush.msra.mxu0 0.0
    %1324 = vmatpush.msra.mxu0 0.0
    %1325 = vmatpush.msra.mxu0 0.0
    %1326 = vmatpush.msra.mxu0 0.0
    %1327 = vmatpush.msra.mxu0 0.0
    %1328 = vmatpush.msra.mxu0 0.0
    %1329 = vmatpush.msra.mxu0 0.0
    %1330 = vmatpush.msra.mxu0 %v897
    %1331 = vmatpush.msra.mxu0 %v896
    %1332 = vmatpush.msra.mxu0 %v895
    %1333 = vmatpush.msra.mxu0 %v894
    %1334 = vmatmul.f32.gmra.mxu0 %v1316
    %v1335 = vpop.f32.mrf.mxu0
    %v1336 = vadd.f32 0.0, %v1335
    %1337 = vdwg.mxu0
    %v1339 = vrot.slane %v1336, 6
    %v1341 = vadd.f32 %v1311, %v1339
    %v1342 = vxor.u32 %v1341, 2147483648
    %v1343 = vmul.f32 %v1342, 1.442695
    %v1344 = vpow.pop %v1343
    %v1345 = vadd.f32 %v1344, 1.0
    %v1346 = vrcp.pop %v1345
    %v1347 = vmul.f32 %v1345, %v1346
    %v1348 = vsub.f32 1.0, %v1347
    %v1349 = vmul.f32 %v1346, %v1348
    %v1350 = vadd.f32 %v1346, %v1349
    %vm1351 = vweird.f32 %v1345
    %vm1352 = vweird.f32 %v1346
    %vm1353 = vmor %vm1351, %vm1352
    %v1354 = vsel %vm1353, %v1346, %v1350
    %v1355 = vand.u32 2147483647, %v1345
    %vm1356 = vcmp.eq.f32.partialorder %v1355, 8.507059e+37
    %v1357 = vand.u32 %v1345, 2147483648
    %v1358 = vor.u32 1.1754944e-38, %v1357
    %v1359 = vsel %vm1356, %v1358, %v1354
    %v1360 = vmul.f32 1.0, %v1359
    %v1361 = vtanh.pop %v1341
    %v1363 = vrot.slane %v1304, 2
    %v1365 = vmul.f32 %v1360, %v1363
    %1367 = vrot.lane.b32.xlu0 %v1361, 64
    %v1368 = vpop.permute.xlu0 %1367
    %v1370 = vmul.f32 %v1360, %v1368
    %1372 = vrot.lane.b32.xlu0 %v1370, 32
    %v1373 = vpop.permute.xlu0 %1372
    %v1375 = vadd.f32 %v1365, %v1373
    %v1376 = vtanh.pop %v1375
    %1378 = vrot.lane.b32.xlu0 %v1376, 64
    %v1379 = vpop.permute.xlu0 %1378
    %v1381 = vmul.f32 %v1360, %v1379
    %v1382 = vld [vmem:[#allocation2 + $0x8] sm:$0x3]
    %v1384 = vrot.slane %v1381, 2
    %1385 = vrot.lane.b32.xlu0 %v1384, 32
    %v1386 = vpop.permute.xlu0 %1385
    %v1387 = vsel %vm331, %v1386, 0
    %1389 = vmatpush.msra.mxu0 0.0
    %1390 = vmatpush.msra.mxu0 0.0
    %1391 = vmatpush.msra.mxu0 0.0
    %1392 = vmatpush.msra.mxu0 0.0
    %1393 = vmatpush.msra.mxu0 0.0
    %1394 = vmatpush.msra.mxu0 0.0
    %1395 = vmatpush.msra.mxu0 0.0
    %1396 = vmatpush.msra.mxu0 0.0
    %1397 = vmatpush.msra.mxu0 0.0
    %1398 = vmatpush.msra.mxu0 0.0
    %1399 = vmatpush.msra.mxu0 0.0
    %1400 = vmatpush.msra.mxu0 0.0
    %1401 = vmatpush.msra.mxu0 %v897
    %1402 = vmatpush.msra.mxu0 %v896
    %1403 = vmatpush.msra.mxu0 %v895
    %1404 = vmatpush.msra.mxu0 %v894
    %1405 = vmatmul.f32.gmra.mxu0 %v1387
    %v1406 = vpop.f32.mrf.mxu0
    %v1407 = vadd.f32 0.0, %v1406
    %1408 = vdwg.mxu0
    %v1409 = vadd.f32 %v1382, %v1407
    %v1410 = vxor.u32 %v1409, 2147483648
    %v1411 = vmul.f32 %v1410, 1.442695
    %v1412 = vpow.pop %v1411
    %v1413 = vadd.f32 %v1412, 1.0
    %v1414 = vrcp.pop %v1413
    %v1415 = vmul.f32 %v1413, %v1414
    %v1416 = vsub.f32 1.0, %v1415
    %v1417 = vmul.f32 %v1414, %v1416
    %v1418 = vadd.f32 %v1414, %v1417
    %vm1419 = vweird.f32 %v1413
    %vm1420 = vweird.f32 %v1414
    %vm1421 = vmor %vm1419, %vm1420
    %v1422 = vsel %vm1421, %v1414, %v1418
    %v1423 = vand.u32 2147483647, %v1413
    %vm1424 = vcmp.eq.f32.partialorder %v1423, 8.507059e+37
    %v1425 = vand.u32 %v1413, 2147483648
    %v1426 = vor.u32 1.1754944e-38, %v1425
    %v1427 = vsel %vm1424, %v1426, %v1422
    %v1428 = vmul.f32 1.0, %v1427
    %v1429 = vtanh.pop %v1409
    %v1431 = vrot.slane %v1375, 2
    %v1433 = vmul.f32 %v1428, %v1431
    %1435 = vrot.lane.b32.xlu0 %v1429, 64
    %v1436 = vpop.permute.xlu0 %1435
    %v1438 = vmul.f32 %v1428, %v1436
    %1440 = vrot.lane.b32.xlu0 %v1438, 32
    %v1441 = vpop.permute.xlu0 %1440
    %v1443 = vadd.f32 %v1433, %v1441
    %v1444 = vtanh.pop %v1443
    %1446 = vrot.lane.b32.xlu0 %v1444, 64
    %v1447 = vpop.permute.xlu0 %1446
    %v1449 = vmul.f32 %v1428, %v1447
    %v1450 = vsel %vm885, %v1449, %v1381
    %v1451 = vsel %vm887, %v1450, %v1310
    %v1452 = vsel %vm889, %v1451, %v1239
    %v1453 = vsel %vm885, %v1169, %v1101
    %v1454 = vsel %vm887, %v1453, %v1030
    %v1455 = vsel %vm889, %v1454, %v959
    %1458 = vrot.lane.b32.xlu0 %v890, 32
    %v1459 = vpop.permute.xlu0 %1458
    %1460 = vrot.lane.b32.xlu0 %v893, 32
    %v1461 = vpop.permute.xlu0 %1460
    %1466 = vrot.lane.b32.xlu0 %v1452, 64
    %v1467 = vpop.permute.xlu0 %1466
    %1468 = vrot.lane.b32.xlu0 %v1455, 64
    %v1469 = vpop.permute.xlu0 %1468
    %v1472 = vsel %vm331, %v1459, %v1467
    %v1473 = vsel %vm331, %v1461, %v1469
    %v1474 = vadd.f32 %v1472, %v324
    %v1475 = vadd.f32 %v1473, %v325
    %vm1476 = vcmask 523264
    %v1477 = vsel %vm1476, %v1474, 0.0
    %v1478 = vsel %vm1476, %v1475, 0.0
    %v1479 = vld [vmem:[#allocation3] sm:$0xff]
    %v1480 = vld [vmem:[#allocation3 + $0x8] sm:$0xff]
    %v1481 = vld [vmem:[#allocation3 + $0x10] sm:$0xff]
    %v1482 = vld [vmem:[#allocation3 + $0x18] sm:$0xff]
    %v1483 = vld [vmem:[#allocation3 + $0x20] sm:$0xff]
    %v1484 = vld [vmem:[#allocation3 + $0x28] sm:$0xff]
    %v1485 = vld [vmem:[#allocation3 + $0x30] sm:$0xff]
    %v1486 = vld [vmem:[#allocation3 + $0x38] sm:$0xff]
    %v1487 = vld [vmem:[#allocation3 + $0x40] sm:$0xff]
    %v1488 = vld [vmem:[#allocation3 + $0x48] sm:$0xff]
    %v1489 = vld [vmem:[#allocation3 + $0x50] sm:$0xff]
    %v1490 = vld [vmem:[#allocation3 + $0x58] sm:$0xff]
    %v1491 = vld [vmem:[#allocation3 + $0x60] sm:$0xff]
    %v1492 = vld [vmem:[#allocation3 + $0x68] sm:$0xff]
    %v1493 = vld [vmem:[#allocation3 + $0x70] sm:$0xff]
    %v1494 = vld [vmem:[#allocation3 + $0x78] sm:$0xff]
    %v1495 = vld [vmem:[#allocation3 + $0x80] sm:$0xff]
    %v1496 = vld [vmem:[#allocation3 + $0x88] sm:$0xff]
    %v1497 = vld [vmem:[#allocation3 + $0x90] sm:$0xff]
    %v1498 = vld [vmem:[#allocation3 + $0x98] sm:$0xff]
    %v1499 = vld [vmem:[#allocation3 + $0xa0] sm:$0xff]
    %v1500 = vld [vmem:[#allocation3 + $0xa8] sm:$0xff]
    %v1501 = vld [vmem:[#allocation3 + $0xb0] sm:$0xff]
    %v1502 = vld [vmem:[#allocation3 + $0xb8] sm:$0xff]
    %v1503 = vld [vmem:[#allocation3 + $0xc0] sm:$0xff]
    %v1504 = vld [vmem:[#allocation3 + $0xc8] sm:$0xff]
    %v1505 = vld [vmem:[#allocation3 + $0xd0] sm:$0xff]
    %v1506 = vld [vmem:[#allocation3 + $0xd8] sm:$0xff]
    %v1507 = vld [vmem:[#allocation3 + $0xe0] sm:$0xff]
    %v1508 = vld [vmem:[#allocation3 + $0xe8] sm:$0xff]
    %v1509 = vld [vmem:[#allocation3 + $0xf0] sm:$0xff]
    %v1510 = vld [vmem:[#allocation3 + $0xf8] sm:$0xff]
    %v1511 = vld [vmem:[%s10] sm:$0x3]
    %v1513 = vperm.slane %v1511, 0
    %v1514 = vperm.slane %v1511, 1
    %1517 = vmatpush.msra.mxu0 %v1509
    %1518 = vmatpush.msra.mxu0 %v1507
    %1519 = vmatpush.msra.mxu0 %v1505
    %1520 = vmatpush.msra.mxu0 %v1503
    %1521 = vmatpush.msra.mxu0 %v1501
    %1522 = vmatpush.msra.mxu0 %v1499
    %1523 = vmatpush.msra.mxu0 %v1497
    %1524 = vmatpush.msra.mxu0 %v1495
    %1525 = vmatpush.msra.mxu0 %v1493
    %1526 = vmatpush.msra.mxu0 %v1491
    %1527 = vmatpush.msra.mxu0 %v1489
    %1528 = vmatpush.msra.mxu0 %v1487
    %1529 = vmatpush.msra.mxu0 %v1485
    %1530 = vmatpush.msra.mxu0 %v1483
    %1531 = vmatpush.msra.mxu0 %v1481
    %1532 = vmatpush.msra.mxu0 %v1479
    %1533 = vmatmul.f32.gmra.mxu0 %v1477
    %v1534 = vpop.f32.mrf.mxu0
    %v1535 = vadd.f32 %v1513, %v1534
    %1536 = vmatmul.f32.gmra.mxu0 %v1478
    %v1537 = vpop.f32.mrf.mxu0
    %v1538 = vadd.f32 %v1513, %v1537
    %1539 = vdwg.mxu0
    %1540 = vmatpush.msra.mxu0 %v1510
    %1541 = vmatpush.msra.mxu0 %v1508
    %1542 = vmatpush.msra.mxu0 %v1506
    %1543 = vmatpush.msra.mxu0 %v1504
    %1544 = vmatpush.msra.mxu0 %v1502
    %1545 = vmatpush.msra.mxu0 %v1500
    %1546 = vmatpush.msra.mxu0 %v1498
    %1547 = vmatpush.msra.mxu0 %v1496
    %1548 = vmatpush.msra.mxu0 %v1494
    %1549 = vmatpush.msra.mxu0 %v1492
    %1550 = vmatpush.msra.mxu0 %v1490
    %1551 = vmatpush.msra.mxu0 %v1488
    %1552 = vmatpush.msra.mxu0 %v1486
    %1553 = vmatpush.msra.mxu0 %v1484
    %1554 = vmatpush.msra.mxu0 %v1482
    %1555 = vmatpush.msra.mxu0 %v1480
    %1556 = vmatmul.f32.gmra.mxu0 %v1477
    %v1557 = vpop.f32.mrf.mxu0
    %v1558 = vadd.f32 %v1514, %v1557
    %1559 = vmatmul.f32.gmra.mxu0 %v1478
    %v1560 = vpop.f32.mrf.mxu0
    %v1561 = vadd.f32 %v1514, %v1560
    %1562 = vdwg.mxu0
    %1563 = vst [vmem:[#allocation2] sm:$0xff] %v1535
    %1564 = vst [vmem:[#allocation2 + $0x8] sm:$0xff] %v1558
    %1565 = vst [vmem:[#allocation2 + $0x10] sm:$0xff] %v1538
    %1566 = vst [vmem:[#allocation2 + $0x18] sm:$0xff] %v1561
    %v1567 = vld [vmem:[%s11] sm:$0xff]
    %v1568 = vld [vmem:[%s11 + $0x8] sm:$0xff]
    %v1569 = vld [vmem:[%s11 + $0x10] sm:$0xff]
    %v1570 = vld [vmem:[%s11 + $0x18] sm:$0xff]
    %v1571 = vld [vmem:[%s11 + $0x20] sm:$0xff]
    %v1572 = vld [vmem:[%s11 + $0x28] sm:$0xff]
    %v1573 = vld [vmem:[%s11 + $0x30] sm:$0xff]
    %v1574 = vld [vmem:[%s11 + $0x38] sm:$0xff]
    %v1575 = vld [vmem:[%s11 + $0x40] sm:$0xff]
    %v1576 = vld [vmem:[%s11 + $0x48] sm:$0xff]
    %v1577 = vld [vmem:[%s11 + $0x50] sm:$0xff]
    %v1578 = vld [vmem:[%s11 + $0x58] sm:$0xff]
    %v1579 = vld [vmem:[%s11 + $0x60] sm:$0xff]
    %v1580 = vld [vmem:[%s11 + $0x68] sm:$0xff]
    %v1581 = vld [vmem:[%s11 + $0x70] sm:$0xff]
    %v1582 = vld [vmem:[%s11 + $0x78] sm:$0xff]
    %v1583 = vld [vmem:[%s12] sm:$0x1]
    %v1585 = vperm.slane %v1583, 0
    %1587 = vmatpush.msra.mxu0 %v1582
    %1588 = vmatpush.msra.mxu0 %v1581
    %1589 = vmatpush.msra.mxu0 %v1580
    %1590 = vmatpush.msra.mxu0 %v1579
    %1591 = vmatpush.msra.mxu0 %v1578
    %1592 = vmatpush.msra.mxu0 %v1577
    %1593 = vmatpush.msra.mxu0 %v1576
    %1594 = vmatpush.msra.mxu0 %v1575
    %1595 = vmatpush.msra.mxu0 %v1574
    %1596 = vmatpush.msra.mxu0 %v1573
    %1597 = vmatpush.msra.mxu0 %v1572
    %1598 = vmatpush.msra.mxu0 %v1571
    %1599 = vmatpush.msra.mxu0 %v1570
    %1600 = vmatpush.msra.mxu0 %v1569
    %1601 = vmatpush.msra.mxu0 %v1568
    %1602 = vmatpush.msra.mxu0 %v1567
    %1603 = vmatmul.f32.gmra.mxu0 %v1477
    %v1604 = vpop.f32.mrf.mxu0
    %v1605 = vadd.f32 %v1585, %v1604
    %1606 = vmatmul.f32.gmra.mxu0 %v1478
    %v1607 = vpop.f32.mrf.mxu0
    %v1608 = vadd.f32 %v1585, %v1607
    %1609 = vdwg.mxu0
    %v1610 = vxor.u32 %v1605, 2147483648
    %v1611 = vxor.u32 %v1608, 2147483648
    %v1612 = vmul.f32 %v1610, 1.442695
    %v1613 = vpow.pop %v1612
    %v1614 = vmul.f32 %v1611, 1.442695
    %v1615 = vpow.pop %v1614
    %v1616 = vadd.f32 %v1613, 1.0
    %v1617 = vadd.f32 %v1615, 1.0
    %v1618 = vrcp.pop %v1616
    %v1619 = vmul.f32 %v1616, %v1618
    %v1620 = vsub.f32 1.0, %v1619
    %v1621 = vmul.f32 %v1618, %v1620
    %v1622 = vadd.f32 %v1618, %v1621
    %vm1623 = vweird.f32 %v1616
    %vm1624 = vweird.f32 %v1618
    %vm1625 = vmor %vm1623, %vm1624
    %v1626 = vsel %vm1625, %v1618, %v1622
    %v1627 = vand.u32 2147483647, %v1616
    %vm1628 = vcmp.eq.f32.partialorder %v1627, 8.507059e+37
    %v1629 = vand.u32 %v1616, 2147483648
    %v1630 = vor.u32 1.1754944e-38, %v1629
    %v1631 = vsel %vm1628, %v1630, %v1626
    %v1632 = vmul.f32 1.0, %v1631
    %v1633 = vrcp.pop %v1617
    %v1634 = vmul.f32 %v1617, %v1633
    %v1635 = vsub.f32 1.0, %v1634
    %v1636 = vmul.f32 %v1633, %v1635
    %v1637 = vadd.f32 %v1633, %v1636
    %vm1638 = vweird.f32 %v1617
    %vm1639 = vweird.f32 %v1633
    %vm1640 = vmor %vm1638, %vm1639
    %v1641 = vsel %vm1640, %v1633, %v1637
    %v1642 = vand.u32 2147483647, %v1617
    %vm1643 = vcmp.eq.f32.partialorder %v1642, 8.507059e+37
    %v1644 = vand.u32 %v1617, 2147483648
    %v1645 = vor.u32 1.1754944e-38, %v1644
    %v1646 = vsel %vm1643, %v1645, %v1641
    %v1647 = vmul.f32 1.0, %v1646
    %v1648 = vtanh.pop %v1605
    %v1649 = vtanh.pop %v1608
    %1652 = vrot.lane.b32.xlu0 %v1648, 64
    %v1653 = vpop.permute.xlu0 %1652
    %1654 = vrot.lane.b32.xlu0 %v1649, 64
    %v1655 = vpop.permute.xlu0 %1654
    %v1658 = vmul.f32 %v1632, %v1653
    %v1659 = vmul.f32 %v1647, %v1655
    %v1660 = vld [vmem:[%s8] sm:$0xff]
    %v1661 = vld [vmem:[%s8 + $0x8] sm:$0xff]
    %v1662 = vld [vmem:[%s8 + $0x10] sm:$0xff]
    %v1663 = vld [vmem:[%s8 + $0x18] sm:$0xff]
    %v1664 = vld [vmem:[#allocation2] sm:$0x3]
    %1665 = vmatpush.msra.mxu0 0.0
    %1666 = vmatpush.msra.mxu0 0.0
    %1667 = vmatpush.msra.mxu0 0.0
    %1668 = vmatpush.msra.mxu0 0.0
    %1669 = vmatpush.msra.mxu0 0.0
    %1670 = vmatpush.msra.mxu0 0.0
    %1671 = vmatpush.msra.mxu0 0.0
    %1672 = vmatpush.msra.mxu0 0.0
    %1673 = vmatpush.msra.mxu0 0.0
    %1674 = vmatpush.msra.mxu0 0.0
    %1675 = vmatpush.msra.mxu0 0.0
    %1676 = vmatpush.msra.mxu0 0.0
    %1677 = vmatpush.msra.mxu0 %v1663
    %1678 = vmatpush.msra.mxu0 %v1662
    %1679 = vmatpush.msra.mxu0 %v1661
    %1680 = vmatpush.msra.mxu0 %v1660
    %1681 = vmatmul.f32.gmra.mxu0 %v333
    %v1682 = vpop.f32.mrf.mxu0
    %v1683 = vadd.f32 0.0, %v1682
    %1684 = vdwg.mxu0
    %v1685 = vadd.f32 %v1664, %v1683
    %v1686 = vxor.u32 %v1685, 2147483648
    %v1687 = vmul.f32 %v1686, 1.442695
    %v1688 = vpow.pop %v1687
    %v1689 = vadd.f32 %v1688, 1.0
    %v1690 = vrcp.pop %v1689
    %v1691 = vmul.f32 %v1689, %v1690
    %v1692 = vsub.f32 1.0, %v1691
    %v1693 = vmul.f32 %v1690, %v1692
    %v1694 = vadd.f32 %v1690, %v1693
    %vm1695 = vweird.f32 %v1689
    %vm1696 = vweird.f32 %v1690
    %vm1697 = vmor %vm1695, %vm1696
    %v1698 = vsel %vm1697, %v1690, %v1694
    %v1699 = vand.u32 2147483647, %v1689
    %vm1700 = vcmp.eq.f32.partialorder %v1699, 8.507059e+37
    %v1701 = vand.u32 %v1689, 2147483648
    %v1702 = vor.u32 1.1754944e-38, %v1701
    %v1703 = vsel %vm1700, %v1702, %v1698
    %v1704 = vmul.f32 1.0, %v1703
    %v1705 = vtanh.pop %v1685
    %v1706 = vmul.f32 %v1704, 0.0
    %1708 = vrot.lane.b32.xlu0 %v1705, 64
    %v1709 = vpop.permute.xlu0 %1708
    %v1711 = vmul.f32 %v1704, %v1709
    %1713 = vrot.lane.b32.xlu0 %v1711, 32
    %v1714 = vpop.permute.xlu0 %1713
    %v1716 = vadd.f32 %v1706, %v1714
    %v1717 = vtanh.pop %v1716
    %1719 = vrot.lane.b32.xlu0 %v1717, 64
    %v1720 = vpop.permute.xlu0 %1719
    %v1722 = vmul.f32 %v1704, %v1720
    %v1723 = vld [vmem:[#allocation2] sm:$0xc]
    %1725 = vrot.lane.b32.xlu0 %v1722, 32
    %v1726 = vpop.permute.xlu0 %1725
    %v1727 = vsel %vm331, %v1726, 0
    %1729 = vmatpush.msra.mxu0 0.0
    %1730 = vmatpush.msra.mxu0 0.0
    %1731 = vmatpush.msra.mxu0 0.0
    %1732 = vmatpush.msra.mxu0 0.0
    %1733 = vmatpush.msra.mxu0 0.0
    %1734 = vmatpush.msra.mxu0 0.0
    %1735 = vmatpush.msra.mxu0 0.0
    %1736 = vmatpush.msra.mxu0 0.0
    %1737 = vmatpush.msra.mxu0 0.0
    %1738 = vmatpush.msra.mxu0 0.0
    %1739 = vmatpush.msra.mxu0 0.0
    %1740 = vmatpush.msra.mxu0 0.0
    %1741 = vmatpush.msra.mxu0 %v1663
    %1742 = vmatpush.msra.mxu0 %v1662
    %1743 = vmatpush.msra.mxu0 %v1661
    %1744 = vmatpush.msra.mxu0 %v1660
    %1745 = vmatmul.f32.gmra.mxu0 %v1727
    %v1746 = vpop.f32.mrf.mxu0
    %v1747 = vadd.f32 0.0, %v1746
    %1748 = vdwg.mxu0
    %v1750 = vrot.slane %v1747, 6
    %v1752 = vadd.f32 %v1723, %v1750
    %v1753 = vxor.u32 %v1752, 2147483648
    %v1754 = vmul.f32 %v1753, 1.442695
    %v1755 = vpow.pop %v1754
    %v1756 = vadd.f32 %v1755, 1.0
    %v1757 = vrcp.pop %v1756
    %v1758 = vmul.f32 %v1756, %v1757
    %v1759 = vsub.f32 1.0, %v1758
    %v1760 = vmul.f32 %v1757, %v1759
    %v1761 = vadd.f32 %v1757, %v1760
    %vm1762 = vweird.f32 %v1756
    %vm1763 = vweird.f32 %v1757
    %vm1764 = vmor %vm1762, %vm1763
    %v1765 = vsel %vm1764, %v1757, %v1761
    %v1766 = vand.u32 2147483647, %v1756
    %vm1767 = vcmp.eq.f32.partialorder %v1766, 8.507059e+37
    %v1768 = vand.u32 %v1756, 2147483648
    %v1769 = vor.u32 1.1754944e-38, %v1768
    %v1770 = vsel %vm1767, %v1769, %v1765
    %v1771 = vmul.f32 1.0, %v1770
    %v1772 = vtanh.pop %v1752
    %v1774 = vrot.slane %v1716, 6
    %v1776 = vmul.f32 %v1771, %v1774
    %1778 = vrot.lane.b32.xlu0 %v1772, 64
    %v1779 = vpop.permute.xlu0 %1778
    %v1781 = vmul.f32 %v1771, %v1779
    %1783 = vrot.lane.b32.xlu0 %v1781, 32
    %v1784 = vpop.permute.xlu0 %1783
    %v1786 = vadd.f32 %v1776, %v1784
    %v1787 = vtanh.pop %v1786
    %1789 = vrot.lane.b32.xlu0 %v1787, 64
    %v1790 = vpop.permute.xlu0 %1789
    %v1792 = vmul.f32 %v1771, %v1790
    %v1793 = vld [vmem:[#allocation2] sm:$0x30]
    %v1795 = vrot.slane %v1792, 2
    %1796 = vrot.lane.b32.xlu0 %v1795, 32
    %v1797 = vpop.permute.xlu0 %1796
    %v1798 = vsel %vm331, %v1797, 0
    %1800 = vmatpush.msra.mxu0 0.0
    %1801 = vmatpush.msra.mxu0 0.0
    %1802 = vmatpush.msra.mxu0 0.0
    %1803 = vmatpush.msra.mxu0 0.0
    %1804 = vmatpush.msra.mxu0 0.0
    %1805 = vmatpush.msra.mxu0 0.0
    %1806 = vmatpush.msra.mxu0 0.0
    %1807 = vmatpush.msra.mxu0 0.0
    %1808 = vmatpush.msra.mxu0 0.0
    %1809 = vmatpush.msra.mxu0 0.0
    %1810 = vmatpush.msra.mxu0 0.0
    %1811 = vmatpush.msra.mxu0 0.0
    %1812 = vmatpush.msra.mxu0 %v1663
    %1813 = vmatpush.msra.mxu0 %v1662
    %1814 = vmatpush.msra.mxu0 %v1661
    %1815 = vmatpush.msra.mxu0 %v1660
    %1816 = vmatmul.f32.gmra.mxu0 %v1798
    %v1817 = vpop.f32.mrf.mxu0
    %v1818 = vadd.f32 0.0, %v1817
    %1819 = vdwg.mxu0
    %v1821 = vrot.slane %v1818, 4
    %v1823 = vadd.f32 %v1793, %v1821
    %v1824 = vxor.u32 %v1823, 2147483648
    %v1825 = vmul.f32 %v1824, 1.442695
    %v1826 = vpow.pop %v1825
    %v1827 = vadd.f32 %v1826, 1.0
    %v1828 = vrcp.pop %v1827
    %v1829 = vmul.f32 %v1827, %v1828
    %v1830 = vsub.f32 1.0, %v1829
    %v1831 = vmul.f32 %v1828, %v1830
    %v1832 = vadd.f32 %v1828, %v1831
    %vm1833 = vweird.f32 %v1827
    %vm1834 = vweird.f32 %v1828
    %vm1835 = vmor %vm1833, %vm1834
    %v1836 = vsel %vm1835, %v1828, %v1832
    %v1837 = vand.u32 2147483647, %v1827
    %vm1838 = vcmp.eq.f32.partialorder %v1837, 8.507059e+37
    %v1839 = vand.u32 %v1827, 2147483648
    %v1840 = vor.u32 1.1754944e-38, %v1839
    %v1841 = vsel %vm1838, %v1840, %v1836
    %v1842 = vmul.f32 1.0, %v1841
    %v1843 = vtanh.pop %v1823
    %v1845 = vrot.slane %v1786, 6
    %v1847 = vmul.f32 %v1842, %v1845
    %1849 = vrot.lane.b32.xlu0 %v1843, 64
    %v1850 = vpop.permute.xlu0 %1849
    %v1852 = vmul.f32 %v1842, %v1850
    %1854 = vrot.lane.b32.xlu0 %v1852, 32
    %v1855 = vpop.permute.xlu0 %1854
    %v1857 = vadd.f32 %v1847, %v1855
    %v1858 = vtanh.pop %v1857
    %1860 = vrot.lane.b32.xlu0 %v1858, 64
    %v1861 = vpop.permute.xlu0 %1860
    %v1863 = vmul.f32 %v1842, %v1861
    %v1864 = vld [vmem:[#allocation2] sm:$0xc0]
    %v1866 = vrot.slane %v1863, 4
    %1867 = vrot.lane.b32.xlu0 %v1866, 32
    %v1868 = vpop.permute.xlu0 %1867
    %v1869 = vsel %vm331, %v1868, 0
    %1871 = vmatpush.msra.mxu0 0.0
    %1872 = vmatpush.msra.mxu0 0.0
    %1873 = vmatpush.msra.mxu0 0.0
    %1874 = vmatpush.msra.mxu0 0.0
    %1875 = vmatpush.msra.mxu0 0.0
    %1876 = vmatpush.msra.mxu0 0.0
    %1877 = vmatpush.msra.mxu0 0.0
    %1878 = vmatpush.msra.mxu0 0.0
    %1879 = vmatpush.msra.mxu0 0.0
    %1880 = vmatpush.msra.mxu0 0.0
    %1881 = vmatpush.msra.mxu0 0.0
    %1882 = vmatpush.msra.mxu0 0.0
    %1883 = vmatpush.msra.mxu0 %v1663
    %1884 = vmatpush.msra.mxu0 %v1662
    %1885 = vmatpush.msra.mxu0 %v1661
    %1886 = vmatpush.msra.mxu0 %v1660
    %1887 = vmatmul.f32.gmra.mxu0 %v1869
    %v1888 = vpop.f32.mrf.mxu0
    %v1889 = vadd.f32 0.0, %v1888
    %1890 = vdwg.mxu0
    %v1892 = vrot.slane %v1889, 2
    %v1894 = vadd.f32 %v1864, %v1892
    %v1895 = vxor.u32 %v1894, 2147483648
    %v1896 = vmul.f32 %v1895, 1.442695
    %v1897 = vpow.pop %v1896
    %v1898 = vadd.f32 %v1897, 1.0
    %v1899 = vrcp.pop %v1898
    %v1900 = vmul.f32 %v1898, %v1899
    %v1901 = vsub.f32 1.0, %v1900
    %v1902 = vmul.f32 %v1899, %v1901
    %v1903 = vadd.f32 %v1899, %v1902
    %vm1904 = vweird.f32 %v1898
    %vm1905 = vweird.f32 %v1899
    %vm1906 = vmor %vm1904, %vm1905
    %v1907 = vsel %vm1906, %v1899, %v1903
    %v1908 = vand.u32 2147483647, %v1898
    %vm1909 = vcmp.eq.f32.partialorder %v1908, 8.507059e+37
    %v1910 = vand.u32 %v1898, 2147483648
    %v1911 = vor.u32 1.1754944e-38, %v1910
    %v1912 = vsel %vm1909, %v1911, %v1907
    %v1913 = vmul.f32 1.0, %v1912
    %v1914 = vtanh.pop %v1894
    %v1916 = vrot.slane %v1857, 6
    %v1918 = vmul.f32 %v1913, %v1916
    %1920 = vrot.lane.b32.xlu0 %v1914, 64
    %v1921 = vpop.permute.xlu0 %1920
    %v1923 = vmul.f32 %v1913, %v1921
    %1925 = vrot.lane.b32.xlu0 %v1923, 32
    %v1926 = vpop.permute.xlu0 %1925
    %v1928 = vadd.f32 %v1918, %v1926
    %v1929 = vtanh.pop %v1928
    %1931 = vrot.lane.b32.xlu0 %v1929, 64
    %v1932 = vpop.permute.xlu0 %1931
    %v1934 = vmul.f32 %v1913, %v1932
    %v1935 = vld [vmem:[#allocation2 + $0x10] sm:$0x3]
    %v1937 = vrot.slane %v1934, 6
    %1938 = vrot.lane.b32.xlu0 %v1937, 32
    %v1939 = vpop.permute.xlu0 %1938
    %v1940 = vsel %vm331, %v1939, 0
    %1942 = vmatpush.msra.mxu0 0.0
    %1943 = vmatpush.msra.mxu0 0.0
    %1944 = vmatpush.msra.mxu0 0.0
    %1945 = vmatpush.msra.mxu0 0.0
    %1946 = vmatpush.msra.mxu0 0.0
    %1947 = vmatpush.msra.mxu0 0.0
    %1948 = vmatpush.msra.mxu0 0.0
    %1949 = vmatpush.msra.mxu0 0.0
    %1950 = vmatpush.msra.mxu0 0.0
    %1951 = vmatpush.msra.mxu0 0.0
    %1952 = vmatpush.msra.mxu0 0.0
    %1953 = vmatpush.msra.mxu0 0.0
    %1954 = vmatpush.msra.mxu0 %v1663
    %1955 = vmatpush.msra.mxu0 %v1662
    %1956 = vmatpush.msra.mxu0 %v1661
    %1957 = vmatpush.msra.mxu0 %v1660
    %1958 = vmatmul.f32.gmra.mxu0 %v1940
    %v1959 = vpop.f32.mrf.mxu0
    %v1960 = vadd.f32 0.0, %v1959
    %1961 = vdwg.mxu0
    %v1962 = vadd.f32 %v1935, %v1960
    %v1963 = vxor.u32 %v1962, 2147483648
    %v1964 = vmul.f32 %v1963, 1.442695
    %v1965 = vpow.pop %v1964
    %v1966 = vadd.f32 %v1965, 1.0
    %v1967 = vrcp.pop %v1966
    %v1968 = vmul.f32 %v1966, %v1967
    %v1969 = vsub.f32 1.0, %v1968
    %v1970 = vmul.f32 %v1967, %v1969
    %v1971 = vadd.f32 %v1967, %v1970
    %vm1972 = vweird.f32 %v1966
    %vm1973 = vweird.f32 %v1967
    %vm1974 = vmor %vm1972, %vm1973
    %v1975 = vsel %vm1974, %v1967, %v1971
    %v1976 = vand.u32 2147483647, %v1966
    %vm1977 = vcmp.eq.f32.partialorder %v1976, 8.507059e+37
    %v1978 = vand.u32 %v1966, 2147483648
    %v1979 = vor.u32 1.1754944e-38, %v1978
    %v1980 = vsel %vm1977, %v1979, %v1975
    %v1981 = vmul.f32 1.0, %v1980
    %v1982 = vtanh.pop %v1962
    %v1984 = vrot.slane %v1928, 6
    %v1986 = vmul.f32 %v1981, %v1984
    %1988 = vrot.lane.b32.xlu0 %v1982, 64
    %v1989 = vpop.permute.xlu0 %1988
    %v1991 = vmul.f32 %v1981, %v1989
    %1993 = vrot.lane.b32.xlu0 %v1991, 32
    %v1994 = vpop.permute.xlu0 %1993
    %v1996 = vadd.f32 %v1986, %v1994
    %v1997 = vtanh.pop %v1996
    %1999 = vrot.lane.b32.xlu0 %v1997, 64
    %v2000 = vpop.permute.xlu0 %1999
    %v2002 = vmul.f32 %v1981, %v2000
    %v2003 = vld [vmem:[#allocation2 + $0x10] sm:$0xc]
    %2005 = vrot.lane.b32.xlu0 %v2002, 32
    %v2006 = vpop.permute.xlu0 %2005
    %v2007 = vsel %vm331, %v2006, 0
    %2009 = vmatpush.msra.mxu0 0.0
    %2010 = vmatpush.msra.mxu0 0.0
    %2011 = vmatpush.msra.mxu0 0.0
    %2012 = vmatpush.msra.mxu0 0.0
    %2013 = vmatpush.msra.mxu0 0.0
    %2014 = vmatpush.msra.mxu0 0.0
    %2015 = vmatpush.msra.mxu0 0.0
    %2016 = vmatpush.msra.mxu0 0.0
    %2017 = vmatpush.msra.mxu0 0.0
    %2018 = vmatpush.msra.mxu0 0.0
    %2019 = vmatpush.msra.mxu0 0.0
    %2020 = vmatpush.msra.mxu0 0.0
    %2021 = vmatpush.msra.mxu0 %v1663
    %2022 = vmatpush.msra.mxu0 %v1662
    %2023 = vmatpush.msra.mxu0 %v1661
    %2024 = vmatpush.msra.mxu0 %v1660
    %2025 = vmatmul.f32.gmra.mxu0 %v2007
    %v2026 = vpop.f32.mrf.mxu0
    %v2027 = vadd.f32 0.0, %v2026
    %2028 = vdwg.mxu0
    %v2030 = vrot.slane %v2027, 6
    %v2032 = vadd.f32 %v2003, %v2030
    %v2033 = vxor.u32 %v2032, 2147483648
    %v2034 = vmul.f32 %v2033, 1.442695
    %v2035 = vpow.pop %v2034
    %v2036 = vadd.f32 %v2035, 1.0
    %v2037 = vrcp.pop %v2036
    %v2038 = vmul.f32 %v2036, %v2037
    %v2039 = vsub.f32 1.0, %v2038
    %v2040 = vmul.f32 %v2037, %v2039
    %v2041 = vadd.f32 %v2037, %v2040
    %vm2042 = vweird.f32 %v2036
    %vm2043 = vweird.f32 %v2037
    %vm2044 = vmor %vm2042, %vm2043
    %v2045 = vsel %vm2044, %v2037, %v2041
    %v2046 = vand.u32 2147483647, %v2036
    %vm2047 = vcmp.eq.f32.partialorder %v2046, 8.507059e+37
    %v2048 = vand.u32 %v2036, 2147483648
    %v2049 = vor.u32 1.1754944e-38, %v2048
    %v2050 = vsel %vm2047, %v2049, %v2045
    %v2051 = vmul.f32 1.0, %v2050
    %v2052 = vtanh.pop %v2032
    %v2054 = vrot.slane %v1996, 6
    %v2056 = vmul.f32 %v2051, %v2054
    %2058 = vrot.lane.b32.xlu0 %v2052, 64
    %v2059 = vpop.permute.xlu0 %2058
    %v2061 = vmul.f32 %v2051, %v2059
    %2063 = vrot.lane.b32.xlu0 %v2061, 32
    %v2064 = vpop.permute.xlu0 %2063
    %v2066 = vadd.f32 %v2056, %v2064
    %v2067 = vtanh.pop %v2066
    %2069 = vrot.lane.b32.xlu0 %v2067, 64
    %v2070 = vpop.permute.xlu0 %2069
    %v2072 = vmul.f32 %v2051, %v2070
    %v2073 = vld [vmem:[#allocation2 + $0x10] sm:$0x30]
    %v2075 = vrot.slane %v2072, 2
    %2076 = vrot.lane.b32.xlu0 %v2075, 32
    %v2077 = vpop.permute.xlu0 %2076
    %v2078 = vsel %vm331, %v2077, 0
    %2080 = vmatpush.msra.mxu0 0.0
    %2081 = vmatpush.msra.mxu0 0.0
    %2082 = vmatpush.msra.mxu0 0.0
    %2083 = vmatpush.msra.mxu0 0.0
    %2084 = vmatpush.msra.mxu0 0.0
    %2085 = vmatpush.msra.mxu0 0.0
    %2086 = vmatpush.msra.mxu0 0.0
    %2087 = vmatpush.msra.mxu0 0.0
    %2088 = vmatpush.msra.mxu0 0.0
    %2089 = vmatpush.msra.mxu0 0.0
    %2090 = vmatpush.msra.mxu0 0.0
    %2091 = vmatpush.msra.mxu0 0.0
    %2092 = vmatpush.msra.mxu0 %v1663
    %2093 = vmatpush.msra.mxu0 %v1662
    %2094 = vmatpush.msra.mxu0 %v1661
    %2095 = vmatpush.msra.mxu0 %v1660
    %2096 = vmatmul.f32.gmra.mxu0 %v2078
    %v2097 = vpop.f32.mrf.mxu0
    %v2098 = vadd.f32 0.0, %v2097
    %2099 = vdwg.mxu0
    %v2101 = vrot.slane %v2098, 4
    %v2103 = vadd.f32 %v2073, %v2101
    %v2104 = vxor.u32 %v2103, 2147483648
    %v2105 = vmul.f32 %v2104, 1.442695
    %v2106 = vpow.pop %v2105
    %v2107 = vadd.f32 %v2106, 1.0
    %v2108 = vrcp.pop %v2107
    %v2109 = vmul.f32 %v2107, %v2108
    %v2110 = vsub.f32 1.0, %v2109
    %v2111 = vmul.f32 %v2108, %v2110
    %v2112 = vadd.f32 %v2108, %v2111
    %vm2113 = vweird.f32 %v2107
    %vm2114 = vweird.f32 %v2108
    %vm2115 = vmor %vm2113, %vm2114
    %v2116 = vsel %vm2115, %v2108, %v2112
    %v2117 = vand.u32 2147483647, %v2107
    %vm2118 = vcmp.eq.f32.partialorder %v2117, 8.507059e+37
    %v2119 = vand.u32 %v2107, 2147483648
    %v2120 = vor.u32 1.1754944e-38, %v2119
    %v2121 = vsel %vm2118, %v2120, %v2116
    %v2122 = vmul.f32 1.0, %v2121
    %v2123 = vtanh.pop %v2103
    %v2125 = vrot.slane %v2066, 6
    %v2127 = vmul.f32 %v2122, %v2125
    %2129 = vrot.lane.b32.xlu0 %v2123, 64
    %v2130 = vpop.permute.xlu0 %2129
    %v2132 = vmul.f32 %v2122, %v2130
    %2134 = vrot.lane.b32.xlu0 %v2132, 32
    %v2135 = vpop.permute.xlu0 %2134
    %v2137 = vadd.f32 %v2127, %v2135
    %v2138 = vtanh.pop %v2137
    %2140 = vrot.lane.b32.xlu0 %v2138, 64
    %v2141 = vpop.permute.xlu0 %2140
    %v2143 = vmul.f32 %v2122, %v2141
    %v2144 = vld [vmem:[#allocation2 + $0x10] sm:$0xc0]
    %v2146 = vrot.slane %v2143, 4
    %2147 = vrot.lane.b32.xlu0 %v2146, 32
    %v2148 = vpop.permute.xlu0 %2147
    %v2149 = vsel %vm331, %v2148, 0
    %2151 = vmatpush.msra.mxu0 0.0
    %2152 = vmatpush.msra.mxu0 0.0
    %2153 = vmatpush.msra.mxu0 0.0
    %2154 = vmatpush.msra.mxu0 0.0
    %2155 = vmatpush.msra.mxu0 0.0
    %2156 = vmatpush.msra.mxu0 0.0
    %2157 = vmatpush.msra.mxu0 0.0
    %2158 = vmatpush.msra.mxu0 0.0
    %2159 = vmatpush.msra.mxu0 0.0
    %2160 = vmatpush.msra.mxu0 0.0
    %2161 = vmatpush.msra.mxu0 0.0
    %2162 = vmatpush.msra.mxu0 0.0
    %2163 = vmatpush.msra.mxu0 %v1663
    %2164 = vmatpush.msra.mxu0 %v1662
    %2165 = vmatpush.msra.mxu0 %v1661
    %2166 = vmatpush.msra.mxu0 %v1660
    %2167 = vmatmul.f32.gmra.mxu0 %v2149
    %v2168 = vpop.f32.mrf.mxu0
    %v2169 = vadd.f32 0.0, %v2168
    %2170 = vdwg.mxu0
    %v2172 = vrot.slane %v2169, 2
    %v2174 = vadd.f32 %v2144, %v2172
    %v2175 = vxor.u32 %v2174, 2147483648
    %v2176 = vmul.f32 %v2175, 1.442695
    %v2177 = vpow.pop %v2176
    %v2178 = vadd.f32 %v2177, 1.0
    %v2179 = vrcp.pop %v2178
    %v2180 = vmul.f32 %v2178, %v2179
    %v2181 = vsub.f32 1.0, %v2180
    %v2182 = vmul.f32 %v2179, %v2181
    %v2183 = vadd.f32 %v2179, %v2182
    %vm2184 = vweird.f32 %v2178
    %vm2185 = vweird.f32 %v2179
    %vm2186 = vmor %vm2184, %vm2185
    %v2187 = vsel %vm2186, %v2179, %v2183
    %v2188 = vand.u32 2147483647, %v2178
    %vm2189 = vcmp.eq.f32.partialorder %v2188, 8.507059e+37
    %v2190 = vand.u32 %v2178, 2147483648
    %v2191 = vor.u32 1.1754944e-38, %v2190
    %v2192 = vsel %vm2189, %v2191, %v2187
    %v2193 = vmul.f32 1.0, %v2192
    %v2194 = vtanh.pop %v2174
    %v2196 = vrot.slane %v2137, 6
    %v2198 = vmul.f32 %v2193, %v2196
    %2200 = vrot.lane.b32.xlu0 %v2194, 64
    %v2201 = vpop.permute.xlu0 %2200
    %v2203 = vmul.f32 %v2193, %v2201
    %2205 = vrot.lane.b32.xlu0 %v2203, 32
    %v2206 = vpop.permute.xlu0 %2205
    %v2208 = vadd.f32 %v2198, %v2206
    %v2209 = vtanh.pop %v2208
    %2211 = vrot.lane.b32.xlu0 %v2209, 64
    %v2212 = vpop.permute.xlu0 %2211
    %v2214 = vmul.f32 %v2193, %v2212
    %v2215 = vsel %vm885, %v1722, %v1792
    %v2216 = vsel %vm887, %v2215, %v1863
    %v2217 = vsel %vm889, %v2216, %v1934
    %v2218 = vsel %vm885, %v2002, %v2072
    %v2219 = vsel %vm887, %v2218, %v2143
    %v2220 = vsel %vm889, %v2219, %v2214
    %v2221 = vld [vmem:[%s9] sm:$0xff]
    %v2222 = vld [vmem:[%s9 + $0x8] sm:$0xff]
    %v2223 = vld [vmem:[%s9 + $0x10] sm:$0xff]
    %v2224 = vld [vmem:[%s9 + $0x18] sm:$0xff]
    %v2225 = vld [vmem:[#allocation2 + $0x18] sm:$0xc0]
    %2226 = vmatpush.msra.mxu0 0.0
    %2227 = vmatpush.msra.mxu0 0.0
    %2228 = vmatpush.msra.mxu0 0.0
    %2229 = vmatpush.msra.mxu0 0.0
    %2230 = vmatpush.msra.mxu0 0.0
    %2231 = vmatpush.msra.mxu0 0.0
    %2232 = vmatpush.msra.mxu0 0.0
    %2233 = vmatpush.msra.mxu0 0.0
    %2234 = vmatpush.msra.mxu0 0.0
    %2235 = vmatpush.msra.mxu0 0.0
    %2236 = vmatpush.msra.mxu0 0.0
    %2237 = vmatpush.msra.mxu0 0.0
    %2238 = vmatpush.msra.mxu0 %v2224
    %2239 = vmatpush.msra.mxu0 %v2223
    %2240 = vmatpush.msra.mxu0 %v2222
    %2241 = vmatpush.msra.mxu0 %v2221
    %2242 = vmatmul.f32.gmra.mxu0 %v333
    %v2243 = vpop.f32.mrf.mxu0
    %v2244 = vadd.f32 0.0, %v2243
    %2245 = vdwg.mxu0
    %v2247 = vrot.slane %v2244, 2
    %v2249 = vadd.f32 %v2225, %v2247
    %v2250 = vxor.u32 %v2249, 2147483648
    %v2251 = vmul.f32 %v2250, 1.442695
    %v2252 = vpow.pop %v2251
    %v2253 = vadd.f32 %v2252, 1.0
    %v2254 = vrcp.pop %v2253
    %v2255 = vmul.f32 %v2253, %v2254
    %v2256 = vsub.f32 1.0, %v2255
    %v2257 = vmul.f32 %v2254, %v2256
    %v2258 = vadd.f32 %v2254, %v2257
    %vm2259 = vweird.f32 %v2253
    %vm2260 = vweird.f32 %v2254
    %vm2261 = vmor %vm2259, %vm2260
    %v2262 = vsel %vm2261, %v2254, %v2258
    %v2263 = vand.u32 2147483647, %v2253
    %vm2264 = vcmp.eq.f32.partialorder %v2263, 8.507059e+37
    %v2265 = vand.u32 %v2253, 2147483648
    %v2266 = vor.u32 1.1754944e-38, %v2265
    %v2267 = vsel %vm2264, %v2266, %v2262
    %v2268 = vmul.f32 1.0, %v2267
    %v2269 = vtanh.pop %v2249
    %v2270 = vmul.f32 %v2268, 0.0
    %2272 = vrot.lane.b32.xlu0 %v2269, 64
    %v2273 = vpop.permute.xlu0 %2272
    %v2275 = vmul.f32 %v2268, %v2273
    %2277 = vrot.lane.b32.xlu0 %v2275, 32
    %v2278 = vpop.permute.xlu0 %2277
    %v2280 = vadd.f32 %v2270, %v2278
    %v2281 = vtanh.pop %v2280
    %2283 = vrot.lane.b32.xlu0 %v2281, 64
    %v2284 = vpop.permute.xlu0 %2283
    %v2286 = vmul.f32 %v2268, %v2284
    %v2287 = vld [vmem:[#allocation2 + $0x18] sm:$0x30]
    %v2289 = vrot.slane %v2286, 6
    %2290 = vrot.lane.b32.xlu0 %v2289, 32
    %v2291 = vpop.permute.xlu0 %2290
    %v2292 = vsel %vm331, %v2291, 0
    %2294 = vmatpush.msra.mxu0 0.0
    %2295 = vmatpush.msra.mxu0 0.0
    %2296 = vmatpush.msra.mxu0 0.0
    %2297 = vmatpush.msra.mxu0 0.0
    %2298 = vmatpush.msra.mxu0 0.0
    %2299 = vmatpush.msra.mxu0 0.0
    %2300 = vmatpush.msra.mxu0 0.0
    %2301 = vmatpush.msra.mxu0 0.0
    %2302 = vmatpush.msra.mxu0 0.0
    %2303 = vmatpush.msra.mxu0 0.0
    %2304 = vmatpush.msra.mxu0 0.0
    %2305 = vmatpush.msra.mxu0 0.0
    %2306 = vmatpush.msra.mxu0 %v2224
    %2307 = vmatpush.msra.mxu0 %v2223
    %2308 = vmatpush.msra.mxu0 %v2222
    %2309 = vmatpush.msra.mxu0 %v2221
    %2310 = vmatmul.f32.gmra.mxu0 %v2292
    %v2311 = vpop.f32.mrf.mxu0
    %v2312 = vadd.f32 0.0, %v2311
    %2313 = vdwg.mxu0
    %v2315 = vrot.slane %v2312, 4
    %v2317 = vadd.f32 %v2287, %v2315
    %v2318 = vxor.u32 %v2317, 2147483648
    %v2319 = vmul.f32 %v2318, 1.442695
    %v2320 = vpow.pop %v2319
    %v2321 = vadd.f32 %v2320, 1.0
    %v2322 = vrcp.pop %v2321
    %v2323 = vmul.f32 %v2321, %v2322
    %v2324 = vsub.f32 1.0, %v2323
    %v2325 = vmul.f32 %v2322, %v2324
    %v2326 = vadd.f32 %v2322, %v2325
    %vm2327 = vweird.f32 %v2321
    %vm2328 = vweird.f32 %v2322
    %vm2329 = vmor %vm2327, %vm2328
    %v2330 = vsel %vm2329, %v2322, %v2326
    %v2331 = vand.u32 2147483647, %v2321
    %vm2332 = vcmp.eq.f32.partialorder %v2331, 8.507059e+37
    %v2333 = vand.u32 %v2321, 2147483648
    %v2334 = vor.u32 1.1754944e-38, %v2333
    %v2335 = vsel %vm2332, %v2334, %v2330
    %v2336 = vmul.f32 1.0, %v2335
    %v2337 = vtanh.pop %v2317
    %v2339 = vrot.slane %v2280, 2
    %v2341 = vmul.f32 %v2336, %v2339
    %2343 = vrot.lane.b32.xlu0 %v2337, 64
    %v2344 = vpop.permute.xlu0 %2343
    %v2346 = vmul.f32 %v2336, %v2344
    %2348 = vrot.lane.b32.xlu0 %v2346, 32
    %v2349 = vpop.permute.xlu0 %2348
    %v2351 = vadd.f32 %v2341, %v2349
    %v2352 = vtanh.pop %v2351
    %2354 = vrot.lane.b32.xlu0 %v2352, 64
    %v2355 = vpop.permute.xlu0 %2354
    %v2357 = vmul.f32 %v2336, %v2355
    %v2358 = vld [vmem:[#allocation2 + $0x18] sm:$0xc]
    %v2360 = vrot.slane %v2357, 4
    %2361 = vrot.lane.b32.xlu0 %v2360, 32
    %v2362 = vpop.permute.xlu0 %2361
    %v2363 = vsel %vm331, %v2362, 0
    %2365 = vmatpush.msra.mxu0 0.0
    %2366 = vmatpush.msra.mxu0 0.0
    %2367 = vmatpush.msra.mxu0 0.0
    %2368 = vmatpush.msra.mxu0 0.0
    %2369 = vmatpush.msra.mxu0 0.0
    %2370 = vmatpush.msra.mxu0 0.0
    %2371 = vmatpush.msra.mxu0 0.0
    %2372 = vmatpush.msra.mxu0 0.0
    %2373 = vmatpush.msra.mxu0 0.0
    %2374 = vmatpush.msra.mxu0 0.0
    %2375 = vmatpush.msra.mxu0 0.0
    %2376 = vmatpush.msra.mxu0 0.0
    %2377 = vmatpush.msra.mxu0 %v2224
    %2378 = vmatpush.msra.mxu0 %v2223
    %2379 = vmatpush.msra.mxu0 %v2222
    %2380 = vmatpush.msra.mxu0 %v2221
    %2381 = vmatmul.f32.gmra.mxu0 %v2363
    %v2382 = vpop.f32.mrf.mxu0
    %v2383 = vadd.f32 0.0, %v2382
    %2384 = vdwg.mxu0
    %v2386 = vrot.slane %v2383, 6
    %v2388 = vadd.f32 %v2358, %v2386
    %v2389 = vxor.u32 %v2388, 2147483648
    %v2390 = vmul.f32 %v2389, 1.442695
    %v2391 = vpow.pop %v2390
    %v2392 = vadd.f32 %v2391, 1.0
    %v2393 = vrcp.pop %v2392
    %v2394 = vmul.f32 %v2392, %v2393
    %v2395 = vsub.f32 1.0, %v2394
    %v2396 = vmul.f32 %v2393, %v2395
    %v2397 = vadd.f32 %v2393, %v2396
    %vm2398 = vweird.f32 %v2392
    %vm2399 = vweird.f32 %v2393
    %vm2400 = vmor %vm2398, %vm2399
    %v2401 = vsel %vm2400, %v2393, %v2397
    %v2402 = vand.u32 2147483647, %v2392
    %vm2403 = vcmp.eq.f32.partialorder %v2402, 8.507059e+37
    %v2404 = vand.u32 %v2392, 2147483648
    %v2405 = vor.u32 1.1754944e-38, %v2404
    %v2406 = vsel %vm2403, %v2405, %v2401
    %v2407 = vmul.f32 1.0, %v2406
    %v2408 = vtanh.pop %v2388
    %v2410 = vrot.slane %v2351, 2
    %v2412 = vmul.f32 %v2407, %v2410
    %2414 = vrot.lane.b32.xlu0 %v2408, 64
    %v2415 = vpop.permute.xlu0 %2414
    %v2417 = vmul.f32 %v2407, %v2415
    %2419 = vrot.lane.b32.xlu0 %v2417, 32
    %v2420 = vpop.permute.xlu0 %2419
    %v2422 = vadd.f32 %v2412, %v2420
    %v2423 = vtanh.pop %v2422
    %2425 = vrot.lane.b32.xlu0 %v2423, 64
    %v2426 = vpop.permute.xlu0 %2425
    %v2428 = vmul.f32 %v2407, %v2426
    %v2429 = vld [vmem:[#allocation2 + $0x18] sm:$0x3]
    %v2431 = vrot.slane %v2428, 2
    %2432 = vrot.lane.b32.xlu0 %v2431, 32
    %v2433 = vpop.permute.xlu0 %2432
    %v2434 = vsel %vm331, %v2433, 0
    %2436 = vmatpush.msra.mxu0 0.0
    %2437 = vmatpush.msra.mxu0 0.0
    %2438 = vmatpush.msra.mxu0 0.0
    %2439 = vmatpush.msra.mxu0 0.0
    %2440 = vmatpush.msra.mxu0 0.0
    %2441 = vmatpush.msra.mxu0 0.0
    %2442 = vmatpush.msra.mxu0 0.0
    %2443 = vmatpush.msra.mxu0 0.0
    %2444 = vmatpush.msra.mxu0 0.0
    %2445 = vmatpush.msra.mxu0 0.0
    %2446 = vmatpush.msra.mxu0 0.0
    %2447 = vmatpush.msra.mxu0 0.0
    %2448 = vmatpush.msra.mxu0 %v2224
    %2449 = vmatpush.msra.mxu0 %v2223
    %2450 = vmatpush.msra.mxu0 %v2222
    %2451 = vmatpush.msra.mxu0 %v2221
    %2452 = vmatmul.f32.gmra.mxu0 %v2434
    %v2453 = vpop.f32.mrf.mxu0
    %v2454 = vadd.f32 0.0, %v2453
    %2455 = vdwg.mxu0
    %v2456 = vadd.f32 %v2429, %v2454
    %v2457 = vxor.u32 %v2456, 2147483648
    %v2458 = vmul.f32 %v2457, 1.442695
    %v2459 = vpow.pop %v2458
    %v2460 = vadd.f32 %v2459, 1.0
    %v2461 = vrcp.pop %v2460
    %v2462 = vmul.f32 %v2460, %v2461
    %v2463 = vsub.f32 1.0, %v2462
    %v2464 = vmul.f32 %v2461, %v2463
    %v2465 = vadd.f32 %v2461, %v2464
    %vm2466 = vweird.f32 %v2460
    %vm2467 = vweird.f32 %v2461
    %vm2468 = vmor %vm2466, %vm2467
    %v2469 = vsel %vm2468, %v2461, %v2465
    %v2470 = vand.u32 2147483647, %v2460
    %vm2471 = vcmp.eq.f32.partialorder %v2470, 8.507059e+37
    %v2472 = vand.u32 %v2460, 2147483648
    %v2473 = vor.u32 1.1754944e-38, %v2472
    %v2474 = vsel %vm2471, %v2473, %v2469
    %v2475 = vmul.f32 1.0, %v2474
    %v2476 = vtanh.pop %v2456
    %v2478 = vrot.slane %v2422, 2
    %v2480 = vmul.f32 %v2475, %v2478
    %2482 = vrot.lane.b32.xlu0 %v2476, 64
    %v2483 = vpop.permute.xlu0 %2482
    %v2485 = vmul.f32 %v2475, %v2483
    %2487 = vrot.lane.b32.xlu0 %v2485, 32
    %v2488 = vpop.permute.xlu0 %2487
    %v2490 = vadd.f32 %v2480, %v2488
    %v2491 = vtanh.pop %v2490
    %2493 = vrot.lane.b32.xlu0 %v2491, 64
    %v2494 = vpop.permute.xlu0 %2493
    %v2496 = vmul.f32 %v2475, %v2494
    %v2497 = vld [vmem:[#allocation2 + $0x8] sm:$0xc0]
    %2499 = vrot.lane.b32.xlu0 %v2496, 32
    %v2500 = vpop.permute.xlu0 %2499
    %v2501 = vsel %vm331, %v2500, 0
    %2503 = vmatpush.msra.mxu0 0.0
    %2504 = vmatpush.msra.mxu0 0.0
    %2505 = vmatpush.msra.mxu0 0.0
    %2506 = vmatpush.msra.mxu0 0.0
    %2507 = vmatpush.msra.mxu0 0.0
    %2508 = vmatpush.msra.mxu0 0.0
    %2509 = vmatpush.msra.mxu0 0.0
    %2510 = vmatpush.msra.mxu0 0.0
    %2511 = vmatpush.msra.mxu0 0.0
    %2512 = vmatpush.msra.mxu0 0.0
    %2513 = vmatpush.msra.mxu0 0.0
    %2514 = vmatpush.msra.mxu0 0.0
    %2515 = vmatpush.msra.mxu0 %v2224
    %2516 = vmatpush.msra.mxu0 %v2223
    %2517 = vmatpush.msra.mxu0 %v2222
    %2518 = vmatpush.msra.mxu0 %v2221
    %2519 = vmatmul.f32.gmra.mxu0 %v2501
    %v2520 = vpop.f32.mrf.mxu0
    %v2521 = vadd.f32 0.0, %v2520
    %2522 = vdwg.mxu0
    %v2524 = vrot.slane %v2521, 2
    %v2526 = vadd.f32 %v2497, %v2524
    %v2527 = vxor.u32 %v2526, 2147483648
    %v2528 = vmul.f32 %v2527, 1.442695
    %v2529 = vpow.pop %v2528
    %v2530 = vadd.f32 %v2529, 1.0
    %v2531 = vrcp.pop %v2530
    %v2532 = vmul.f32 %v2530, %v2531
    %v2533 = vsub.f32 1.0, %v2532
    %v2534 = vmul.f32 %v2531, %v2533
    %v2535 = vadd.f32 %v2531, %v2534
    %vm2536 = vweird.f32 %v2530
    %vm2537 = vweird.f32 %v2531
    %vm2538 = vmor %vm2536, %vm2537
    %v2539 = vsel %vm2538, %v2531, %v2535
    %v2540 = vand.u32 2147483647, %v2530
    %vm2541 = vcmp.eq.f32.partialorder %v2540, 8.507059e+37
    %v2542 = vand.u32 %v2530, 2147483648
    %v2543 = vor.u32 1.1754944e-38, %v2542
    %v2544 = vsel %vm2541, %v2543, %v2539
    %v2545 = vmul.f32 1.0, %v2544
    %v2546 = vtanh.pop %v2526
    %v2548 = vrot.slane %v2490, 2
    %v2550 = vmul.f32 %v2545, %v2548
    %2552 = vrot.lane.b32.xlu0 %v2546, 64
    %v2553 = vpop.permute.xlu0 %2552
    %v2555 = vmul.f32 %v2545, %v2553
    %2557 = vrot.lane.b32.xlu0 %v2555, 32
    %v2558 = vpop.permute.xlu0 %2557
    %v2560 = vadd.f32 %v2550, %v2558
    %v2561 = vtanh.pop %v2560
    %2563 = vrot.lane.b32.xlu0 %v2561, 64
    %v2564 = vpop.permute.xlu0 %2563
    %v2566 = vmul.f32 %v2545, %v2564
    %v2567 = vld [vmem:[#allocation2 + $0x8] sm:$0x30]
    %v2569 = vrot.slane %v2566, 6
    %2570 = vrot.lane.b32.xlu0 %v2569, 32
    %v2571 = vpop.permute.xlu0 %2570
    %v2572 = vsel %vm331, %v2571, 0
    %2574 = vmatpush.msra.mxu0 0.0
    %2575 = vmatpush.msra.mxu0 0.0
    %2576 = vmatpush.msra.mxu0 0.0
    %2577 = vmatpush.msra.mxu0 0.0
    %2578 = vmatpush.msra.mxu0 0.0
    %2579 = vmatpush.msra.mxu0 0.0
    %2580 = vmatpush.msra.mxu0 0.0
    %2581 = vmatpush.msra.mxu0 0.0
    %2582 = vmatpush.msra.mxu0 0.0
    %2583 = vmatpush.msra.mxu0 0.0
    %2584 = vmatpush.msra.mxu0 0.0
    %2585 = vmatpush.msra.mxu0 0.0
    %2586 = vmatpush.msra.mxu0 %v2224
    %2587 = vmatpush.msra.mxu0 %v2223
    %2588 = vmatpush.msra.mxu0 %v2222
    %2589 = vmatpush.msra.mxu0 %v2221
    %2590 = vmatmul.f32.gmra.mxu0 %v2572
    %v2591 = vpop.f32.mrf.mxu0
    %v2592 = vadd.f32 0.0, %v2591
    %2593 = vdwg.mxu0
    %v2595 = vrot.slane %v2592, 4
    %v2597 = vadd.f32 %v2567, %v2595
    %v2598 = vxor.u32 %v2597, 2147483648
    %v2599 = vmul.f32 %v2598, 1.442695
    %v2600 = vpow.pop %v2599
    %v2601 = vadd.f32 %v2600, 1.0
    %v2602 = vrcp.pop %v2601
    %v2603 = vmul.f32 %v2601, %v2602
    %v2604 = vsub.f32 1.0, %v2603
    %v2605 = vmul.f32 %v2602, %v2604
    %v2606 = vadd.f32 %v2602, %v2605
    %vm2607 = vweird.f32 %v2601
    %vm2608 = vweird.f32 %v2602
    %vm2609 = vmor %vm2607, %vm2608
    %v2610 = vsel %vm2609, %v2602, %v2606
    %v2611 = vand.u32 2147483647, %v2601
    %vm2612 = vcmp.eq.f32.partialorder %v2611, 8.507059e+37
    %v2613 = vand.u32 %v2601, 2147483648
    %v2614 = vor.u32 1.1754944e-38, %v2613
    %v2615 = vsel %vm2612, %v2614, %v2610
    %v2616 = vmul.f32 1.0, %v2615
    %v2617 = vtanh.pop %v2597
    %v2619 = vrot.slane %v2560, 2
    %v2621 = vmul.f32 %v2616, %v2619
    %2623 = vrot.lane.b32.xlu0 %v2617, 64
    %v2624 = vpop.permute.xlu0 %2623
    %v2626 = vmul.f32 %v2616, %v2624
    %2628 = vrot.lane.b32.xlu0 %v2626, 32
    %v2629 = vpop.permute.xlu0 %2628
    %v2631 = vadd.f32 %v2621, %v2629
    %v2632 = vtanh.pop %v2631
    %2634 = vrot.lane.b32.xlu0 %v2632, 64
    %v2635 = vpop.permute.xlu0 %2634
    %v2637 = vmul.f32 %v2616, %v2635
    %v2638 = vld [vmem:[#allocation2 + $0x8] sm:$0xc]
    %v2640 = vrot.slane %v2637, 4
    %2641 = vrot.lane.b32.xlu0 %v2640, 32
    %v2642 = vpop.permute.xlu0 %2641
    %v2643 = vsel %vm331, %v2642, 0
    %2645 = vmatpush.msra.mxu0 0.0
    %2646 = vmatpush.msra.mxu0 0.0
    %2647 = vmatpush.msra.mxu0 0.0
    %2648 = vmatpush.msra.mxu0 0.0
    %2649 = vmatpush.msra.mxu0 0.0
    %2650 = vmatpush.msra.mxu0 0.0
    %2651 = vmatpush.msra.mxu0 0.0
    %2652 = vmatpush.msra.mxu0 0.0
    %2653 = vmatpush.msra.mxu0 0.0
    %2654 = vmatpush.msra.mxu0 0.0
    %2655 = vmatpush.msra.mxu0 0.0
    %2656 = vmatpush.msra.mxu0 0.0
    %2657 = vmatpush.msra.mxu0 %v2224
    %2658 = vmatpush.msra.mxu0 %v2223
    %2659 = vmatpush.msra.mxu0 %v2222
    %2660 = vmatpush.msra.mxu0 %v2221
    %2661 = vmatmul.f32.gmra.mxu0 %v2643
    %v2662 = vpop.f32.mrf.mxu0
    %v2663 = vadd.f32 0.0, %v2662
    %2664 = vdwg.mxu0
    %v2666 = vrot.slane %v2663, 6
    %v2668 = vadd.f32 %v2638, %v2666
    %v2669 = vxor.u32 %v2668, 2147483648
    %v2670 = vmul.f32 %v2669, 1.442695
    %v2671 = vpow.pop %v2670
    %v2672 = vadd.f32 %v2671, 1.0
    %v2673 = vrcp.pop %v2672
    %v2674 = vmul.f32 %v2672, %v2673
    %v2675 = vsub.f32 1.0, %v2674
    %v2676 = vmul.f32 %v2673, %v2675
    %v2677 = vadd.f32 %v2673, %v2676
    %vm2678 = vweird.f32 %v2672
    %vm2679 = vweird.f32 %v2673
    %vm2680 = vmor %vm2678, %vm2679
    %v2681 = vsel %vm2680, %v2673, %v2677
    %v2682 = vand.u32 2147483647, %v2672
    %vm2683 = vcmp.eq.f32.partialorder %v2682, 8.507059e+37
    %v2684 = vand.u32 %v2672, 2147483648
    %v2685 = vor.u32 1.1754944e-38, %v2684
    %v2686 = vsel %vm2683, %v2685, %v2681
    %v2687 = vmul.f32 1.0, %v2686
    %v2688 = vtanh.pop %v2668
    %v2690 = vrot.slane %v2631, 2
    %v2692 = vmul.f32 %v2687, %v2690
    %2694 = vrot.lane.b32.xlu0 %v2688, 64
    %v2695 = vpop.permute.xlu0 %2694
    %v2697 = vmul.f32 %v2687, %v2695
    %2699 = vrot.lane.b32.xlu0 %v2697, 32
    %v2700 = vpop.permute.xlu0 %2699
    %v2702 = vadd.f32 %v2692, %v2700
    %v2703 = vtanh.pop %v2702
    %2705 = vrot.lane.b32.xlu0 %v2703, 64
    %v2706 = vpop.permute.xlu0 %2705
    %v2708 = vmul.f32 %v2687, %v2706
    %v2709 = vld [vmem:[#allocation2 + $0x8] sm:$0x3]
    %v2711 = vrot.slane %v2708, 2
    %2712 = vrot.lane.b32.xlu0 %v2711, 32
    %v2713 = vpop.permute.xlu0 %2712
    %v2714 = vsel %vm331, %v2713, 0
    %2716 = vmatpush.msra.mxu0 0.0
    %2717 = vmatpush.msra.mxu0 0.0
    %2718 = vmatpush.msra.mxu0 0.0
    %2719 = vmatpush.msra.mxu0 0.0
    %2720 = vmatpush.msra.mxu0 0.0
    %2721 = vmatpush.msra.mxu0 0.0
    %2722 = vmatpush.msra.mxu0 0.0
    %2723 = vmatpush.msra.mxu0 0.0
    %2724 = vmatpush.msra.mxu0 0.0
    %2725 = vmatpush.msra.mxu0 0.0
    %2726 = vmatpush.msra.mxu0 0.0
    %2727 = vmatpush.msra.mxu0 0.0
    %2728 = vmatpush.msra.mxu0 %v2224
    %2729 = vmatpush.msra.mxu0 %v2223
    %2730 = vmatpush.msra.mxu0 %v2222
    %2731 = vmatpush.msra.mxu0 %v2221
    %2732 = vmatmul.f32.gmra.mxu0 %v2714
    %v2733 = vpop.f32.mrf.mxu0
    %v2734 = vadd.f32 0.0, %v2733
    %2735 = vdwg.mxu0
    %v2736 = vadd.f32 %v2709, %v2734
    %v2737 = vxor.u32 %v2736, 2147483648
    %v2738 = vmul.f32 %v2737, 1.442695
    %v2739 = vpow.pop %v2738
    %v2740 = vadd.f32 %v2739, 1.0
    %v2741 = vrcp.pop %v2740
    %v2742 = vmul.f32 %v2740, %v2741
    %v2743 = vsub.f32 1.0, %v2742
    %v2744 = vmul.f32 %v2741, %v2743
    %v2745 = vadd.f32 %v2741, %v2744
    %vm2746 = vweird.f32 %v2740
    %vm2747 = vweird.f32 %v2741
    %vm2748 = vmor %vm2746, %vm2747
    %v2749 = vsel %vm2748, %v2741, %v2745
    %v2750 = vand.u32 2147483647, %v2740
    %vm2751 = vcmp.eq.f32.partialorder %v2750, 8.507059e+37
    %v2752 = vand.u32 %v2740, 2147483648
    %v2753 = vor.u32 1.1754944e-38, %v2752
    %v2754 = vsel %vm2751, %v2753, %v2749
    %v2755 = vmul.f32 1.0, %v2754
    %v2756 = vtanh.pop %v2736
    %v2758 = vrot.slane %v2702, 2
    %v2760 = vmul.f32 %v2755, %v2758
    %2762 = vrot.lane.b32.xlu0 %v2756, 64
    %v2763 = vpop.permute.xlu0 %2762
    %v2765 = vmul.f32 %v2755, %v2763
    %2767 = vrot.lane.b32.xlu0 %v2765, 32
    %v2768 = vpop.permute.xlu0 %2767
    %v2770 = vadd.f32 %v2760, %v2768
    %v2771 = vtanh.pop %v2770
    %2773 = vrot.lane.b32.xlu0 %v2771, 64
    %v2774 = vpop.permute.xlu0 %2773
    %v2776 = vmul.f32 %v2755, %v2774
    %v2777 = vsel %vm885, %v2776, %v2708
    %v2778 = vsel %vm887, %v2777, %v2637
    %v2779 = vsel %vm889, %v2778, %v2566
    %v2780 = vsel %vm885, %v2496, %v2428
    %v2781 = vsel %vm887, %v2780, %v2357
    %v2782 = vsel %vm889, %v2781, %v2286
    %2785 = vrot.lane.b32.xlu0 %v2217, 32
    %v2786 = vpop.permute.xlu0 %2785
    %2787 = vrot.lane.b32.xlu0 %v2220, 32
    %v2788 = vpop.permute.xlu0 %2787
    %2793 = vrot.lane.b32.xlu0 %v2779, 64
    %v2794 = vpop.permute.xlu0 %2793
    %2795 = vrot.lane.b32.xlu0 %v2782, 64
    %v2796 = vpop.permute.xlu0 %2795
    %v2799 = vsel %vm331, %v2786, %v2794
    %v2800 = vsel %vm331, %v2788, %v2796
    %v2801 = vadd.f32 %v2799, %v1658
    %v2802 = vadd.f32 %v2800, %v1659
    %v2803 = vsel %vm1476, %v2801, 0.0
    %v2804 = vsel %vm1476, %v2802, 0.0
    %v2805 = vmul.f32 %v2803, %v2803
    %v2806 = vmul.f32 %v2804, %v2804
    %2807 = vadd.xlane.f32.xlu0 %v2805
    %v2808 = vpop.xlane.xlu0 %2807
    %2809 = vadd.xlane.f32.xlu0 %v2806
    %v2810 = vpop.xlane.xlu0 %2809
    %v2812 = vrot.slane %v2808, 2
    %v2814 = vmax.f32 %v2808, %v2812
    %v2815 = vrot.slane %v2808, 4
    %v2817 = vmax.f32 %v2814, %v2815
    %v2818 = vrot.slane %v2808, 6
    %v2820 = vmax.f32 %v2817, %v2818
    %v2821 = vmax.f32 %v2820, %v2810
    %v2823 = vrot.slane %v2810, 2
    %v2825 = vmax.f32 %v2821, %v2823
    %v2826 = vrot.slane %v2810, 4
    %v2828 = vmax.f32 %v2825, %v2826
    %v2829 = vrot.slane %v2810, 6
    %v2831 = vmax.f32 %v2828, %v2829
    %v2832 = vrsqrt.pop %v2831
    %v2833 = vmul.f32 %v2832, %v2831
    %v2834 = vmul.f32 %v2833, %v2832
    %v2835 = vmul.f32 0.5, %v2834
    %v2836 = vsub.f32 1.5, %v2835
    %v2837 = vmul.f32 %v2832, %v2836
    %v2838 = vmul.f32 %v2831, %v2837
    %vm2839 = vcmp.eq.f32.partialorder %v2831, inf
    %v2840 = vsel %vm2839, %v2831, %v2838
    %vm2841 = vcmp.eq.f32.partialorder %v2831, 0.0
    %v2842 = vand.u32 %v2831, 2147483648
    %v2843 = vsel %vm2841, %v2842, %v2840
    %v2844 = vadd.f32 %v2843, 0.001
    %v2845 = vrcp.pop %v2844
    %v2846 = vmul.f32 %v2844, %v2845
    %v2847 = vsub.f32 1.0, %v2846
    %v2848 = vmul.f32 %v2845, %v2847
    %v2849 = vadd.f32 %v2845, %v2848
    %vm2850 = vweird.f32 %v2844
    %vm2851 = vweird.f32 %v2845
    %vm2852 = vmor %vm2850, %vm2851
    %v2853 = vsel %vm2852, %v2845, %v2849
    %v2854 = vand.u32 2147483647, %v2844
    %vm2855 = vcmp.eq.f32.partialorder %v2854, 8.507059e+37
    %v2856 = vand.u32 %v2844, 2147483648
    %v2857 = vor.u32 1.1754944e-38, %v2856
    %v2858 = vsel %vm2855, %v2857, %v2853
    %v2859 = vmul.f32 1.0, %v2858
    %v2861 = vrot.slane %v2859, 6
    %v2863 = vrot.slane %v2859, 4
    %v2865 = vrot.slane %v2859, 2
    %v2867 = vsel %vm885, %v2859, %v2861
    %v2868 = vsel %vm887, %v2867, %v2863
    %v2869 = vsel %vm889, %v2868, %v2865
    %2871 = vset.pattern.permute.xlu0 0
    %2872 = vperm.xlu0 %2871, %v2869
    %v2873 = vpop.permute.xlu0 %2872
    %v2875 = vmul.f32 %v2803, %v2873
    %v2876 = vmul.f32 %v2804, %v2873
    %v2877 = vld [vmem:[#allocation5] sm:$0xff]
    %v2878 = vld [vmem:[#allocation5 + $0x8] sm:$0xff]
    %v2879 = vld [vmem:[#allocation5 + $0x10] sm:$0xff]
    %v2880 = vld [vmem:[#allocation5 + $0x18] sm:$0xff]
    %v2881 = vld [vmem:[#allocation5 + $0x20] sm:$0xff]
    %v2882 = vld [vmem:[#allocation5 + $0x28] sm:$0xff]
    %v2883 = vld [vmem:[#allocation5 + $0x30] sm:$0xff]
    %v2884 = vld [vmem:[#allocation5 + $0x38] sm:$0xff]
    %v2885 = vld [vmem:[#allocation5 + $0x40] sm:$0xff]
    %v2886 = vld [vmem:[#allocation5 + $0x48] sm:$0xff]
    %v2887 = vld [vmem:[#allocation5 + $0x50] sm:$0xff]
    %v2888 = vld [vmem:[#allocation5 + $0x58] sm:$0xff]
    %v2889 = vld [vmem:[#allocation5 + $0x60] sm:$0xff]
    %v2890 = vld [vmem:[#allocation5 + $0x68] sm:$0xff]
    %v2891 = vld [vmem:[#allocation5 + $0x70] sm:$0xff]
    %v2892 = vld [vmem:[#allocation5 + $0x78] sm:$0xff]
    %v2893 = vld [vmem:[#allocation5 + $0x80] sm:$0xff]
    %v2894 = vld [vmem:[#allocation5 + $0x88] sm:$0xff]
    %v2895 = vld [vmem:[#allocation5 + $0x90] sm:$0xff]
    %v2896 = vld [vmem:[#allocation5 + $0x98] sm:$0xff]
    %v2897 = vld [vmem:[#allocation5 + $0xa0] sm:$0xff]
    %v2898 = vld [vmem:[#allocation5 + $0xa8] sm:$0xff]
    %v2899 = vld [vmem:[#allocation5 + $0xb0] sm:$0xff]
    %v2900 = vld [vmem:[#allocation5 + $0xb8] sm:$0xff]
    %v2901 = vld [vmem:[#allocation5 + $0xc0] sm:$0xff]
    %v2902 = vld [vmem:[#allocation5 + $0xc8] sm:$0xff]
    %v2903 = vld [vmem:[#allocation5 + $0xd0] sm:$0xff]
    %v2904 = vld [vmem:[#allocation5 + $0xd8] sm:$0xff]
    %v2905 = vld [vmem:[#allocation5 + $0xe0] sm:$0xff]
    %v2906 = vld [vmem:[#allocation5 + $0xe8] sm:$0xff]
    %v2907 = vld [vmem:[#allocation5 + $0xf0] sm:$0xff]
    %v2908 = vld [vmem:[#allocation5 + $0xf8] sm:$0xff]
    %v2909 = vld [vmem:[#allocation5 + $0x100] sm:$0xff]
    %v2910 = vld [vmem:[#allocation5 + $0x108] sm:$0xff]
    %v2911 = vld [vmem:[#allocation5 + $0x110] sm:$0xff]
    %v2912 = vld [vmem:[#allocation5 + $0x118] sm:$0xff]
    %v2913 = vld [vmem:[#allocation5 + $0x120] sm:$0xff]
    %v2914 = vld [vmem:[#allocation5 + $0x128] sm:$0xff]
    %v2915 = vld [vmem:[#allocation5 + $0x130] sm:$0xff]
    %v2916 = vld [vmem:[#allocation5 + $0x138] sm:$0xff]
    %v2917 = vld [vmem:[#allocation5 + $0x140] sm:$0xff]
    %v2918 = vld [vmem:[#allocation5 + $0x148] sm:$0xff]
    %v2919 = vld [vmem:[#allocation5 + $0x150] sm:$0xff]
    %v2920 = vld [vmem:[#allocation5 + $0x158] sm:$0xff]
    %v2921 = vld [vmem:[#allocation5 + $0x160] sm:$0xff]
    %v2922 = vld [vmem:[#allocation5 + $0x168] sm:$0xff]
    %v2923 = vld [vmem:[#allocation5 + $0x170] sm:$0xff]
    %v2924 = vld [vmem:[#allocation5 + $0x178] sm:$0xff]
    %v2925 = vld [vmem:[#allocation5 + $0x180] sm:$0xff]
    %v2926 = vld [vmem:[#allocation5 + $0x188] sm:$0xff]
    %v2927 = vld [vmem:[#allocation5 + $0x190] sm:$0xff]
    %v2928 = vld [vmem:[#allocation5 + $0x198] sm:$0xff]
    %v2929 = vld [vmem:[#allocation5 + $0x1a0] sm:$0xff]
    %v2930 = vld [vmem:[#allocation5 + $0x1a8] sm:$0xff]
    %v2931 = vld [vmem:[#allocation5 + $0x1b0] sm:$0xff]
    %v2932 = vld [vmem:[#allocation5 + $0x1b8] sm:$0xff]
    %v2933 = vld [vmem:[#allocation5 + $0x1c0] sm:$0xff]
    %v2934 = vld [vmem:[#allocation5 + $0x1c8] sm:$0xff]
    %v2935 = vld [vmem:[#allocation5 + $0x1d0] sm:$0xff]
    %v2936 = vld [vmem:[#allocation5 + $0x1d8] sm:$0xff]
    %v2937 = vld [vmem:[#allocation5 + $0x1e0] sm:$0xff]
    %v2938 = vld [vmem:[#allocation5 + $0x1e8] sm:$0xff]
    %v2939 = vld [vmem:[#allocation5 + $0x1f0] sm:$0xff]
    %v2940 = vld [vmem:[#allocation5 + $0x1f8] sm:$0xff]
    %v2941 = vld [vmem:[#allocation5 + $0x200] sm:$0xff]
    %v2942 = vld [vmem:[#allocation5 + $0x208] sm:$0xff]
    %v2943 = vld [vmem:[#allocation5 + $0x210] sm:$0xff]
    %v2944 = vld [vmem:[#allocation5 + $0x218] sm:$0xff]
    %v2945 = vld [vmem:[#allocation5 + $0x220] sm:$0xff]
    %v2946 = vld [vmem:[#allocation5 + $0x228] sm:$0xff]
    %v2947 = vld [vmem:[#allocation5 + $0x230] sm:$0xff]
    %v2948 = vld [vmem:[#allocation5 + $0x238] sm:$0xff]
    %v2949 = vld [vmem:[#allocation5 + $0x240] sm:$0xff]
    %v2950 = vld [vmem:[#allocation5 + $0x248] sm:$0xff]
    %v2951 = vld [vmem:[#allocation5 + $0x250] sm:$0xff]
    %v2952 = vld [vmem:[#allocation5 + $0x258] sm:$0xff]
    %v2953 = vld [vmem:[#allocation5 + $0x260] sm:$0xff]
    %v2954 = vld [vmem:[#allocation5 + $0x268] sm:$0xff]
    %v2955 = vld [vmem:[#allocation5 + $0x270] sm:$0xff]
    %v2956 = vld [vmem:[#allocation5 + $0x278] sm:$0xff]
    %v2957 = vld [vmem:[#allocation5 + $0x280] sm:$0xff]
    %v2958 = vld [vmem:[#allocation5 + $0x288] sm:$0xff]
    %v2959 = vld [vmem:[#allocation5 + $0x290] sm:$0xff]
    %v2960 = vld [vmem:[#allocation5 + $0x298] sm:$0xff]
    %v2961 = vld [vmem:[#allocation5 + $0x2a0] sm:$0xff]
    %v2962 = vld [vmem:[#allocation5 + $0x2a8] sm:$0xff]
    %v2963 = vld [vmem:[#allocation5 + $0x2b0] sm:$0xff]
    %v2964 = vld [vmem:[#allocation5 + $0x2b8] sm:$0xff]
    %v2965 = vld [vmem:[#allocation5 + $0x2c0] sm:$0xff]
    %v2966 = vld [vmem:[#allocation5 + $0x2c8] sm:$0xff]
    %v2967 = vld [vmem:[#allocation5 + $0x2d0] sm:$0xff]
    %v2968 = vld [vmem:[#allocation5 + $0x2d8] sm:$0xff]
    %v2969 = vld [vmem:[#allocation5 + $0x2e0] sm:$0xff]
    %v2970 = vld [vmem:[#allocation5 + $0x2e8] sm:$0xff]
    %v2971 = vld [vmem:[#allocation5 + $0x2f0] sm:$0xff]
    %v2972 = vld [vmem:[#allocation5 + $0x2f8] sm:$0xff]
    %v2973 = vld [vmem:[#allocation5 + $0x300] sm:$0xff]
    %v2974 = vld [vmem:[#allocation5 + $0x308] sm:$0xff]
    %v2975 = vld [vmem:[#allocation5 + $0x310] sm:$0xff]
    %v2976 = vld [vmem:[#allocation5 + $0x318] sm:$0xff]
    %v2977 = vld [vmem:[#allocation5 + $0x320] sm:$0xff]
    %v2978 = vld [vmem:[#allocation5 + $0x328] sm:$0xff]
    %v2979 = vld [vmem:[#allocation5 + $0x330] sm:$0xff]
    %v2980 = vld [vmem:[#allocation5 + $0x338] sm:$0xff]
    %v2981 = vld [vmem:[#allocation5 + $0x340] sm:$0xff]
    %v2982 = vld [vmem:[#allocation5 + $0x348] sm:$0xff]
    %v2983 = vld [vmem:[#allocation5 + $0x350] sm:$0xff]
    %v2984 = vld [vmem:[#allocation5 + $0x358] sm:$0xff]
    %v2985 = vld [vmem:[#allocation5 + $0x360] sm:$0xff]
    %v2986 = vld [vmem:[#allocation5 + $0x368] sm:$0xff]
    %v2987 = vld [vmem:[#allocation5 + $0x370] sm:$0xff]
    %v2988 = vld [vmem:[#allocation5 + $0x378] sm:$0xff]
    %v2989 = vld [vmem:[#allocation5 + $0x380] sm:$0xff]
    %v2990 = vld [vmem:[#allocation5 + $0x388] sm:$0xff]
    %v2991 = vld [vmem:[#allocation5 + $0x390] sm:$0xff]
    %v2992 = vld [vmem:[#allocation5 + $0x398] sm:$0xff]
    %v2993 = vld [vmem:[#allocation5 + $0x3a0] sm:$0xff]
    %v2994 = vld [vmem:[#allocation5 + $0x3a8] sm:$0xff]
    %v2995 = vld [vmem:[#allocation5 + $0x3b0] sm:$0xff]
    %v2996 = vld [vmem:[#allocation5 + $0x3b8] sm:$0xff]
    %v2997 = vld [vmem:[#allocation5 + $0x3c0] sm:$0xff]
    %v2998 = vld [vmem:[#allocation5 + $0x3c8] sm:$0xff]
    %v2999 = vld [vmem:[#allocation5 + $0x3d0] sm:$0xff]
    %v3000 = vld [vmem:[#allocation5 + $0x3d8] sm:$0xff]
    %v3001 = vld [vmem:[#allocation5 + $0x3e0] sm:$0xff]
    %v3002 = vld [vmem:[#allocation5 + $0x3e8] sm:$0xff]
    %v3003 = vld [vmem:[#allocation5 + $0x3f0] sm:$0xff]
    %v3004 = vld [vmem:[#allocation5 + $0x3f8] sm:$0xff]
    %v3005 = vld [vmem:[%s14] sm:$0xff]
    %v3007 = vperm.slane %v3005, 0
    %v3008 = vperm.slane %v3005, 1
    %v3009 = vperm.slane %v3005, 2
    %v3010 = vperm.slane %v3005, 3
    %v3011 = vperm.slane %v3005, 4
    %v3012 = vperm.slane %v3005, 5
    %v3013 = vperm.slane %v3005, 6
    %v3014 = vperm.slane %v3005, 7
    %3023 = vmatpush.msra.mxu0 %v2997
    %3024 = vmatpush.msra.mxu0 %v2989
    %3025 = vmatpush.msra.mxu0 %v2981
    %3026 = vmatpush.msra.mxu0 %v2973
    %3027 = vmatpush.msra.mxu0 %v2965
    %3028 = vmatpush.msra.mxu0 %v2957
    %3029 = vmatpush.msra.mxu0 %v2949
    %3030 = vmatpush.msra.mxu0 %v2941
    %3031 = vmatpush.msra.mxu0 %v2933
    %3032 = vmatpush.msra.mxu0 %v2925
    %3033 = vmatpush.msra.mxu0 %v2917
    %3034 = vmatpush.msra.mxu0 %v2909
    %3035 = vmatpush.msra.mxu0 %v2901
    %3036 = vmatpush.msra.mxu0 %v2893
    %3037 = vmatpush.msra.mxu0 %v2885
    %3038 = vmatpush.msra.mxu0 %v2877
    %3039 = vmatmul.f32.gmra.mxu0 %v2875
    %v3040 = vpop.f32.mrf.mxu0
    %v3041 = vadd.f32 %v3007, %v3040
    %3042 = vmatmul.f32.gmra.mxu0 %v2876
    %v3043 = vpop.f32.mrf.mxu0
    %v3044 = vadd.f32 %v3007, %v3043
    %3045 = vdwg.mxu0
    %3046 = vmatpush.msra.mxu0 %v2998
    %3047 = vmatpush.msra.mxu0 %v2990
    %3048 = vmatpush.msra.mxu0 %v2982
    %3049 = vmatpush.msra.mxu0 %v2974
    %3050 = vmatpush.msra.mxu0 %v2966
    %3051 = vmatpush.msra.mxu0 %v2958
    %3052 = vmatpush.msra.mxu0 %v2950
    %3053 = vmatpush.msra.mxu0 %v2942
    %3054 = vmatpush.msra.mxu0 %v2934
    %3055 = vmatpush.msra.mxu0 %v2926
    %3056 = vmatpush.msra.mxu0 %v2918
    %3057 = vmatpush.msra.mxu0 %v2910
    %3058 = vmatpush.msra.mxu0 %v2902
    %3059 = vmatpush.msra.mxu0 %v2894
    %3060 = vmatpush.msra.mxu0 %v2886
    %3061 = vmatpush.msra.mxu0 %v2878
    %3062 = vmatmul.f32.gmra.mxu0 %v2875
    %v3063 = vpop.f32.mrf.mxu0
    %v3064 = vadd.f32 %v3008, %v3063
    %3065 = vmatmul.f32.gmra.mxu0 %v2876
    %v3066 = vpop.f32.mrf.mxu0
    %v3067 = vadd.f32 %v3008, %v3066
    %3068 = vdwg.mxu0
    %3069 = vmatpush.msra.mxu0 %v2999
    %3070 = vmatpush.msra.mxu0 %v2991
    %3071 = vmatpush.msra.mxu0 %v2983
    %3072 = vmatpush.msra.mxu0 %v2975
    %3073 = vmatpush.msra.mxu0 %v2967
    %3074 = vmatpush.msra.mxu0 %v2959
    %3075 = vmatpush.msra.mxu0 %v2951
    %3076 = vmatpush.msra.mxu0 %v2943
    %3077 = vmatpush.msra.mxu0 %v2935
    %3078 = vmatpush.msra.mxu0 %v2927
    %3079 = vmatpush.msra.mxu0 %v2919
    %3080 = vmatpush.msra.mxu0 %v2911
    %3081 = vmatpush.msra.mxu0 %v2903
    %3082 = vmatpush.msra.mxu0 %v2895
    %3083 = vmatpush.msra.mxu0 %v2887
    %3084 = vmatpush.msra.mxu0 %v2879
    %3085 = vmatmul.f32.gmra.mxu0 %v2875
    %v3086 = vpop.f32.mrf.mxu0
    %v3087 = vadd.f32 %v3009, %v3086
    %3088 = vmatmul.f32.gmra.mxu0 %v2876
    %v3089 = vpop.f32.mrf.mxu0
    %v3090 = vadd.f32 %v3009, %v3089
    %3091 = vdwg.mxu0
    %3092 = vmatpush.msra.mxu0 %v3000
    %3093 = vmatpush.msra.mxu0 %v2992
    %3094 = vmatpush.msra.mxu0 %v2984
    %3095 = vmatpush.msra.mxu0 %v2976
    %3096 = vmatpush.msra.mxu0 %v2968
    %3097 = vmatpush.msra.mxu0 %v2960
    %3098 = vmatpush.msra.mxu0 %v2952
    %3099 = vmatpush.msra.mxu0 %v2944
    %3100 = vmatpush.msra.mxu0 %v2936
    %3101 = vmatpush.msra.mxu0 %v2928
    %3102 = vmatpush.msra.mxu0 %v2920
    %3103 = vmatpush.msra.mxu0 %v2912
    %3104 = vmatpush.msra.mxu0 %v2904
    %3105 = vmatpush.msra.mxu0 %v2896
    %3106 = vmatpush.msra.mxu0 %v2888
    %3107 = vmatpush.msra.mxu0 %v2880
    %3108 = vmatmul.f32.gmra.mxu0 %v2875
    %v3109 = vpop.f32.mrf.mxu0
    %v3110 = vadd.f32 %v3010, %v3109
    %3111 = vmatmul.f32.gmra.mxu0 %v2876
    %v3112 = vpop.f32.mrf.mxu0
    %v3113 = vadd.f32 %v3010, %v3112
    %3114 = vdwg.mxu0
    %3115 = vmatpush.msra.mxu0 %v3001
    %3116 = vmatpush.msra.mxu0 %v2993
    %3117 = vmatpush.msra.mxu0 %v2985
    %3118 = vmatpush.msra.mxu0 %v2977
    %3119 = vmatpush.msra.mxu0 %v2969
    %3120 = vmatpush.msra.mxu0 %v2961
    %3121 = vmatpush.msra.mxu0 %v2953
    %3122 = vmatpush.msra.mxu0 %v2945
    %3123 = vmatpush.msra.mxu0 %v2937
    %3124 = vmatpush.msra.mxu0 %v2929
    %3125 = vmatpush.msra.mxu0 %v2921
    %3126 = vmatpush.msra.mxu0 %v2913
    %3127 = vmatpush.msra.mxu0 %v2905
    %3128 = vmatpush.msra.mxu0 %v2897
    %3129 = vmatpush.msra.mxu0 %v2889
    %3130 = vmatpush.msra.mxu0 %v2881
    %3131 = vmatmul.f32.gmra.mxu0 %v2875
    %v3132 = vpop.f32.mrf.mxu0
    %v3133 = vadd.f32 %v3011, %v3132
    %3134 = vmatmul.f32.gmra.mxu0 %v2876
    %v3135 = vpop.f32.mrf.mxu0
    %v3136 = vadd.f32 %v3011, %v3135
    %3137 = vdwg.mxu0
    %3138 = vmatpush.msra.mxu0 %v3002
    %3139 = vmatpush.msra.mxu0 %v2994
    %3140 = vmatpush.msra.mxu0 %v2986
    %3141 = vmatpush.msra.mxu0 %v2978
    %3142 = vmatpush.msra.mxu0 %v2970
    %3143 = vmatpush.msra.mxu0 %v2962
    %3144 = vmatpush.msra.mxu0 %v2954
    %3145 = vmatpush.msra.mxu0 %v2946
    %3146 = vmatpush.msra.mxu0 %v2938
    %3147 = vmatpush.msra.mxu0 %v2930
    %3148 = vmatpush.msra.mxu0 %v2922
    %3149 = vmatpush.msra.mxu0 %v2914
    %3150 = vmatpush.msra.mxu0 %v2906
    %3151 = vmatpush.msra.mxu0 %v2898
    %3152 = vmatpush.msra.mxu0 %v2890
    %3153 = vmatpush.msra.mxu0 %v2882
    %3154 = vmatmul.f32.gmra.mxu0 %v2875
    %v3155 = vpop.f32.mrf.mxu0
    %v3156 = vadd.f32 %v3012, %v3155
    %3157 = vmatmul.f32.gmra.mxu0 %v2876
    %v3158 = vpop.f32.mrf.mxu0
    %v3159 = vadd.f32 %v3012, %v3158
    %3160 = vdwg.mxu0
    %3161 = vmatpush.msra.mxu0 %v3003
    %3162 = vmatpush.msra.mxu0 %v2995
    %3163 = vmatpush.msra.mxu0 %v2987
    %3164 = vmatpush.msra.mxu0 %v2979
    %3165 = vmatpush.msra.mxu0 %v2971
    %3166 = vmatpush.msra.mxu0 %v2963
    %3167 = vmatpush.msra.mxu0 %v2955
    %3168 = vmatpush.msra.mxu0 %v2947
    %3169 = vmatpush.msra.mxu0 %v2939
    %3170 = vmatpush.msra.mxu0 %v2931
    %3171 = vmatpush.msra.mxu0 %v2923
    %3172 = vmatpush.msra.mxu0 %v2915
    %3173 = vmatpush.msra.mxu0 %v2907
    %3174 = vmatpush.msra.mxu0 %v2899
    %3175 = vmatpush.msra.mxu0 %v2891
    %3176 = vmatpush.msra.mxu0 %v2883
    %3177 = vmatmul.f32.gmra.mxu0 %v2875
    %v3178 = vpop.f32.mrf.mxu0
    %v3179 = vadd.f32 %v3013, %v3178
    %3180 = vmatmul.f32.gmra.mxu0 %v2876
    %v3181 = vpop.f32.mrf.mxu0
    %v3182 = vadd.f32 %v3013, %v3181
    %3183 = vdwg.mxu0
    %3184 = vmatpush.msra.mxu0 %v3004
    %3185 = vmatpush.msra.mxu0 %v2996
    %3186 = vmatpush.msra.mxu0 %v2988
    %3187 = vmatpush.msra.mxu0 %v2980
    %3188 = vmatpush.msra.mxu0 %v2972
    %3189 = vmatpush.msra.mxu0 %v2964
    %3190 = vmatpush.msra.mxu0 %v2956
    %3191 = vmatpush.msra.mxu0 %v2948
    %3192 = vmatpush.msra.mxu0 %v2940
    %3193 = vmatpush.msra.mxu0 %v2932
    %3194 = vmatpush.msra.mxu0 %v2924
    %3195 = vmatpush.msra.mxu0 %v2916
    %3196 = vmatpush.msra.mxu0 %v2908
    %3197 = vmatpush.msra.mxu0 %v2900
    %3198 = vmatpush.msra.mxu0 %v2892
    %3199 = vmatpush.msra.mxu0 %v2884
    %3200 = vmatmul.f32.gmra.mxu0 %v2875
    %v3201 = vpop.f32.mrf.mxu0
    %v3202 = vadd.f32 %v3014, %v3201
    %3203 = vmatmul.f32.gmra.mxu0 %v2876
    %v3204 = vpop.f32.mrf.mxu0
    %v3205 = vadd.f32 %v3014, %v3204
    %3206 = vdwg.mxu0
    %v3207 = vmax.f32 %v3041, 0.0
    %v3208 = vmax.f32 %v3064, 0.0
    %v3209 = vmax.f32 %v3087, 0.0
    %v3210 = vmax.f32 %v3110, 0.0
    %v3211 = vmax.f32 %v3133, 0.0
    %v3212 = vmax.f32 %v3156, 0.0
    %v3213 = vmax.f32 %v3179, 0.0
    %v3214 = vmax.f32 %v3202, 0.0
    %v3215 = vmax.f32 %v3044, 0.0
    %v3216 = vmax.f32 %v3067, 0.0
    %v3217 = vmax.f32 %v3090, 0.0
    %v3218 = vmax.f32 %v3113, 0.0
    %v3219 = vmax.f32 %v3136, 0.0
    %v3220 = vmax.f32 %v3159, 0.0
    %v3221 = vmax.f32 %v3182, 0.0
    %v3222 = vmax.f32 %v3205, 0.0
    %v3223 = vld [vmem:[#allocation7] sm:$0xff]
    %v3224 = vld [vmem:[#allocation7 + $0x8] sm:$0xff]
    %v3225 = vld [vmem:[#allocation7 + $0x10] sm:$0xff]
    %v3226 = vld [vmem:[#allocation7 + $0x18] sm:$0xff]
    %v3227 = vld [vmem:[#allocation7 + $0x20] sm:$0xff]
    %v3228 = vld [vmem:[#allocation7 + $0x28] sm:$0xff]
    %v3229 = vld [vmem:[#allocation7 + $0x30] sm:$0xff]
    %v3230 = vld [vmem:[#allocation7 + $0x38] sm:$0xff]
    %v3231 = vld [vmem:[#allocation7 + $0x40] sm:$0xff]
    %v3232 = vld [vmem:[#allocation7 + $0x48] sm:$0xff]
    %v3233 = vld [vmem:[#allocation7 + $0x50] sm:$0xff]
    %v3234 = vld [vmem:[#allocation7 + $0x58] sm:$0xff]
    %v3235 = vld [vmem:[#allocation7 + $0x60] sm:$0xff]
    %v3236 = vld [vmem:[#allocation7 + $0x68] sm:$0xff]
    %v3237 = vld [vmem:[#allocation7 + $0x70] sm:$0xff]
    %v3238 = vld [vmem:[#allocation7 + $0x78] sm:$0xff]
    %v3239 = vld [vmem:[#allocation7 + $0x80] sm:$0xff]
    %v3240 = vld [vmem:[#allocation7 + $0x88] sm:$0xff]
    %v3241 = vld [vmem:[#allocation7 + $0x90] sm:$0xff]
    %v3242 = vld [vmem:[#allocation7 + $0x98] sm:$0xff]
    %v3243 = vld [vmem:[#allocation7 + $0xa0] sm:$0xff]
    %v3244 = vld [vmem:[#allocation7 + $0xa8] sm:$0xff]
    %v3245 = vld [vmem:[#allocation7 + $0xb0] sm:$0xff]
    %v3246 = vld [vmem:[#allocation7 + $0xb8] sm:$0xff]
    %v3247 = vld [vmem:[#allocation7 + $0xc0] sm:$0xff]
    %v3248 = vld [vmem:[#allocation7 + $0xc8] sm:$0xff]
    %v3249 = vld [vmem:[#allocation7 + $0xd0] sm:$0xff]
    %v3250 = vld [vmem:[#allocation7 + $0xd8] sm:$0xff]
    %v3251 = vld [vmem:[#allocation7 + $0xe0] sm:$0xff]
    %v3252 = vld [vmem:[#allocation7 + $0xe8] sm:$0xff]
    %v3253 = vld [vmem:[#allocation7 + $0xf0] sm:$0xff]
    %v3254 = vld [vmem:[#allocation7 + $0xf8] sm:$0xff]
    %v3255 = vld [vmem:[#allocation7 + $0x100] sm:$0xff]
    %v3256 = vld [vmem:[#allocation7 + $0x108] sm:$0xff]
    %v3257 = vld [vmem:[#allocation7 + $0x110] sm:$0xff]
    %v3258 = vld [vmem:[#allocation7 + $0x118] sm:$0xff]
    %v3259 = vld [vmem:[#allocation7 + $0x120] sm:$0xff]
    %v3260 = vld [vmem:[#allocation7 + $0x128] sm:$0xff]
    %v3261 = vld [vmem:[#allocation7 + $0x130] sm:$0xff]
    %v3262 = vld [vmem:[#allocation7 + $0x138] sm:$0xff]
    %v3263 = vld [vmem:[#allocation7 + $0x140] sm:$0xff]
    %v3264 = vld [vmem:[#allocation7 + $0x148] sm:$0xff]
    %v3265 = vld [vmem:[#allocation7 + $0x150] sm:$0xff]
    %v3266 = vld [vmem:[#allocation7 + $0x158] sm:$0xff]
    %v3267 = vld [vmem:[#allocation7 + $0x160] sm:$0xff]
    %v3268 = vld [vmem:[#allocation7 + $0x168] sm:$0xff]
    %v3269 = vld [vmem:[#allocation7 + $0x170] sm:$0xff]
    %v3270 = vld [vmem:[#allocation7 + $0x178] sm:$0xff]
    %v3271 = vld [vmem:[#allocation7 + $0x180] sm:$0xff]
    %v3272 = vld [vmem:[#allocation7 + $0x188] sm:$0xff]
    %v3273 = vld [vmem:[#allocation7 + $0x190] sm:$0xff]
    %v3274 = vld [vmem:[#allocation7 + $0x198] sm:$0xff]
    %v3275 = vld [vmem:[#allocation7 + $0x1a0] sm:$0xff]
    %v3276 = vld [vmem:[#allocation7 + $0x1a8] sm:$0xff]
    %v3277 = vld [vmem:[#allocation7 + $0x1b0] sm:$0xff]
    %v3278 = vld [vmem:[#allocation7 + $0x1b8] sm:$0xff]
    %v3279 = vld [vmem:[#allocation7 + $0x1c0] sm:$0xff]
    %v3280 = vld [vmem:[#allocation7 + $0x1c8] sm:$0xff]
    %v3281 = vld [vmem:[#allocation7 + $0x1d0] sm:$0xff]
    %v3282 = vld [vmem:[#allocation7 + $0x1d8] sm:$0xff]
    %v3283 = vld [vmem:[#allocation7 + $0x1e0] sm:$0xff]
    %v3284 = vld [vmem:[#allocation7 + $0x1e8] sm:$0xff]
    %v3285 = vld [vmem:[#allocation7 + $0x1f0] sm:$0xff]
    %v3286 = vld [vmem:[#allocation7 + $0x1f8] sm:$0xff]
    %v3287 = vld [vmem:[#allocation7 + $0x200] sm:$0xff]
    %v3288 = vld [vmem:[#allocation7 + $0x208] sm:$0xff]
    %v3289 = vld [vmem:[#allocation7 + $0x210] sm:$0xff]
    %v3290 = vld [vmem:[#allocation7 + $0x218] sm:$0xff]
    %v3291 = vld [vmem:[#allocation7 + $0x220] sm:$0xff]
    %v3292 = vld [vmem:[#allocation7 + $0x228] sm:$0xff]
    %v3293 = vld [vmem:[#allocation7 + $0x230] sm:$0xff]
    %v3294 = vld [vmem:[#allocation7 + $0x238] sm:$0xff]
    %v3295 = vld [vmem:[#allocation7 + $0x240] sm:$0xff]
    %v3296 = vld [vmem:[#allocation7 + $0x248] sm:$0xff]
    %v3297 = vld [vmem:[#allocation7 + $0x250] sm:$0xff]
    %v3298 = vld [vmem:[#allocation7 + $0x258] sm:$0xff]
    %v3299 = vld [vmem:[#allocation7 + $0x260] sm:$0xff]
    %v3300 = vld [vmem:[#allocation7 + $0x268] sm:$0xff]
    %v3301 = vld [vmem:[#allocation7 + $0x270] sm:$0xff]
    %v3302 = vld [vmem:[#allocation7 + $0x278] sm:$0xff]
    %v3303 = vld [vmem:[#allocation7 + $0x280] sm:$0xff]
    %v3304 = vld [vmem:[#allocation7 + $0x288] sm:$0xff]
    %v3305 = vld [vmem:[#allocation7 + $0x290] sm:$0xff]
    %v3306 = vld [vmem:[#allocation7 + $0x298] sm:$0xff]
    %v3307 = vld [vmem:[#allocation7 + $0x2a0] sm:$0xff]
    %v3308 = vld [vmem:[#allocation7 + $0x2a8] sm:$0xff]
    %v3309 = vld [vmem:[#allocation7 + $0x2b0] sm:$0xff]
    %v3310 = vld [vmem:[#allocation7 + $0x2b8] sm:$0xff]
    %v3311 = vld [vmem:[#allocation7 + $0x2c0] sm:$0xff]
    %v3312 = vld [vmem:[#allocation7 + $0x2c8] sm:$0xff]
    %v3313 = vld [vmem:[#allocation7 + $0x2d0] sm:$0xff]
    %v3314 = vld [vmem:[#allocation7 + $0x2d8] sm:$0xff]
    %v3315 = vld [vmem:[#allocation7 + $0x2e0] sm:$0xff]
    %v3316 = vld [vmem:[#allocation7 + $0x2e8] sm:$0xff]
    %v3317 = vld [vmem:[#allocation7 + $0x2f0] sm:$0xff]
    %v3318 = vld [vmem:[#allocation7 + $0x2f8] sm:$0xff]
    %v3319 = vld [vmem:[#allocation7 + $0x300] sm:$0xff]
    %v3320 = vld [vmem:[#allocation7 + $0x308] sm:$0xff]
    %v3321 = vld [vmem:[#allocation7 + $0x310] sm:$0xff]
    %v3322 = vld [vmem:[#allocation7 + $0x318] sm:$0xff]
    %v3323 = vld [vmem:[#allocation7 + $0x320] sm:$0xff]
    %v3324 = vld [vmem:[#allocation7 + $0x328] sm:$0xff]
    %v3325 = vld [vmem:[#allocation7 + $0x330] sm:$0xff]
    %v3326 = vld [vmem:[#allocation7 + $0x338] sm:$0xff]
    %v3327 = vld [vmem:[#allocation7 + $0x340] sm:$0xff]
    %v3328 = vld [vmem:[#allocation7 + $0x348] sm:$0xff]
    %v3329 = vld [vmem:[#allocation7 + $0x350] sm:$0xff]
    %v3330 = vld [vmem:[#allocation7 + $0x358] sm:$0xff]
    %v3331 = vld [vmem:[#allocation7 + $0x360] sm:$0xff]
    %v3332 = vld [vmem:[#allocation7 + $0x368] sm:$0xff]
    %v3333 = vld [vmem:[#allocation7 + $0x370] sm:$0xff]
    %v3334 = vld [vmem:[#allocation7 + $0x378] sm:$0xff]
    %v3335 = vld [vmem:[#allocation7 + $0x380] sm:$0xff]
    %v3336 = vld [vmem:[#allocation7 + $0x388] sm:$0xff]
    %v3337 = vld [vmem:[#allocation7 + $0x390] sm:$0xff]
    %v3338 = vld [vmem:[#allocation7 + $0x398] sm:$0xff]
    %v3339 = vld [vmem:[#allocation7 + $0x3a0] sm:$0xff]
    %v3340 = vld [vmem:[#allocation7 + $0x3a8] sm:$0xff]
    %v3341 = vld [vmem:[#allocation7 + $0x3b0] sm:$0xff]
    %v3342 = vld [vmem:[#allocation7 + $0x3b8] sm:$0xff]
    %v3343 = vld [vmem:[#allocation7 + $0x3c0] sm:$0xff]
    %v3344 = vld [vmem:[#allocation7 + $0x3c8] sm:$0xff]
    %v3345 = vld [vmem:[#allocation7 + $0x3d0] sm:$0xff]
    %v3346 = vld [vmem:[#allocation7 + $0x3d8] sm:$0xff]
    %v3347 = vld [vmem:[#allocation7 + $0x3e0] sm:$0xff]
    %v3348 = vld [vmem:[#allocation7 + $0x3e8] sm:$0xff]
    %v3349 = vld [vmem:[#allocation7 + $0x3f0] sm:$0xff]
    %v3350 = vld [vmem:[#allocation7 + $0x3f8] sm:$0xff]
    %v3351 = vld [vmem:[%s16] sm:$0x1]
    %v3353 = vperm.slane %v3351, 0
    %3355 = vmatpush.msra.mxu0 %v3238
    %3356 = vmatpush.msra.mxu0 %v3237
    %3357 = vmatpush.msra.mxu0 %v3236
    %3358 = vmatpush.msra.mxu0 %v3235
    %3359 = vmatpush.msra.mxu0 %v3234
    %3360 = vmatpush.msra.mxu0 %v3233
    %3361 = vmatpush.msra.mxu0 %v3232
    %3362 = vmatpush.msra.mxu0 %v3231
    %3363 = vmatpush.msra.mxu0 %v3230
    %3364 = vmatpush.msra.mxu0 %v3229
    %3365 = vmatpush.msra.mxu0 %v3228
    %3366 = vmatpush.msra.mxu0 %v3227
    %3367 = vmatpush.msra.mxu0 %v3226
    %3368 = vmatpush.msra.mxu0 %v3225
    %3369 = vmatpush.msra.mxu0 %v3224
    %3370 = vmatpush.msra.mxu0 %v3223
    %3371 = vmatmul.f32.gmra.mxu0 %v3207
    %v3372 = vpop.f32.mrf.mxu0
    %v3373 = vadd.f32 %v3353, %v3372
    %3374 = vmatmul.f32.gmra.mxu0 %v3215
    %v3375 = vpop.f32.mrf.mxu0
    %v3376 = vadd.f32 %v3353, %v3375
    %3377 = vdwg.mxu0
    %3378 = vmatpush.msra.mxu0 %v3254
    %3379 = vmatpush.msra.mxu0 %v3253
    %3380 = vmatpush.msra.mxu0 %v3252
    %3381 = vmatpush.msra.mxu0 %v3251
    %3382 = vmatpush.msra.mxu0 %v3250
    %3383 = vmatpush.msra.mxu0 %v3249
    %3384 = vmatpush.msra.mxu0 %v3248
    %3385 = vmatpush.msra.mxu0 %v3247
    %3386 = vmatpush.msra.mxu0 %v3246
    %3387 = vmatpush.msra.mxu0 %v3245
    %3388 = vmatpush.msra.mxu0 %v3244
    %3389 = vmatpush.msra.mxu0 %v3243
    %3390 = vmatpush.msra.mxu0 %v3242
    %3391 = vmatpush.msra.mxu0 %v3241
    %3392 = vmatpush.msra.mxu0 %v3240
    %3393 = vmatpush.msra.mxu0 %v3239
    %3394 = vmatmul.f32.gmra.mxu0 %v3208
    %v3395 = vpop.f32.mrf.mxu0
    %v3396 = vadd.f32 %v3373, %v3395
    %3397 = vmatmul.f32.gmra.mxu0 %v3216
    %v3398 = vpop.f32.mrf.mxu0
    %v3399 = vadd.f32 %v3376, %v3398
    %3400 = vdwg.mxu0
    %3401 = vmatpush.msra.mxu0 %v3270
    %3402 = vmatpush.msra.mxu0 %v3269
    %3403 = vmatpush.msra.mxu0 %v3268
    %3404 = vmatpush.msra.mxu0 %v3267
    %3405 = vmatpush.msra.mxu0 %v3266
    %3406 = vmatpush.msra.mxu0 %v3265
    %3407 = vmatpush.msra.mxu0 %v3264
    %3408 = vmatpush.msra.mxu0 %v3263
    %3409 = vmatpush.msra.mxu0 %v3262
    %3410 = vmatpush.msra.mxu0 %v3261
    %3411 = vmatpush.msra.mxu0 %v3260
    %3412 = vmatpush.msra.mxu0 %v3259
    %3413 = vmatpush.msra.mxu0 %v3258
    %3414 = vmatpush.msra.mxu0 %v3257
    %3415 = vmatpush.msra.mxu0 %v3256
    %3416 = vmatpush.msra.mxu0 %v3255
    %3417 = vmatmul.f32.gmra.mxu0 %v3209
    %v3418 = vpop.f32.mrf.mxu0
    %v3419 = vadd.f32 %v3396, %v3418
    %3420 = vmatmul.f32.gmra.mxu0 %v3217
    %v3421 = vpop.f32.mrf.mxu0
    %v3422 = vadd.f32 %v3399, %v3421
    %3423 = vdwg.mxu0
    %3424 = vmatpush.msra.mxu0 %v3286
    %3425 = vmatpush.msra.mxu0 %v3285
    %3426 = vmatpush.msra.mxu0 %v3284
    %3427 = vmatpush.msra.mxu0 %v3283
    %3428 = vmatpush.msra.mxu0 %v3282
    %3429 = vmatpush.msra.mxu0 %v3281
    %3430 = vmatpush.msra.mxu0 %v3280
    %3431 = vmatpush.msra.mxu0 %v3279
    %3432 = vmatpush.msra.mxu0 %v3278
    %3433 = vmatpush.msra.mxu0 %v3277
    %3434 = vmatpush.msra.mxu0 %v3276
    %3435 = vmatpush.msra.mxu0 %v3275
    %3436 = vmatpush.msra.mxu0 %v3274
    %3437 = vmatpush.msra.mxu0 %v3273
    %3438 = vmatpush.msra.mxu0 %v3272
    %3439 = vmatpush.msra.mxu0 %v3271
    %3440 = vmatmul.f32.gmra.mxu0 %v3210
    %v3441 = vpop.f32.mrf.mxu0
    %v3442 = vadd.f32 %v3419, %v3441
    %3443 = vmatmul.f32.gmra.mxu0 %v3218
    %v3444 = vpop.f32.mrf.mxu0
    %v3445 = vadd.f32 %v3422, %v3444
    %3446 = vdwg.mxu0
    %3447 = vmatpush.msra.mxu0 %v3302
    %3448 = vmatpush.msra.mxu0 %v3301
    %3449 = vmatpush.msra.mxu0 %v3300
    %3450 = vmatpush.msra.mxu0 %v3299
    %3451 = vmatpush.msra.mxu0 %v3298
    %3452 = vmatpush.msra.mxu0 %v3297
    %3453 = vmatpush.msra.mxu0 %v3296
    %3454 = vmatpush.msra.mxu0 %v3295
    %3455 = vmatpush.msra.mxu0 %v3294
    %3456 = vmatpush.msra.mxu0 %v3293
    %3457 = vmatpush.msra.mxu0 %v3292
    %3458 = vmatpush.msra.mxu0 %v3291
    %3459 = vmatpush.msra.mxu0 %v3290
    %3460 = vmatpush.msra.mxu0 %v3289
    %3461 = vmatpush.msra.mxu0 %v3288
    %3462 = vmatpush.msra.mxu0 %v3287
    %3463 = vmatmul.f32.gmra.mxu0 %v3211
    %v3464 = vpop.f32.mrf.mxu0
    %v3465 = vadd.f32 %v3442, %v3464
    %3466 = vmatmul.f32.gmra.mxu0 %v3219
    %v3467 = vpop.f32.mrf.mxu0
    %v3468 = vadd.f32 %v3445, %v3467
    %3469 = vdwg.mxu0
    %3470 = vmatpush.msra.mxu0 %v3318
    %3471 = vmatpush.msra.mxu0 %v3317
    %3472 = vmatpush.msra.mxu0 %v3316
    %3473 = vmatpush.msra.mxu0 %v3315
    %3474 = vmatpush.msra.mxu0 %v3314
    %3475 = vmatpush.msra.mxu0 %v3313
    %3476 = vmatpush.msra.mxu0 %v3312
    %3477 = vmatpush.msra.mxu0 %v3311
    %3478 = vmatpush.msra.mxu0 %v3310
    %3479 = vmatpush.msra.mxu0 %v3309
    %3480 = vmatpush.msra.mxu0 %v3308
    %3481 = vmatpush.msra.mxu0 %v3307
    %3482 = vmatpush.msra.mxu0 %v3306
    %3483 = vmatpush.msra.mxu0 %v3305
    %3484 = vmatpush.msra.mxu0 %v3304
    %3485 = vmatpush.msra.mxu0 %v3303
    %3486 = vmatmul.f32.gmra.mxu0 %v3212
    %v3487 = vpop.f32.mrf.mxu0
    %v3488 = vadd.f32 %v3465, %v3487
    %3489 = vmatmul.f32.gmra.mxu0 %v3220
    %v3490 = vpop.f32.mrf.mxu0
    %v3491 = vadd.f32 %v3468, %v3490
    %3492 = vdwg.mxu0
    %3493 = vmatpush.msra.mxu0 %v3334
    %3494 = vmatpush.msra.mxu0 %v3333
    %3495 = vmatpush.msra.mxu0 %v3332
    %3496 = vmatpush.msra.mxu0 %v3331
    %3497 = vmatpush.msra.mxu0 %v3330
    %3498 = vmatpush.msra.mxu0 %v3329
    %3499 = vmatpush.msra.mxu0 %v3328
    %3500 = vmatpush.msra.mxu0 %v3327
    %3501 = vmatpush.msra.mxu0 %v3326
    %3502 = vmatpush.msra.mxu0 %v3325
    %3503 = vmatpush.msra.mxu0 %v3324
    %3504 = vmatpush.msra.mxu0 %v3323
    %3505 = vmatpush.msra.mxu0 %v3322
    %3506 = vmatpush.msra.mxu0 %v3321
    %3507 = vmatpush.msra.mxu0 %v3320
    %3508 = vmatpush.msra.mxu0 %v3319
    %3509 = vmatmul.f32.gmra.mxu0 %v3213
    %v3510 = vpop.f32.mrf.mxu0
    %v3511 = vadd.f32 %v3488, %v3510
    %3512 = vmatmul.f32.gmra.mxu0 %v3221
    %v3513 = vpop.f32.mrf.mxu0
    %v3514 = vadd.f32 %v3491, %v3513
    %3515 = vdwg.mxu0
    %3516 = vmatpush.msra.mxu0 %v3350
    %3517 = vmatpush.msra.mxu0 %v3349
    %3518 = vmatpush.msra.mxu0 %v3348
    %3519 = vmatpush.msra.mxu0 %v3347
    %3520 = vmatpush.msra.mxu0 %v3346
    %3521 = vmatpush.msra.mxu0 %v3345
    %3522 = vmatpush.msra.mxu0 %v3344
    %3523 = vmatpush.msra.mxu0 %v3343
    %3524 = vmatpush.msra.mxu0 %v3342
    %3525 = vmatpush.msra.mxu0 %v3341
    %3526 = vmatpush.msra.mxu0 %v3340
    %3527 = vmatpush.msra.mxu0 %v3339
    %3528 = vmatpush.msra.mxu0 %v3338
    %3529 = vmatpush.msra.mxu0 %v3337
    %3530 = vmatpush.msra.mxu0 %v3336
    %3531 = vmatpush.msra.mxu0 %v3335
    %3532 = vmatmul.f32.gmra.mxu0 %v3214
    %v3533 = vpop.f32.mrf.mxu0
    %v3534 = vadd.f32 %v3511, %v3533
    %3535 = vmatmul.f32.gmra.mxu0 %v3222
    %v3536 = vpop.f32.mrf.mxu0
    %v3537 = vadd.f32 %v3514, %v3536
    %3538 = vdwg.mxu0
    %v3539 = vmax.f32 %v3534, 0.0
    %v3540 = vmax.f32 %v3537, 0.0
    %v3541 = vld [vmem:[%s17] sm:$0xff]
    %v3542 = vld [vmem:[%s17 + $0x8] sm:$0xff]
    %v3543 = vld [vmem:[%s17 + $0x10] sm:$0xff]
    %v3544 = vld [vmem:[%s17 + $0x18] sm:$0xff]
    %v3545 = vld [vmem:[%s17 + $0x20] sm:$0xff]
    %v3546 = vld [vmem:[%s17 + $0x28] sm:$0xff]
    %v3547 = vld [vmem:[%s17 + $0x30] sm:$0xff]
    %v3548 = vld [vmem:[%s17 + $0x38] sm:$0xff]
    %v3549 = vld [vmem:[%s17 + $0x40] sm:$0xff]
    %v3550 = vld [vmem:[%s17 + $0x48] sm:$0xff]
    %v3551 = vld [vmem:[%s17 + $0x50] sm:$0xff]
    %v3552 = vld [vmem:[%s17 + $0x58] sm:$0xff]
    %v3553 = vld [vmem:[%s17 + $0x60] sm:$0xff]
    %v3554 = vld [vmem:[%s17 + $0x68] sm:$0xff]
    %v3555 = vld [vmem:[%s17 + $0x70] sm:$0xff]
    %v3556 = vld [vmem:[%s17 + $0x78] sm:$0xff]
    %v3557 = vld [vmem:[%s17 + $0x80] sm:$0xff]
    %v3558 = vld [vmem:[%s17 + $0x88] sm:$0xff]
    %v3559 = vld [vmem:[%s17 + $0x90] sm:$0xff]
    %v3560 = vld [vmem:[%s17 + $0x98] sm:$0xff]
    %v3561 = vld [vmem:[%s17 + $0xa0] sm:$0xff]
    %v3562 = vld [vmem:[%s17 + $0xa8] sm:$0xff]
    %v3563 = vld [vmem:[%s17 + $0xb0] sm:$0xff]
    %v3564 = vld [vmem:[%s17 + $0xb8] sm:$0xff]
    %v3565 = vld [vmem:[%s17 + $0xc0] sm:$0xff]
    %v3566 = vld [vmem:[%s17 + $0xc8] sm:$0xff]
    %v3567 = vld [vmem:[%s17 + $0xd0] sm:$0xff]
    %v3568 = vld [vmem:[%s17 + $0xd8] sm:$0xff]
    %v3569 = vld [vmem:[%s17 + $0xe0] sm:$0xff]
    %v3570 = vld [vmem:[%s17 + $0xe8] sm:$0xff]
    %v3571 = vld [vmem:[%s17 + $0xf0] sm:$0xff]
    %v3572 = vld [vmem:[%s17 + $0xf8] sm:$0xff]
    %v3573 = vld [vmem:[%s17 + $0x100] sm:$0xff]
    %v3574 = vld [vmem:[%s17 + $0x108] sm:$0xff]
    %v3575 = vld [vmem:[%s17 + $0x110] sm:$0xff]
    %v3576 = vld [vmem:[%s17 + $0x118] sm:$0xff]
    %v3577 = vld [vmem:[%s17 + $0x120] sm:$0xff]
    %v3578 = vld [vmem:[%s17 + $0x128] sm:$0xff]
    %v3579 = vld [vmem:[%s17 + $0x130] sm:$0xff]
    %v3580 = vld [vmem:[%s17 + $0x138] sm:$0xff]
    %v3581 = vld [vmem:[%s17 + $0x140] sm:$0xff]
    %v3582 = vld [vmem:[%s17 + $0x148] sm:$0xff]
    %v3583 = vld [vmem:[%s17 + $0x150] sm:$0xff]
    %v3584 = vld [vmem:[%s17 + $0x158] sm:$0xff]
    %v3585 = vld [vmem:[%s17 + $0x160] sm:$0xff]
    %v3586 = vld [vmem:[%s17 + $0x168] sm:$0xff]
    %v3587 = vld [vmem:[%s17 + $0x170] sm:$0xff]
    %v3588 = vld [vmem:[%s17 + $0x178] sm:$0xff]
    %v3589 = vld [vmem:[%s17 + $0x180] sm:$0xff]
    %v3590 = vld [vmem:[%s17 + $0x188] sm:$0xff]
    %v3591 = vld [vmem:[%s17 + $0x190] sm:$0xff]
    %v3592 = vld [vmem:[%s17 + $0x198] sm:$0xff]
    %v3593 = vld [vmem:[%s17 + $0x1a0] sm:$0xff]
    %v3594 = vld [vmem:[%s17 + $0x1a8] sm:$0xff]
    %v3595 = vld [vmem:[%s17 + $0x1b0] sm:$0xff]
    %v3596 = vld [vmem:[%s17 + $0x1b8] sm:$0xff]
    %v3597 = vld [vmem:[%s17 + $0x1c0] sm:$0xff]
    %v3598 = vld [vmem:[%s17 + $0x1c8] sm:$0xff]
    %v3599 = vld [vmem:[%s17 + $0x1d0] sm:$0xff]
    %v3600 = vld [vmem:[%s17 + $0x1d8] sm:$0xff]
    %v3601 = vld [vmem:[%s17 + $0x1e0] sm:$0xff]
    %v3602 = vld [vmem:[%s17 + $0x1e8] sm:$0xff]
    %v3603 = vld [vmem:[%s17 + $0x1f0] sm:$0xff]
    %v3604 = vld [vmem:[%s17 + $0x1f8] sm:$0xff]
    %v3605 = vld [vmem:[%s18] sm:$0xf]
    %v3607 = vperm.slane %v3605, 0
    %v3608 = vperm.slane %v3605, 1
    %v3609 = vperm.slane %v3605, 2
    %v3610 = vperm.slane %v3605, 3
    %3615 = vmatpush.msra.mxu0 %v3601
    %3616 = vmatpush.msra.mxu0 %v3597
    %3617 = vmatpush.msra.mxu0 %v3593
    %3618 = vmatpush.msra.mxu0 %v3589
    %3619 = vmatpush.msra.mxu0 %v3585
    %3620 = vmatpush.msra.mxu0 %v3581
    %3621 = vmatpush.msra.mxu0 %v3577
    %3622 = vmatpush.msra.mxu0 %v3573
    %3623 = vmatpush.msra.mxu0 %v3569
    %3624 = vmatpush.msra.mxu0 %v3565
    %3625 = vmatpush.msra.mxu0 %v3561
    %3626 = vmatpush.msra.mxu0 %v3557
    %3627 = vmatpush.msra.mxu0 %v3553
    %3628 = vmatpush.msra.mxu0 %v3549
    %3629 = vmatpush.msra.mxu0 %v3545
    %3630 = vmatpush.msra.mxu0 %v3541
    %3631 = vmatmul.f32.gmra.mxu0 %v3539
    %v3632 = vpop.f32.mrf.mxu0
    %v3633 = vadd.f32 %v3607, %v3632
    %3634 = vmatmul.f32.gmra.mxu0 %v3540
    %v3635 = vpop.f32.mrf.mxu0
    %v3636 = vadd.f32 %v3607, %v3635
    %3637 = vdwg.mxu0
    %3638 = vmatpush.msra.mxu0 %v3602
    %3639 = vmatpush.msra.mxu0 %v3598
    %3640 = vmatpush.msra.mxu0 %v3594
    %3641 = vmatpush.msra.mxu0 %v3590
    %3642 = vmatpush.msra.mxu0 %v3586
    %3643 = vmatpush.msra.mxu0 %v3582
    %3644 = vmatpush.msra.mxu0 %v3578
    %3645 = vmatpush.msra.mxu0 %v3574
    %3646 = vmatpush.msra.mxu0 %v3570
    %3647 = vmatpush.msra.mxu0 %v3566
    %3648 = vmatpush.msra.mxu0 %v3562
    %3649 = vmatpush.msra.mxu0 %v3558
    %3650 = vmatpush.msra.mxu0 %v3554
    %3651 = vmatpush.msra.mxu0 %v3550
    %3652 = vmatpush.msra.mxu0 %v3546
    %3653 = vmatpush.msra.mxu0 %v3542
    %3654 = vmatmul.f32.gmra.mxu0 %v3539
    %v3655 = vpop.f32.mrf.mxu0
    %v3656 = vadd.f32 %v3608, %v3655
    %3657 = vmatmul.f32.gmra.mxu0 %v3540
    %v3658 = vpop.f32.mrf.mxu0
    %v3659 = vadd.f32 %v3608, %v3658
    %3660 = vdwg.mxu0
    %3661 = vmatpush.msra.mxu0 %v3603
    %3662 = vmatpush.msra.mxu0 %v3599
    %3663 = vmatpush.msra.mxu0 %v3595
    %3664 = vmatpush.msra.mxu0 %v3591
    %3665 = vmatpush.msra.mxu0 %v3587
    %3666 = vmatpush.msra.mxu0 %v3583
    %3667 = vmatpush.msra.mxu0 %v3579
    %3668 = vmatpush.msra.mxu0 %v3575
    %3669 = vmatpush.msra.mxu0 %v3571
    %3670 = vmatpush.msra.mxu0 %v3567
    %3671 = vmatpush.msra.mxu0 %v3563
    %3672 = vmatpush.msra.mxu0 %v3559
    %3673 = vmatpush.msra.mxu0 %v3555
    %3674 = vmatpush.msra.mxu0 %v3551
    %3675 = vmatpush.msra.mxu0 %v3547
    %3676 = vmatpush.msra.mxu0 %v3543
    %3677 = vmatmul.f32.gmra.mxu0 %v3539
    %v3678 = vpop.f32.mrf.mxu0
    %v3679 = vadd.f32 %v3609, %v3678
    %3680 = vmatmul.f32.gmra.mxu0 %v3540
    %v3681 = vpop.f32.mrf.mxu0
    %v3682 = vadd.f32 %v3609, %v3681
    %3683 = vdwg.mxu0
    %3684 = vmatpush.msra.mxu0 %v3604
    %3685 = vmatpush.msra.mxu0 %v3600
    %3686 = vmatpush.msra.mxu0 %v3596
    %3687 = vmatpush.msra.mxu0 %v3592
    %3688 = vmatpush.msra.mxu0 %v3588
    %3689 = vmatpush.msra.mxu0 %v3584
    %3690 = vmatpush.msra.mxu0 %v3580
    %3691 = vmatpush.msra.mxu0 %v3576
    %3692 = vmatpush.msra.mxu0 %v3572
    %3693 = vmatpush.msra.mxu0 %v3568
    %3694 = vmatpush.msra.mxu0 %v3564
    %3695 = vmatpush.msra.mxu0 %v3560
    %3696 = vmatpush.msra.mxu0 %v3556
    %3697 = vmatpush.msra.mxu0 %v3552
    %3698 = vmatpush.msra.mxu0 %v3548
    %3699 = vmatpush.msra.mxu0 %v3544
    %3700 = vmatmul.f32.gmra.mxu0 %v3539
    %v3701 = vpop.f32.mrf.mxu0
    %v3702 = vadd.f32 %v3610, %v3701
    %3703 = vmatmul.f32.gmra.mxu0 %v3540
    %v3704 = vpop.f32.mrf.mxu0
    %v3705 = vadd.f32 %v3610, %v3704
    %3706 = vdwg.mxu0
    %v3707 = vmax.f32 %v3633, 0.0
    %v3708 = vmax.f32 %v3656, 0.0
    %v3709 = vmax.f32 %v3679, 0.0
    %v3710 = vmax.f32 %v3702, 0.0
    %v3711 = vmax.f32 %v3636, 0.0
    %v3712 = vmax.f32 %v3659, 0.0
    %v3713 = vmax.f32 %v3682, 0.0
    %v3714 = vmax.f32 %v3705, 0.0
    %v3715 = vld [vmem:[#allocation8] sm:$0xff]
    %v3716 = vld [vmem:[#allocation8 + $0x8] sm:$0xff]
    %v3717 = vld [vmem:[#allocation8 + $0x10] sm:$0xff]
    %v3718 = vld [vmem:[#allocation8 + $0x18] sm:$0xff]
    %v3719 = vld [vmem:[#allocation8 + $0x20] sm:$0xff]
    %v3720 = vld [vmem:[#allocation8 + $0x28] sm:$0xff]
    %v3721 = vld [vmem:[#allocation8 + $0x30] sm:$0xff]
    %v3722 = vld [vmem:[#allocation8 + $0x38] sm:$0xff]
    %v3723 = vld [vmem:[#allocation8 + $0x40] sm:$0xff]
    %v3724 = vld [vmem:[#allocation8 + $0x48] sm:$0xff]
    %v3725 = vld [vmem:[#allocation8 + $0x50] sm:$0xff]
    %v3726 = vld [vmem:[#allocation8 + $0x58] sm:$0xff]
    %v3727 = vld [vmem:[#allocation8 + $0x60] sm:$0xff]
    %v3728 = vld [vmem:[#allocation8 + $0x68] sm:$0xff]
    %v3729 = vld [vmem:[#allocation8 + $0x70] sm:$0xff]
    %v3730 = vld [vmem:[#allocation8 + $0x78] sm:$0xff]
    %v3731 = vld [vmem:[#allocation8 + $0x80] sm:$0xff]
    %v3732 = vld [vmem:[#allocation8 + $0x88] sm:$0xff]
    %v3733 = vld [vmem:[#allocation8 + $0x90] sm:$0xff]
    %v3734 = vld [vmem:[#allocation8 + $0x98] sm:$0xff]
    %v3735 = vld [vmem:[#allocation8 + $0xa0] sm:$0xff]
    %v3736 = vld [vmem:[#allocation8 + $0xa8] sm:$0xff]
    %v3737 = vld [vmem:[#allocation8 + $0xb0] sm:$0xff]
    %v3738 = vld [vmem:[#allocation8 + $0xb8] sm:$0xff]
    %v3739 = vld [vmem:[#allocation8 + $0xc0] sm:$0xff]
    %v3740 = vld [vmem:[#allocation8 + $0xc8] sm:$0xff]
    %v3741 = vld [vmem:[#allocation8 + $0xd0] sm:$0xff]
    %v3742 = vld [vmem:[#allocation8 + $0xd8] sm:$0xff]
    %v3743 = vld [vmem:[#allocation8 + $0xe0] sm:$0xff]
    %v3744 = vld [vmem:[#allocation8 + $0xe8] sm:$0xff]
    %v3745 = vld [vmem:[#allocation8 + $0xf0] sm:$0xff]
    %v3746 = vld [vmem:[#allocation8 + $0xf8] sm:$0xff]
    %v3747 = vld [vmem:[#allocation8 + $0x100] sm:$0xff]
    %v3748 = vld [vmem:[#allocation8 + $0x108] sm:$0xff]
    %v3749 = vld [vmem:[#allocation8 + $0x110] sm:$0xff]
    %v3750 = vld [vmem:[#allocation8 + $0x118] sm:$0xff]
    %v3751 = vld [vmem:[#allocation8 + $0x120] sm:$0xff]
    %v3752 = vld [vmem:[#allocation8 + $0x128] sm:$0xff]
    %v3753 = vld [vmem:[#allocation8 + $0x130] sm:$0xff]
    %v3754 = vld [vmem:[#allocation8 + $0x138] sm:$0xff]
    %v3755 = vld [vmem:[#allocation8 + $0x140] sm:$0xff]
    %v3756 = vld [vmem:[#allocation8 + $0x148] sm:$0xff]
    %v3757 = vld [vmem:[#allocation8 + $0x150] sm:$0xff]
    %v3758 = vld [vmem:[#allocation8 + $0x158] sm:$0xff]
    %v3759 = vld [vmem:[#allocation8 + $0x160] sm:$0xff]
    %v3760 = vld [vmem:[#allocation8 + $0x168] sm:$0xff]
    %v3761 = vld [vmem:[#allocation8 + $0x170] sm:$0xff]
    %v3762 = vld [vmem:[#allocation8 + $0x178] sm:$0xff]
    %v3763 = vld [vmem:[#allocation8 + $0x180] sm:$0xff]
    %v3764 = vld [vmem:[#allocation8 + $0x188] sm:$0xff]
    %v3765 = vld [vmem:[#allocation8 + $0x190] sm:$0xff]
    %v3766 = vld [vmem:[#allocation8 + $0x198] sm:$0xff]
    %v3767 = vld [vmem:[#allocation8 + $0x1a0] sm:$0xff]
    %v3768 = vld [vmem:[#allocation8 + $0x1a8] sm:$0xff]
    %v3769 = vld [vmem:[#allocation8 + $0x1b0] sm:$0xff]
    %v3770 = vld [vmem:[#allocation8 + $0x1b8] sm:$0xff]
    %v3771 = vld [vmem:[#allocation8 + $0x1c0] sm:$0xff]
    %v3772 = vld [vmem:[#allocation8 + $0x1c8] sm:$0xff]
    %v3773 = vld [vmem:[#allocation8 + $0x1d0] sm:$0xff]
    %v3774 = vld [vmem:[#allocation8 + $0x1d8] sm:$0xff]
    %v3775 = vld [vmem:[#allocation8 + $0x1e0] sm:$0xff]
    %v3776 = vld [vmem:[#allocation8 + $0x1e8] sm:$0xff]
    %v3777 = vld [vmem:[#allocation8 + $0x1f0] sm:$0xff]
    %v3778 = vld [vmem:[#allocation8 + $0x1f8] sm:$0xff]
    %v3779 = vld [vmem:[%s20] sm:$0x1]
    %v3781 = vperm.slane %v3779, 0
    %3783 = vmatpush.msra.mxu0 %v3730
    %3784 = vmatpush.msra.mxu0 %v3729
    %3785 = vmatpush.msra.mxu0 %v3728
    %3786 = vmatpush.msra.mxu0 %v3727
    %3787 = vmatpush.msra.mxu0 %v3726
    %3788 = vmatpush.msra.mxu0 %v3725
    %3789 = vmatpush.msra.mxu0 %v3724
    %3790 = vmatpush.msra.mxu0 %v3723
    %3791 = vmatpush.msra.mxu0 %v3722
    %3792 = vmatpush.msra.mxu0 %v3721
    %3793 = vmatpush.msra.mxu0 %v3720
    %3794 = vmatpush.msra.mxu0 %v3719
    %3795 = vmatpush.msra.mxu0 %v3718
    %3796 = vmatpush.msra.mxu0 %v3717
    %3797 = vmatpush.msra.mxu0 %v3716
    %3798 = vmatpush.msra.mxu0 %v3715
    %3799 = vmatmul.f32.gmra.mxu0 %v3707
    %v3800 = vpop.f32.mrf.mxu0
    %v3801 = vadd.f32 %v3781, %v3800
    %3802 = vmatmul.f32.gmra.mxu0 %v3711
    %v3803 = vpop.f32.mrf.mxu0
    %v3804 = vadd.f32 %v3781, %v3803
    %3805 = vdwg.mxu0
    %3806 = vmatpush.msra.mxu0 %v3746
    %3807 = vmatpush.msra.mxu0 %v3745
    %3808 = vmatpush.msra.mxu0 %v3744
    %3809 = vmatpush.msra.mxu0 %v3743
    %3810 = vmatpush.msra.mxu0 %v3742
    %3811 = vmatpush.msra.mxu0 %v3741
    %3812 = vmatpush.msra.mxu0 %v3740
    %3813 = vmatpush.msra.mxu0 %v3739
    %3814 = vmatpush.msra.mxu0 %v3738
    %3815 = vmatpush.msra.mxu0 %v3737
    %3816 = vmatpush.msra.mxu0 %v3736
    %3817 = vmatpush.msra.mxu0 %v3735
    %3818 = vmatpush.msra.mxu0 %v3734
    %3819 = vmatpush.msra.mxu0 %v3733
    %3820 = vmatpush.msra.mxu0 %v3732
    %3821 = vmatpush.msra.mxu0 %v3731
    %3822 = vmatmul.f32.gmra.mxu0 %v3708
    %v3823 = vpop.f32.mrf.mxu0
    %v3824 = vadd.f32 %v3801, %v3823
    %3825 = vmatmul.f32.gmra.mxu0 %v3712
    %v3826 = vpop.f32.mrf.mxu0
    %v3827 = vadd.f32 %v3804, %v3826
    %3828 = vdwg.mxu0
    %3829 = vmatpush.msra.mxu0 %v3762
    %3830 = vmatpush.msra.mxu0 %v3761
    %3831 = vmatpush.msra.mxu0 %v3760
    %3832 = vmatpush.msra.mxu0 %v3759
    %3833 = vmatpush.msra.mxu0 %v3758
    %3834 = vmatpush.msra.mxu0 %v3757
    %3835 = vmatpush.msra.mxu0 %v3756
    %3836 = vmatpush.msra.mxu0 %v3755
    %3837 = vmatpush.msra.mxu0 %v3754
    %3838 = vmatpush.msra.mxu0 %v3753
    %3839 = vmatpush.msra.mxu0 %v3752
    %3840 = vmatpush.msra.mxu0 %v3751
    %3841 = vmatpush.msra.mxu0 %v3750
    %3842 = vmatpush.msra.mxu0 %v3749
    %3843 = vmatpush.msra.mxu0 %v3748
    %3844 = vmatpush.msra.mxu0 %v3747
    %3845 = vmatmul.f32.gmra.mxu0 %v3709
    %v3846 = vpop.f32.mrf.mxu0
    %v3847 = vadd.f32 %v3824, %v3846
    %3848 = vmatmul.f32.gmra.mxu0 %v3713
    %v3849 = vpop.f32.mrf.mxu0
    %v3850 = vadd.f32 %v3827, %v3849
    %3851 = vdwg.mxu0
    %3852 = vmatpush.msra.mxu0 %v3778
    %3853 = vmatpush.msra.mxu0 %v3777
    %3854 = vmatpush.msra.mxu0 %v3776
    %3855 = vmatpush.msra.mxu0 %v3775
    %3856 = vmatpush.msra.mxu0 %v3774
    %3857 = vmatpush.msra.mxu0 %v3773
    %3858 = vmatpush.msra.mxu0 %v3772
    %3859 = vmatpush.msra.mxu0 %v3771
    %3860 = vmatpush.msra.mxu0 %v3770
    %3861 = vmatpush.msra.mxu0 %v3769
    %3862 = vmatpush.msra.mxu0 %v3768
    %3863 = vmatpush.msra.mxu0 %v3767
    %3864 = vmatpush.msra.mxu0 %v3766
    %3865 = vmatpush.msra.mxu0 %v3765
    %3866 = vmatpush.msra.mxu0 %v3764
    %3867 = vmatpush.msra.mxu0 %v3763
    %3868 = vmatmul.f32.gmra.mxu0 %v3710
    %v3869 = vpop.f32.mrf.mxu0
    %v3870 = vadd.f32 %v3847, %v3869
    %3871 = vmatmul.f32.gmra.mxu0 %v3714
    %v3872 = vpop.f32.mrf.mxu0
    %v3873 = vadd.f32 %v3850, %v3872
    %3874 = vdwg.mxu0
    %v3875 = vmax.f32 %v3870, 0.0
    %v3876 = vmax.f32 %v3873, 0.0
    %v3877 = vld [vmem:[%s21] sm:$0xff]
    %v3878 = vld [vmem:[%s21 + $0x8] sm:$0xff]
    %v3879 = vld [vmem:[%s21 + $0x10] sm:$0xff]
    %v3880 = vld [vmem:[%s21 + $0x18] sm:$0xff]
    %v3881 = vld [vmem:[%s21 + $0x20] sm:$0xff]
    %v3882 = vld [vmem:[%s21 + $0x28] sm:$0xff]
    %v3883 = vld [vmem:[%s21 + $0x30] sm:$0xff]
    %v3884 = vld [vmem:[%s21 + $0x38] sm:$0xff]
    %v3885 = vld [vmem:[%s21 + $0x40] sm:$0xff]
    %v3886 = vld [vmem:[%s21 + $0x48] sm:$0xff]
    %v3887 = vld [vmem:[%s21 + $0x50] sm:$0xff]
    %v3888 = vld [vmem:[%s21 + $0x58] sm:$0xff]
    %v3889 = vld [vmem:[%s21 + $0x60] sm:$0xff]
    %v3890 = vld [vmem:[%s21 + $0x68] sm:$0xff]
    %v3891 = vld [vmem:[%s21 + $0x70] sm:$0xff]
    %v3892 = vld [vmem:[%s21 + $0x78] sm:$0xff]
    %v3893 = vld [vmem:[%s22] sm:$0x1]
    %v3895 = vperm.slane %v3893, 0
    %3897 = vmatpush.msra.mxu0 %v3892
    %3898 = vmatpush.msra.mxu0 %v3891
    %3899 = vmatpush.msra.mxu0 %v3890
    %3900 = vmatpush.msra.mxu0 %v3889
    %3901 = vmatpush.msra.mxu0 %v3888
    %3902 = vmatpush.msra.mxu0 %v3887
    %3903 = vmatpush.msra.mxu0 %v3886
    %3904 = vmatpush.msra.mxu0 %v3885
    %3905 = vmatpush.msra.mxu0 %v3884
    %3906 = vmatpush.msra.mxu0 %v3883
    %3907 = vmatpush.msra.mxu0 %v3882
    %3908 = vmatpush.msra.mxu0 %v3881
    %3909 = vmatpush.msra.mxu0 %v3880
    %3910 = vmatpush.msra.mxu0 %v3879
    %3911 = vmatpush.msra.mxu0 %v3878
    %3912 = vmatpush.msra.mxu0 %v3877
    %3913 = vmatmul.f32.gmra.mxu0 %v3875
    %v3914 = vpop.f32.mrf.mxu0
    %v3915 = vadd.f32 %v3895, %v3914
    %3916 = vmatmul.f32.gmra.mxu0 %v3876
    %v3917 = vpop.f32.mrf.mxu0
    %v3918 = vadd.f32 %v3895, %v3917
    %3919 = vdwg.mxu0
    %v3920 = vmax.f32 %v3915, 0.0
    %v3921 = vmax.f32 %v3918, 0.0
    %v3922 = vld [vmem:[%s23] sm:$0xff]
    %v3923 = vld [vmem:[%s23 + $0x8] sm:$0xff]
    %v3924 = vld [vmem:[%s23 + $0x10] sm:$0xff]
    %v3925 = vld [vmem:[%s23 + $0x18] sm:$0xff]
    %v3926 = vld [vmem:[%s23 + $0x20] sm:$0xff]
    %v3927 = vld [vmem:[%s23 + $0x28] sm:$0xff]
    %v3928 = vld [vmem:[%s23 + $0x30] sm:$0xff]
    %v3929 = vld [vmem:[%s23 + $0x38] sm:$0xff]
    %v3930 = vld [vmem:[%s23 + $0x40] sm:$0xff]
    %v3931 = vld [vmem:[%s23 + $0x48] sm:$0xff]
    %v3932 = vld [vmem:[%s23 + $0x50] sm:$0xff]
    %v3933 = vld [vmem:[%s23 + $0x58] sm:$0xff]
    %v3934 = vld [vmem:[%s23 + $0x60] sm:$0xff]
    %v3935 = vld [vmem:[%s23 + $0x68] sm:$0xff]
    %v3936 = vld [vmem:[%s23 + $0x70] sm:$0xff]
    %v3937 = vld [vmem:[%s23 + $0x78] sm:$0xff]
    %v3938 = vld [vmem:[%s24] sm:$0x1]
    %v3940 = vperm.slane %v3938, 0
    %3942 = vmatpush.msra.mxu0 %v3937
    %3943 = vmatpush.msra.mxu0 %v3936
    %3944 = vmatpush.msra.mxu0 %v3935
    %3945 = vmatpush.msra.mxu0 %v3934
    %3946 = vmatpush.msra.mxu0 %v3933
    %3947 = vmatpush.msra.mxu0 %v3932
    %3948 = vmatpush.msra.mxu0 %v3931
    %3949 = vmatpush.msra.mxu0 %v3930
    %3950 = vmatpush.msra.mxu0 %v3929
    %3951 = vmatpush.msra.mxu0 %v3928
    %3952 = vmatpush.msra.mxu0 %v3927
    %3953 = vmatpush.msra.mxu0 %v3926
    %3954 = vmatpush.msra.mxu0 %v3925
    %3955 = vmatpush.msra.mxu0 %v3924
    %3956 = vmatpush.msra.mxu0 %v3923
    %3957 = vmatpush.msra.mxu0 %v3922
    %3958 = vmatmul.f32.gmra.mxu0 %v3920
    %v3959 = vpop.f32.mrf.mxu0
    %v3960 = vadd.f32 %v3940, %v3959
    %3961 = vmatmul.f32.gmra.mxu0 %v3921
    %v3962 = vpop.f32.mrf.mxu0
    %v3963 = vadd.f32 %v3940, %v3962
    %3964 = vdwg.mxu0
    %3965 = vst [vmem:[%s25] sm:$0xff] %v3960
    %3966 = vst [vmem:[%s25 + $0x8] sm:$0xff] %v3963
    // Predicated region
    $region118: #{parser_forward.1} parent=1 // pred_check
      _
    $region119: #{parser_forward.1} parent=1 // pred_check_branch
      %3968 = sbr.rel (0) target = $region121
    $region120: #{parser_forward.1} parent=1 // pred_region
      _
    $region121: #{parser_forward.1} parent=1 // pred_fallthru
      _
    // Predicated region
    $region122: #{parser_forward.1} parent=1 // pred_check
      _
    $region123: #{parser_forward.1} parent=1 // pred_check_branch
      %3970 = sbr.rel (0) target = $region125
    $region124: #{parser_forward.1} parent=1 // pred_region
      _
    $region125: #{parser_forward.1} parent=1 // pred_fallthru
      _
    %3971 = vsyncpa [#allocation4], 1
    %3972 = vsyncpa [#allocation6], 1
    %3973 = vsyncpa [#allocation9], 1

</llo_original>
